<compile_context>
chip_gen: v7x
topology: tpu7x:2x2x1
jax: 0.10.0
libtpu: 0.0.40
codegen_flags: <defaults>
</compile_context>

<pallas_src>
import functools

import jax
import jax.numpy as jnp
from jax.experimental import pallas as pl
from jax.experimental.pallas import tpu as pltpu

NEG_INF = -1e30
LEAKY_SLOPE = 0.01  # torch.nn.LeakyReLU default negative_slope


# ---------------------------------------------------------------------------
# Fused kernel: edge MLPs + 2x PDNConv (gcn-normalized weighted aggregation)
#               + residual + global max pool + LeakyReLU + final Linear
# ---------------------------------------------------------------------------
def _pdn_kernel(x_ref, ea_ref, adj_ref, bmask_ref,
                m1w1_ref, m1b1_ref, m1w2_ref, m1b2_ref,
                m2w1_ref, m2b1_ref, m2w2_ref, m2b2_ref,
                wl1_ref, bl1_ref, wl2_ref, bl2_ref,
                wfc_ref, bfc_ref, out_ref, *, e_dim, hid):
    x = x_ref[...]                       # [N, C_in]
    adj = adj_ref[...]                   # [N, N], adj[i, j] = 1 iff edge j -> i
    # Load each lane-dense [N, N] edge-feature slab exactly once; both edge MLPs
    # reuse these vreg-resident slabs.
    ea = [ea_ref[e] for e in range(e_dim)]

    def leaky(v):
        return jnp.where(v > 0.0, v, LEAKY_SLOPE * v)

    def masked_edge_weights(w1, b1, w2, b2):
        # sigmoid(W2 @ relu(W1 @ ea + b1) + b2) * adj, as lane-dense VPU FMAs with the
        # tiny MLP weights read as SMEM scalars (no MXU, no E/1-wide lane padding).
        s = None
        for k in range(hid):
            h = ea[0] * w1[0, k] + b1[k]
            for e in range(1, e_dim):
                h = h + ea[e] * w1[e, k]
            h = jnp.maximum(h, 0.0) * w2[k]
            s = h if s is None else s + h
        return jax.nn.sigmoid(s + b2[0]) * adj          # adjacency mask folded in here

    def gcn_conv(a_masked, xin, wl_t, bl):
        # D^{-1/2} (a_masked + I) D^{-1/2} (xin @ W^T) + b, without materializing I.
        deg = jnp.sum(a_masked, axis=1, keepdims=True) + 1.0   # self-loop weight 1
        dinv = jax.lax.rsqrt(deg)                              # deg >= 1 -> always safe
        xl = jnp.dot(xin, wl_t, preferred_element_type=jnp.float32)
        xl_s = dinv * xl
        agg = jnp.dot(a_masked, xl_s, preferred_element_type=jnp.float32) + xl_s
        return dinv * agg + bl

    a1 = masked_edge_weights(m1w1_ref, m1b1_ref, m1w2_ref, m1b2_ref)
    a2 = masked_edge_weights(m2w1_ref, m2b1_ref, m2w2_ref, m2b2_ref)

    x1 = leaky(gcn_conv(a1, x, wl1_ref[...], bl1_ref[...]))
    x2 = gcn_conv(a2, x1, wl2_ref[...], bl2_ref[...]) + x      # residual

    # Single-pass global max pool per graph (bmask: [G, N, 1] one-hot node mask).
    bmask = bmask_ref[...]
    pooled = jnp.max(jnp.where(bmask > 0.5, x2[None, :, :], NEG_INF), axis=1)   # [G, C]
    pooled = leaky(pooled)
    out_ref[...] = jnp.dot(pooled, wfc_ref[...],
                           preferred_element_type=jnp.float32) + bfc_ref[...]


def pdn_forward(params, x, ea_dense, adj, batch, num_graphs):
    e_dim = ea_dense.shape[-1]
    hid = params["c1_mlp_w1"].shape[0]
    out_c = params["fc_w"].shape[0]

    # Lane-dense edge-attribute layout: ea_enn[e, i, j] = feature e of edge j -> i.
    ea_enn = jnp.transpose(ea_dense, (2, 0, 1))
    # Per-graph one-hot node mask, pre-shaped to broadcast against [1, N, C] in-kernel.
    bmask = (jnp.arange(num_graphs, dtype=batch.dtype)[:, None]
             == batch[None, :]).astype(jnp.float32)[:, :, None]          # [G, N, 1]

    vmem = pl.BlockSpec(memory_space=pltpu.MemorySpace.VMEM)
    smem = pl.BlockSpec(memory_space=pltpu.MemorySpace.SMEM)

    kernel = functools.partial(_pdn_kernel, e_dim=e_dim, hid=hid)
    return pl.pallas_call(
        kernel,
        out_shape=jax.ShapeDtypeStruct((num_graphs, out_c), jnp.float32),
        in_specs=[vmem, vmem, vmem, vmem] + [smem] * 8 + [vmem] * 6,
        out_specs=vmem,
    )(x, ea_enn, adj, bmask,
      params["c1_mlp_w1"].T, params["c1_mlp_b1"], params["c1_mlp_w2"][0], params["c1_mlp_b2"],
      params["c2_mlp_w1"].T, params["c2_mlp_b1"], params["c2_mlp_w2"][0], params["c2_mlp_b2"],
      params["c1_lin_w"].T, params["c1_bias"][None, :],
      params["c2_lin_w"].T, params["c2_bias"][None, :],
      params["fc_w"].T, params["fc_b"][None, :])


# ---------------------------------------------------------------------------
# Pure-JAX reference (same dense formulation) for a correctness check
# ---------------------------------------------------------------------------
def reference_forward(params, x, ea_dense, adj, batch):
    with jax.default_matmul_precision("highest"):
        def edge_w(wm1, bm1, wm2, bm2):
            h = jnp.maximum(jnp.einsum("ije,he->ijh", ea_dense, wm1) + bm1, 0.0)
            return jax.nn.sigmoid(jnp.einsum("ijh,oh->ijo", h, wm2)[..., 0] + bm2)

        def conv(ew, xin, wl, b):
            n = xin.shape[0]
            a = ew * adj + jnp.eye(n, dtype=jnp.float32)
            deg = a.sum(axis=1)
            dinv = jnp.where(deg > 0, 1.0 / jnp.sqrt(deg), 0.0)
            a_norm = dinv[:, None] * a * dinv[None, :]
            return a_norm @ (xin @ wl.T) + b

        leaky = lambda v: jnp.where(v > 0, v, LEAKY_SLOPE * v)
        h = x
        x1 = leaky(conv(edge_w(params["c1_mlp_w1"], params["c1_mlp_b1"],
                               params["c1_mlp_w2"], params["c1_mlp_b2"]),
                        x, params["c1_lin_w"], params["c1_bias"]))
        x2 = conv(edge_w(params["c2_mlp_w1"], params["c2_mlp_b1"],
                         params["c2_mlp_w2"], params["c2_mlp_b2"]),
                  x1, params["c2_lin_w"], params["c2_bias"]) + h
        num_g = int(batch.max()) + 1
        pooled = jnp.stack([jnp.max(jnp.where((batch == i)[:, None], x2, NEG_INF), axis=0)
                            for i in range(num_g)])
        pooled = leaky(pooled)
        return pooled @ params["fc_w"].T + params["fc_b"]


# ---------------------------------------------------------------------------
if __name__ == "__main__":
    # small, PDN-consistent shapes
    N = 8              # nodes (2 graphs x 4 nodes)
    G = 2              # graphs
    C_IN = 4           # in_channels
    C_OUT = 6          # out_channels
    E_DIM = 5          # edge_dim
    HID = 16           # hidden_channels of the edge MLP

    key = jax.random.PRNGKey(0)
    ks = jax.random.split(key, 16)

    def lin_init(k, out_f, in_f):
        kw, kb = jax.random.split(k)
        bound = 1.0 / jnp.sqrt(in_f)
        w = jax.random.uniform(kw, (out_f, in_f), jnp.float32, -bound, bound)
        b = jax.random.uniform(kb, (out_f,), jnp.float32, -bound, bound)
        return w, b

    # conv1: PDNConv(C_IN -> 2*C_IN), conv2: PDNConv(2*C_IN -> C_IN), fc: C_IN -> C_OUT
    c1_lin_w, _ = lin_init(ks[0], 2 * C_IN, C_IN)              # lin has no bias in PDNConv
    c1_bias = jax.random.normal(ks[1], (2 * C_IN,), jnp.float32) * 0.1
    c1_mlp_w1, c1_mlp_b1 = lin_init(ks[2], HID, E_DIM)
    c1_mlp_w2, c1_mlp_b2 = lin_init(ks[3], 1, HID)

    c2_lin_w, _ = lin_init(ks[4], C_IN, 2 * C_IN)
    c2_bias = jax.random.normal(ks[5], (C_IN,), jnp.float32) * 0.1
    c2_mlp_w1, c2_mlp_b1 = lin_init(ks[6], HID, E_DIM)
    c2_mlp_w2, c2_mlp_b2 = lin_init(ks[7], 1, HID)

    fc_w, fc_b = lin_init(ks[8], C_OUT, C_IN)

    params = dict(
        c1_lin_w=c1_lin_w, c1_bias=c1_bias,
        c1_mlp_w1=c1_mlp_w1, c1_mlp_b1=c1_mlp_b1, c1_mlp_w2=c1_mlp_w2, c1_mlp_b2=c1_mlp_b2,
        c2_lin_w=c2_lin_w, c2_bias=c2_bias,
        c2_mlp_w1=c2_mlp_w1, c2_mlp_b1=c2_mlp_b1, c2_mlp_w2=c2_mlp_w2, c2_mlp_b2=c2_mlp_b2,
        fc_w=fc_w, fc_b=fc_b,
    )

    # graph data: two 4-node ring graphs, directed edges both ways, no self loops
    x = jax.random.normal(ks[9], (N, C_IN), jnp.float32)
    ea_dense = jax.random.normal(ks[10], (N, N, E_DIM), jnp.float32)  # attr of edge j -> i at [i, j]
    batch = jnp.array([0, 0, 0, 0, 1, 1, 1, 1], jnp.int32)

    adj = jnp.zeros((N, N), jnp.float32)
    for off in (0, 4):
        for a, b in [(0, 1), (1, 2), (2, 3), (3, 0)]:
            adj = adj.at[off + b, off + a].set(1.0)   # edge a -> b
            adj = adj.at[off + a, off + b].set(1.0)   # edge b -> a

    out = pdn_forward(params, x, ea_dense, adj, batch, G)
    out = jax.block_until_ready(out)

    ref = reference_forward(params, x, ea_dense, adj, batch)
    assert out.shape == (G, C_OUT), out.shape
    # The in-kernel edge MLP is exact f32 on the VPU; the remaining tiny matmuls go
    # through the MXU, whose f32 pass count depends on generation / precision defaults,
    # so allow a small relative slack.
    err = float(jnp.max(jnp.abs(out - ref)))
    tol = float(5e-3 * (1.0 + jnp.max(jnp.abs(ref))))
    assert err < tol, (err, tol, out, ref)

    print("KERNEL_OK")
</pallas_src>

<mosaic_0001>
module attributes {stable_mosaic.version = 11 : i64} {
  func.func @_pdn_kernel(%arg0: memref<8x4xf32, #tpu.memory_space<vmem>>, %arg1: memref<5x8x8xf32, #tpu.memory_space<vmem>>, %arg2: memref<8x8xf32, #tpu.memory_space<vmem>>, %arg3: memref<2x8x1xf32, #tpu.memory_space<vmem>>, %arg4: memref<5x16xf32, #tpu.memory_space<smem>>, %arg5: memref<16xf32, #tpu.memory_space<smem>>, %arg6: memref<16xf32, #tpu.memory_space<smem>>, %arg7: memref<1xf32, #tpu.memory_space<smem>>, %arg8: memref<5x16xf32, #tpu.memory_space<smem>>, %arg9: memref<16xf32, #tpu.memory_space<smem>>, %arg10: memref<16xf32, #tpu.memory_space<smem>>, %arg11: memref<1xf32, #tpu.memory_space<smem>>, %arg12: memref<4x8xf32, #tpu.memory_space<vmem>>, %arg13: memref<1x8xf32, #tpu.memory_space<vmem>>, %arg14: memref<8x4xf32, #tpu.memory_space<vmem>>, %arg15: memref<1x4xf32, #tpu.memory_space<vmem>>, %arg16: memref<4x6xf32, #tpu.memory_space<vmem>>, %arg17: memref<1x6xf32, #tpu.memory_space<vmem>>, %arg18: memref<2x6xf32, #tpu.memory_space<vmem>>) attributes {dimension_semantics = [], scalar_prefetch = 0 : i64, scratch_operands = 0 : i64, tpu.core_type = #tpu.core_type<tc>} {
    %c0 = arith.constant 0 : index
    %c0_0 = arith.constant 0 : index
    %0 = vector.load %arg0[%c0, %c0_0] : memref<8x4xf32, #tpu.memory_space<vmem>>, vector<8x4xf32>
    %c0_1 = arith.constant 0 : index
    %c0_2 = arith.constant 0 : index
    %1 = vector.load %arg2[%c0_1, %c0_2] : memref<8x8xf32, #tpu.memory_space<vmem>>, vector<8x8xf32>
    %c0_3 = arith.constant 0 : index
    %c0_4 = arith.constant 0 : index
    %c0_5 = arith.constant 0 : index
    %2 = vector.load %arg1[%c0_3, %c0_4, %c0_5] : memref<5x8x8xf32, #tpu.memory_space<vmem>>, vector<1x8x8xf32>
    %3 = vector.shape_cast %2 : vector<1x8x8xf32> to vector<8x8xf32>
    %c1 = arith.constant 1 : index
    %c0_6 = arith.constant 0 : index
    %c0_7 = arith.constant 0 : index
    %4 = vector.load %arg1[%c1, %c0_6, %c0_7] : memref<5x8x8xf32, #tpu.memory_space<vmem>>, vector<1x8x8xf32>
    %5 = vector.shape_cast %4 : vector<1x8x8xf32> to vector<8x8xf32>
    %c2 = arith.constant 2 : index
    %c0_8 = arith.constant 0 : index
    %c0_9 = arith.constant 0 : index
    %6 = vector.load %arg1[%c2, %c0_8, %c0_9] : memref<5x8x8xf32, #tpu.memory_space<vmem>>, vector<1x8x8xf32>
    %7 = vector.shape_cast %6 : vector<1x8x8xf32> to vector<8x8xf32>
    %c3 = arith.constant 3 : index
    %c0_10 = arith.constant 0 : index
    %c0_11 = arith.constant 0 : index
    %8 = vector.load %arg1[%c3, %c0_10, %c0_11] : memref<5x8x8xf32, #tpu.memory_space<vmem>>, vector<1x8x8xf32>
    %9 = vector.shape_cast %8 : vector<1x8x8xf32> to vector<8x8xf32>
    %c4 = arith.constant 4 : index
    %c0_12 = arith.constant 0 : index
    %c0_13 = arith.constant 0 : index
    %10 = vector.load %arg1[%c4, %c0_12, %c0_13] : memref<5x8x8xf32, #tpu.memory_space<vmem>>, vector<1x8x8xf32>
    %11 = vector.shape_cast %10 : vector<1x8x8xf32> to vector<8x8xf32>
    %c0_14 = arith.constant 0 : index
    %c0_15 = arith.constant 0 : index
    %12 = memref.load %arg4[%c0_14, %c0_15] : memref<5x16xf32, #tpu.memory_space<smem>>
    %13 = vector.broadcast %12 : f32 to vector<8x8xf32>
    %14 = arith.mulf %3, %13 : vector<8x8xf32>
    %c0_16 = arith.constant 0 : index
    %15 = memref.load %arg5[%c0_16] : memref<16xf32, #tpu.memory_space<smem>>
    %16 = vector.broadcast %15 : f32 to vector<8x8xf32>
    %17 = arith.addf %14, %16 : vector<8x8xf32>
    %c1_17 = arith.constant 1 : index
    %c0_18 = arith.constant 0 : index
    %18 = memref.load %arg4[%c1_17, %c0_18] : memref<5x16xf32, #tpu.memory_space<smem>>
    %19 = vector.broadcast %18 : f32 to vector<8x8xf32>
    %20 = arith.mulf %5, %19 : vector<8x8xf32>
    %21 = arith.addf %17, %20 : vector<8x8xf32>
    %c2_19 = arith.constant 2 : index
    %c0_20 = arith.constant 0 : index
    %22 = memref.load %arg4[%c2_19, %c0_20] : memref<5x16xf32, #tpu.memory_space<smem>>
    %23 = vector.broadcast %22 : f32 to vector<8x8xf32>
    %24 = arith.mulf %7, %23 : vector<8x8xf32>
    %25 = arith.addf %21, %24 : vector<8x8xf32>
    %c3_21 = arith.constant 3 : index
    %c0_22 = arith.constant 0 : index
    %26 = memref.load %arg4[%c3_21, %c0_22] : memref<5x16xf32, #tpu.memory_space<smem>>
    %27 = vector.broadcast %26 : f32 to vector<8x8xf32>
    %28 = arith.mulf %9, %27 : vector<8x8xf32>
    %29 = arith.addf %25, %28 : vector<8x8xf32>
    %c4_23 = arith.constant 4 : index
    %c0_24 = arith.constant 0 : index
    %30 = memref.load %arg4[%c4_23, %c0_24] : memref<5x16xf32, #tpu.memory_space<smem>>
    %31 = vector.broadcast %30 : f32 to vector<8x8xf32>
    %32 = arith.mulf %11, %31 : vector<8x8xf32>
    %33 = arith.addf %29, %32 : vector<8x8xf32>
    %cst = arith.constant 0.000000e+00 : f32
    %34 = vector.broadcast %cst : f32 to vector<8x8xf32>
    %35 = arith.maximumf %33, %34 : vector<8x8xf32>
    %c0_25 = arith.constant 0 : index
    %36 = memref.load %arg6[%c0_25] : memref<16xf32, #tpu.memory_space<smem>>
    %37 = vector.broadcast %36 : f32 to vector<8x8xf32>
    %38 = arith.mulf %35, %37 : vector<8x8xf32>
    %c0_26 = arith.constant 0 : index
    %c1_27 = arith.constant 1 : index
    %39 = memref.load %arg4[%c0_26, %c1_27] : memref<5x16xf32, #tpu.memory_space<smem>>
    %40 = vector.broadcast %39 : f32 to vector<8x8xf32>
    %41 = arith.mulf %3, %40 : vector<8x8xf32>
    %c1_28 = arith.constant 1 : index
    %42 = memref.load %arg5[%c1_28] : memref<16xf32, #tpu.memory_space<smem>>
    %43 = vector.broadcast %42 : f32 to vector<8x8xf32>
    %44 = arith.addf %41, %43 : vector<8x8xf32>
    %c1_29 = arith.constant 1 : index
    %c1_30 = arith.constant 1 : index
    %45 = memref.load %arg4[%c1_29, %c1_30] : memref<5x16xf32, #tpu.memory_space<smem>>
    %46 = vector.broadcast %45 : f32 to vector<8x8xf32>
    %47 = arith.mulf %5, %46 : vector<8x8xf32>
    %48 = arith.addf %44, %47 : vector<8x8xf32>
    %c2_31 = arith.constant 2 : index
    %c1_32 = arith.constant 1 : index
    %49 = memref.load %arg4[%c2_31, %c1_32] : memref<5x16xf32, #tpu.memory_space<smem>>
    %50 = vector.broadcast %49 : f32 to vector<8x8xf32>
    %51 = arith.mulf %7, %50 : vector<8x8xf32>
    %52 = arith.addf %48, %51 : vector<8x8xf32>
    %c3_33 = arith.constant 3 : index
    %c1_34 = arith.constant 1 : index
    %53 = memref.load %arg4[%c3_33, %c1_34] : memref<5x16xf32, #tpu.memory_space<smem>>
    %54 = vector.broadcast %53 : f32 to vector<8x8xf32>
    %55 = arith.mulf %9, %54 : vector<8x8xf32>
    %56 = arith.addf %52, %55 : vector<8x8xf32>
    %c4_35 = arith.constant 4 : index
    %c1_36 = arith.constant 1 : index
    %57 = memref.load %arg4[%c4_35, %c1_36] : memref<5x16xf32, #tpu.memory_space<smem>>
    %58 = vector.broadcast %57 : f32 to vector<8x8xf32>
    %59 = arith.mulf %11, %58 : vector<8x8xf32>
    %60 = arith.addf %56, %59 : vector<8x8xf32>
    %cst_37 = arith.constant 0.000000e+00 : f32
    %61 = vector.broadcast %cst_37 : f32 to vector<8x8xf32>
    %62 = arith.maximumf %60, %61 : vector<8x8xf32>
    %c1_38 = arith.constant 1 : index
    %63 = memref.load %arg6[%c1_38] : memref<16xf32, #tpu.memory_space<smem>>
    %64 = vector.broadcast %63 : f32 to vector<8x8xf32>
    %65 = arith.mulf %62, %64 : vector<8x8xf32>
    %66 = arith.addf %38, %65 : vector<8x8xf32>
    %c0_39 = arith.constant 0 : index
    %c2_40 = arith.constant 2 : index
    %67 = memref.load %arg4[%c0_39, %c2_40] : memref<5x16xf32, #tpu.memory_space<smem>>
    %68 = vector.broadcast %67 : f32 to vector<8x8xf32>
    %69 = arith.mulf %3, %68 : vector<8x8xf32>
    %c2_41 = arith.constant 2 : index
    %70 = memref.load %arg5[%c2_41] : memref<16xf32, #tpu.memory_space<smem>>
    %71 = vector.broadcast %70 : f32 to vector<8x8xf32>
    %72 = arith.addf %69, %71 : vector<8x8xf32>
    %c1_42 = arith.constant 1 : index
    %c2_43 = arith.constant 2 : index
    %73 = memref.load %arg4[%c1_42, %c2_43] : memref<5x16xf32, #tpu.memory_space<smem>>
    %74 = vector.broadcast %73 : f32 to vector<8x8xf32>
    %75 = arith.mulf %5, %74 : vector<8x8xf32>
    %76 = arith.addf %72, %75 : vector<8x8xf32>
    %c2_44 = arith.constant 2 : index
    %c2_45 = arith.constant 2 : index
    %77 = memref.load %arg4[%c2_44, %c2_45] : memref<5x16xf32, #tpu.memory_space<smem>>
    %78 = vector.broadcast %77 : f32 to vector<8x8xf32>
    %79 = arith.mulf %7, %78 : vector<8x8xf32>
    %80 = arith.addf %76, %79 : vector<8x8xf32>
    %c3_46 = arith.constant 3 : index
    %c2_47 = arith.constant 2 : index
    %81 = memref.load %arg4[%c3_46, %c2_47] : memref<5x16xf32, #tpu.memory_space<smem>>
    %82 = vector.broadcast %81 : f32 to vector<8x8xf32>
    %83 = arith.mulf %9, %82 : vector<8x8xf32>
    %84 = arith.addf %80, %83 : vector<8x8xf32>
    %c4_48 = arith.constant 4 : index
    %c2_49 = arith.constant 2 : index
    %85 = memref.load %arg4[%c4_48, %c2_49] : memref<5x16xf32, #tpu.memory_space<smem>>
    %86 = vector.broadcast %85 : f32 to vector<8x8xf32>
    %87 = arith.mulf %11, %86 : vector<8x8xf32>
    %88 = arith.addf %84, %87 : vector<8x8xf32>
    %cst_50 = arith.constant 0.000000e+00 : f32
    %89 = vector.broadcast %cst_50 : f32 to vector<8x8xf32>
    %90 = arith.maximumf %88, %89 : vector<8x8xf32>
    %c2_51 = arith.constant 2 : index
    %91 = memref.load %arg6[%c2_51] : memref<16xf32, #tpu.memory_space<smem>>
    %92 = vector.broadcast %91 : f32 to vector<8x8xf32>
    %93 = arith.mulf %90, %92 : vector<8x8xf32>
    %94 = arith.addf %66, %93 : vector<8x8xf32>
    %c0_52 = arith.constant 0 : index
    %c3_53 = arith.constant 3 : index
    %95 = memref.load %arg4[%c0_52, %c3_53] : memref<5x16xf32, #tpu.memory_space<smem>>
    %96 = vector.broadcast %95 : f32 to vector<8x8xf32>
    %97 = arith.mulf %3, %96 : vector<8x8xf32>
    %c3_54 = arith.constant 3 : index
    %98 = memref.load %arg5[%c3_54] : memref<16xf32, #tpu.memory_space<smem>>
    %99 = vector.broadcast %98 : f32 to vector<8x8xf32>
    %100 = arith.addf %97, %99 : vector<8x8xf32>
    %c1_55 = arith.constant 1 : index
    %c3_56 = arith.constant 3 : index
    %101 = memref.load %arg4[%c1_55, %c3_56] : memref<5x16xf32, #tpu.memory_space<smem>>
    %102 = vector.broadcast %101 : f32 to vector<8x8xf32>
    %103 = arith.mulf %5, %102 : vector<8x8xf32>
    %104 = arith.addf %100, %103 : vector<8x8xf32>
    %c2_57 = arith.constant 2 : index
    %c3_58 = arith.constant 3 : index
    %105 = memref.load %arg4[%c2_57, %c3_58] : memref<5x16xf32, #tpu.memory_space<smem>>
    %106 = vector.broadcast %105 : f32 to vector<8x8xf32>
    %107 = arith.mulf %7, %106 : vector<8x8xf32>
    %108 = arith.addf %104, %107 : vector<8x8xf32>
    %c3_59 = arith.constant 3 : index
    %c3_60 = arith.constant 3 : index
    %109 = memref.load %arg4[%c3_59, %c3_60] : memref<5x16xf32, #tpu.memory_space<smem>>
    %110 = vector.broadcast %109 : f32 to vector<8x8xf32>
    %111 = arith.mulf %9, %110 : vector<8x8xf32>
    %112 = arith.addf %108, %111 : vector<8x8xf32>
    %c4_61 = arith.constant 4 : index
    %c3_62 = arith.constant 3 : index
    %113 = memref.load %arg4[%c4_61, %c3_62] : memref<5x16xf32, #tpu.memory_space<smem>>
    %114 = vector.broadcast %113 : f32 to vector<8x8xf32>
    %115 = arith.mulf %11, %114 : vector<8x8xf32>
    %116 = arith.addf %112, %115 : vector<8x8xf32>
    %cst_63 = arith.constant 0.000000e+00 : f32
    %117 = vector.broadcast %cst_63 : f32 to vector<8x8xf32>
    %118 = arith.maximumf %116, %117 : vector<8x8xf32>
    %c3_64 = arith.constant 3 : index
    %119 = memref.load %arg6[%c3_64] : memref<16xf32, #tpu.memory_space<smem>>
    %120 = vector.broadcast %119 : f32 to vector<8x8xf32>
    %121 = arith.mulf %118, %120 : vector<8x8xf32>
    %122 = arith.addf %94, %121 : vector<8x8xf32>
    %c0_65 = arith.constant 0 : index
    %c4_66 = arith.constant 4 : index
    %123 = memref.load %arg4[%c0_65, %c4_66] : memref<5x16xf32, #tpu.memory_space<smem>>
    %124 = vector.broadcast %123 : f32 to vector<8x8xf32>
    %125 = arith.mulf %3, %124 : vector<8x8xf32>
    %c4_67 = arith.constant 4 : index
    %126 = memref.load %arg5[%c4_67] : memref<16xf32, #tpu.memory_space<smem>>
    %127 = vector.broadcast %126 : f32 to vector<8x8xf32>
    %128 = arith.addf %125, %127 : vector<8x8xf32>
    %c1_68 = arith.constant 1 : index
    %c4_69 = arith.constant 4 : index
    %129 = memref.load %arg4[%c1_68, %c4_69] : memref<5x16xf32, #tpu.memory_space<smem>>
    %130 = vector.broadcast %129 : f32 to vector<8x8xf32>
    %131 = arith.mulf %5, %130 : vector<8x8xf32>
    %132 = arith.addf %128, %131 : vector<8x8xf32>
    %c2_70 = arith.constant 2 : index
    %c4_71 = arith.constant 4 : index
    %133 = memref.load %arg4[%c2_70, %c4_71] : memref<5x16xf32, #tpu.memory_space<smem>>
    %134 = vector.broadcast %133 : f32 to vector<8x8xf32>
    %135 = arith.mulf %7, %134 : vector<8x8xf32>
    %136 = arith.addf %132, %135 : vector<8x8xf32>
    %c3_72 = arith.constant 3 : index
    %c4_73 = arith.constant 4 : index
    %137 = memref.load %arg4[%c3_72, %c4_73] : memref<5x16xf32, #tpu.memory_space<smem>>
    %138 = vector.broadcast %137 : f32 to vector<8x8xf32>
    %139 = arith.mulf %9, %138 : vector<8x8xf32>
    %140 = arith.addf %136, %139 : vector<8x8xf32>
    %c4_74 = arith.constant 4 : index
    %c4_75 = arith.constant 4 : index
    %141 = memref.load %arg4[%c4_74, %c4_75] : memref<5x16xf32, #tpu.memory_space<smem>>
    %142 = vector.broadcast %141 : f32 to vector<8x8xf32>
    %143 = arith.mulf %11, %142 : vector<8x8xf32>
    %144 = arith.addf %140, %143 : vector<8x8xf32>
    %cst_76 = arith.constant 0.000000e+00 : f32
    %145 = vector.broadcast %cst_76 : f32 to vector<8x8xf32>
    %146 = arith.maximumf %144, %145 : vector<8x8xf32>
    %c4_77 = arith.constant 4 : index
    %147 = memref.load %arg6[%c4_77] : memref<16xf32, #tpu.memory_space<smem>>
    %148 = vector.broadcast %147 : f32 to vector<8x8xf32>
    %149 = arith.mulf %146, %148 : vector<8x8xf32>
    %150 = arith.addf %122, %149 : vector<8x8xf32>
    %c0_78 = arith.constant 0 : index
    %c5 = arith.constant 5 : index
    %151 = memref.load %arg4[%c0_78, %c5] : memref<5x16xf32, #tpu.memory_space<smem>>
    %152 = vector.broadcast %151 : f32 to vector<8x8xf32>
    %153 = arith.mulf %3, %152 : vector<8x8xf32>
    %c5_79 = arith.constant 5 : index
    %154 = memref.load %arg5[%c5_79] : memref<16xf32, #tpu.memory_space<smem>>
    %155 = vector.broadcast %154 : f32 to vector<8x8xf32>
    %156 = arith.addf %153, %155 : vector<8x8xf32>
    %c1_80 = arith.constant 1 : index
    %c5_81 = arith.constant 5 : index
    %157 = memref.load %arg4[%c1_80, %c5_81] : memref<5x16xf32, #tpu.memory_space<smem>>
    %158 = vector.broadcast %157 : f32 to vector<8x8xf32>
    %159 = arith.mulf %5, %158 : vector<8x8xf32>
    %160 = arith.addf %156, %159 : vector<8x8xf32>
    %c2_82 = arith.constant 2 : index
    %c5_83 = arith.constant 5 : index
    %161 = memref.load %arg4[%c2_82, %c5_83] : memref<5x16xf32, #tpu.memory_space<smem>>
    %162 = vector.broadcast %161 : f32 to vector<8x8xf32>
    %163 = arith.mulf %7, %162 : vector<8x8xf32>
    %164 = arith.addf %160, %163 : vector<8x8xf32>
    %c3_84 = arith.constant 3 : index
    %c5_85 = arith.constant 5 : index
    %165 = memref.load %arg4[%c3_84, %c5_85] : memref<5x16xf32, #tpu.memory_space<smem>>
    %166 = vector.broadcast %165 : f32 to vector<8x8xf32>
    %167 = arith.mulf %9, %166 : vector<8x8xf32>
    %168 = arith.addf %164, %167 : vector<8x8xf32>
    %c4_86 = arith.constant 4 : index
    %c5_87 = arith.constant 5 : index
    %169 = memref.load %arg4[%c4_86, %c5_87] : memref<5x16xf32, #tpu.memory_space<smem>>
    %170 = vector.broadcast %169 : f32 to vector<8x8xf32>
    %171 = arith.mulf %11, %170 : vector<8x8xf32>
    %172 = arith.addf %168, %171 : vector<8x8xf32>
    %cst_88 = arith.constant 0.000000e+00 : f32
    %173 = vector.broadcast %cst_88 : f32 to vector<8x8xf32>
    %174 = arith.maximumf %172, %173 : vector<8x8xf32>
    %c5_89 = arith.constant 5 : index
    %175 = memref.load %arg6[%c5_89] : memref<16xf32, #tpu.memory_space<smem>>
    %176 = vector.broadcast %175 : f32 to vector<8x8xf32>
    %177 = arith.mulf %174, %176 : vector<8x8xf32>
    %178 = arith.addf %150, %177 : vector<8x8xf32>
    %c0_90 = arith.constant 0 : index
    %c6 = arith.constant 6 : index
    %179 = memref.load %arg4[%c0_90, %c6] : memref<5x16xf32, #tpu.memory_space<smem>>
    %180 = vector.broadcast %179 : f32 to vector<8x8xf32>
    %181 = arith.mulf %3, %180 : vector<8x8xf32>
    %c6_91 = arith.constant 6 : index
    %182 = memref.load %arg5[%c6_91] : memref<16xf32, #tpu.memory_space<smem>>
    %183 = vector.broadcast %182 : f32 to vector<8x8xf32>
    %184 = arith.addf %181, %183 : vector<8x8xf32>
    %c1_92 = arith.constant 1 : index
    %c6_93 = arith.constant 6 : index
    %185 = memref.load %arg4[%c1_92, %c6_93] : memref<5x16xf32, #tpu.memory_space<smem>>
    %186 = vector.broadcast %185 : f32 to vector<8x8xf32>
    %187 = arith.mulf %5, %186 : vector<8x8xf32>
    %188 = arith.addf %184, %187 : vector<8x8xf32>
    %c2_94 = arith.constant 2 : index
    %c6_95 = arith.constant 6 : index
    %189 = memref.load %arg4[%c2_94, %c6_95] : memref<5x16xf32, #tpu.memory_space<smem>>
    %190 = vector.broadcast %189 : f32 to vector<8x8xf32>
    %191 = arith.mulf %7, %190 : vector<8x8xf32>
    %192 = arith.addf %188, %191 : vector<8x8xf32>
    %c3_96 = arith.constant 3 : index
    %c6_97 = arith.constant 6 : index
    %193 = memref.load %arg4[%c3_96, %c6_97] : memref<5x16xf32, #tpu.memory_space<smem>>
    %194 = vector.broadcast %193 : f32 to vector<8x8xf32>
    %195 = arith.mulf %9, %194 : vector<8x8xf32>
    %196 = arith.addf %192, %195 : vector<8x8xf32>
    %c4_98 = arith.constant 4 : index
    %c6_99 = arith.constant 6 : index
    %197 = memref.load %arg4[%c4_98, %c6_99] : memref<5x16xf32, #tpu.memory_space<smem>>
    %198 = vector.broadcast %197 : f32 to vector<8x8xf32>
    %199 = arith.mulf %11, %198 : vector<8x8xf32>
    %200 = arith.addf %196, %199 : vector<8x8xf32>
    %cst_100 = arith.constant 0.000000e+00 : f32
    %201 = vector.broadcast %cst_100 : f32 to vector<8x8xf32>
    %202 = arith.maximumf %200, %201 : vector<8x8xf32>
    %c6_101 = arith.constant 6 : index
    %203 = memref.load %arg6[%c6_101] : memref<16xf32, #tpu.memory_space<smem>>
    %204 = vector.broadcast %203 : f32 to vector<8x8xf32>
    %205 = arith.mulf %202, %204 : vector<8x8xf32>
    %206 = arith.addf %178, %205 : vector<8x8xf32>
    %c0_102 = arith.constant 0 : index
    %c7 = arith.constant 7 : index
    %207 = memref.load %arg4[%c0_102, %c7] : memref<5x16xf32, #tpu.memory_space<smem>>
    %208 = vector.broadcast %207 : f32 to vector<8x8xf32>
    %209 = arith.mulf %3, %208 : vector<8x8xf32>
    %c7_103 = arith.constant 7 : index
    %210 = memref.load %arg5[%c7_103] : memref<16xf32, #tpu.memory_space<smem>>
    %211 = vector.broadcast %210 : f32 to vector<8x8xf32>
    %212 = arith.addf %209, %211 : vector<8x8xf32>
    %c1_104 = arith.constant 1 : index
    %c7_105 = arith.constant 7 : index
    %213 = memref.load %arg4[%c1_104, %c7_105] : memref<5x16xf32, #tpu.memory_space<smem>>
    %214 = vector.broadcast %213 : f32 to vector<8x8xf32>
    %215 = arith.mulf %5, %214 : vector<8x8xf32>
    %216 = arith.addf %212, %215 : vector<8x8xf32>
    %c2_106 = arith.constant 2 : index
    %c7_107 = arith.constant 7 : index
    %217 = memref.load %arg4[%c2_106, %c7_107] : memref<5x16xf32, #tpu.memory_space<smem>>
    %218 = vector.broadcast %217 : f32 to vector<8x8xf32>
    %219 = arith.mulf %7, %218 : vector<8x8xf32>
    %220 = arith.addf %216, %219 : vector<8x8xf32>
    %c3_108 = arith.constant 3 : index
    %c7_109 = arith.constant 7 : index
    %221 = memref.load %arg4[%c3_108, %c7_109] : memref<5x16xf32, #tpu.memory_space<smem>>
    %222 = vector.broadcast %221 : f32 to vector<8x8xf32>
    %223 = arith.mulf %9, %222 : vector<8x8xf32>
    %224 = arith.addf %220, %223 : vector<8x8xf32>
    %c4_110 = arith.constant 4 : index
    %c7_111 = arith.constant 7 : index
    %225 = memref.load %arg4[%c4_110, %c7_111] : memref<5x16xf32, #tpu.memory_space<smem>>
    %226 = vector.broadcast %225 : f32 to vector<8x8xf32>
    %227 = arith.mulf %11, %226 : vector<8x8xf32>
    %228 = arith.addf %224, %227 : vector<8x8xf32>
    %cst_112 = arith.constant 0.000000e+00 : f32
    %229 = vector.broadcast %cst_112 : f32 to vector<8x8xf32>
    %230 = arith.maximumf %228, %229 : vector<8x8xf32>
    %c7_113 = arith.constant 7 : index
    %231 = memref.load %arg6[%c7_113] : memref<16xf32, #tpu.memory_space<smem>>
    %232 = vector.broadcast %231 : f32 to vector<8x8xf32>
    %233 = arith.mulf %230, %232 : vector<8x8xf32>
    %234 = arith.addf %206, %233 : vector<8x8xf32>
    %c0_114 = arith.constant 0 : index
    %c8 = arith.constant 8 : index
    %235 = memref.load %arg4[%c0_114, %c8] : memref<5x16xf32, #tpu.memory_space<smem>>
    %236 = vector.broadcast %235 : f32 to vector<8x8xf32>
    %237 = arith.mulf %3, %236 : vector<8x8xf32>
    %c8_115 = arith.constant 8 : index
    %238 = memref.load %arg5[%c8_115] : memref<16xf32, #tpu.memory_space<smem>>
    %239 = vector.broadcast %238 : f32 to vector<8x8xf32>
    %240 = arith.addf %237, %239 : vector<8x8xf32>
    %c1_116 = arith.constant 1 : index
    %c8_117 = arith.constant 8 : index
    %241 = memref.load %arg4[%c1_116, %c8_117] : memref<5x16xf32, #tpu.memory_space<smem>>
    %242 = vector.broadcast %241 : f32 to vector<8x8xf32>
    %243 = arith.mulf %5, %242 : vector<8x8xf32>
    %244 = arith.addf %240, %243 : vector<8x8xf32>
    %c2_118 = arith.constant 2 : index
    %c8_119 = arith.constant 8 : index
    %245 = memref.load %arg4[%c2_118, %c8_119] : memref<5x16xf32, #tpu.memory_space<smem>>
    %246 = vector.broadcast %245 : f32 to vector<8x8xf32>
    %247 = arith.mulf %7, %246 : vector<8x8xf32>
    %248 = arith.addf %244, %247 : vector<8x8xf32>
    %c3_120 = arith.constant 3 : index
    %c8_121 = arith.constant 8 : index
    %249 = memref.load %arg4[%c3_120, %c8_121] : memref<5x16xf32, #tpu.memory_space<smem>>
    %250 = vector.broadcast %249 : f32 to vector<8x8xf32>
    %251 = arith.mulf %9, %250 : vector<8x8xf32>
    %252 = arith.addf %248, %251 : vector<8x8xf32>
    %c4_122 = arith.constant 4 : index
    %c8_123 = arith.constant 8 : index
    %253 = memref.load %arg4[%c4_122, %c8_123] : memref<5x16xf32, #tpu.memory_space<smem>>
    %254 = vector.broadcast %253 : f32 to vector<8x8xf32>
    %255 = arith.mulf %11, %254 : vector<8x8xf32>
    %256 = arith.addf %252, %255 : vector<8x8xf32>
    %cst_124 = arith.constant 0.000000e+00 : f32
    %257 = vector.broadcast %cst_124 : f32 to vector<8x8xf32>
    %258 = arith.maximumf %256, %257 : vector<8x8xf32>
    %c8_125 = arith.constant 8 : index
    %259 = memref.load %arg6[%c8_125] : memref<16xf32, #tpu.memory_space<smem>>
    %260 = vector.broadcast %259 : f32 to vector<8x8xf32>
    %261 = arith.mulf %258, %260 : vector<8x8xf32>
    %262 = arith.addf %234, %261 : vector<8x8xf32>
    %c0_126 = arith.constant 0 : index
    %c9 = arith.constant 9 : index
    %263 = memref.load %arg4[%c0_126, %c9] : memref<5x16xf32, #tpu.memory_space<smem>>
    %264 = vector.broadcast %263 : f32 to vector<8x8xf32>
    %265 = arith.mulf %3, %264 : vector<8x8xf32>
    %c9_127 = arith.constant 9 : index
    %266 = memref.load %arg5[%c9_127] : memref<16xf32, #tpu.memory_space<smem>>
    %267 = vector.broadcast %266 : f32 to vector<8x8xf32>
    %268 = arith.addf %265, %267 : vector<8x8xf32>
    %c1_128 = arith.constant 1 : index
    %c9_129 = arith.constant 9 : index
    %269 = memref.load %arg4[%c1_128, %c9_129] : memref<5x16xf32, #tpu.memory_space<smem>>
    %270 = vector.broadcast %269 : f32 to vector<8x8xf32>
    %271 = arith.mulf %5, %270 : vector<8x8xf32>
    %272 = arith.addf %268, %271 : vector<8x8xf32>
    %c2_130 = arith.constant 2 : index
    %c9_131 = arith.constant 9 : index
    %273 = memref.load %arg4[%c2_130, %c9_131] : memref<5x16xf32, #tpu.memory_space<smem>>
    %274 = vector.broadcast %273 : f32 to vector<8x8xf32>
    %275 = arith.mulf %7, %274 : vector<8x8xf32>
    %276 = arith.addf %272, %275 : vector<8x8xf32>
    %c3_132 = arith.constant 3 : index
    %c9_133 = arith.constant 9 : index
    %277 = memref.load %arg4[%c3_132, %c9_133] : memref<5x16xf32, #tpu.memory_space<smem>>
    %278 = vector.broadcast %277 : f32 to vector<8x8xf32>
    %279 = arith.mulf %9, %278 : vector<8x8xf32>
    %280 = arith.addf %276, %279 : vector<8x8xf32>
    %c4_134 = arith.constant 4 : index
    %c9_135 = arith.constant 9 : index
    %281 = memref.load %arg4[%c4_134, %c9_135] : memref<5x16xf32, #tpu.memory_space<smem>>
    %282 = vector.broadcast %281 : f32 to vector<8x8xf32>
    %283 = arith.mulf %11, %282 : vector<8x8xf32>
    %284 = arith.addf %280, %283 : vector<8x8xf32>
    %cst_136 = arith.constant 0.000000e+00 : f32
    %285 = vector.broadcast %cst_136 : f32 to vector<8x8xf32>
    %286 = arith.maximumf %284, %285 : vector<8x8xf32>
    %c9_137 = arith.constant 9 : index
    %287 = memref.load %arg6[%c9_137] : memref<16xf32, #tpu.memory_space<smem>>
    %288 = vector.broadcast %287 : f32 to vector<8x8xf32>
    %289 = arith.mulf %286, %288 : vector<8x8xf32>
    %290 = arith.addf %262, %289 : vector<8x8xf32>
    %c0_138 = arith.constant 0 : index
    %c10 = arith.constant 10 : index
    %291 = memref.load %arg4[%c0_138, %c10] : memref<5x16xf32, #tpu.memory_space<smem>>
    %292 = vector.broadcast %291 : f32 to vector<8x8xf32>
    %293 = arith.mulf %3, %292 : vector<8x8xf32>
    %c10_139 = arith.constant 10 : index
    %294 = memref.load %arg5[%c10_139] : memref<16xf32, #tpu.memory_space<smem>>
    %295 = vector.broadcast %294 : f32 to vector<8x8xf32>
    %296 = arith.addf %293, %295 : vector<8x8xf32>
    %c1_140 = arith.constant 1 : index
    %c10_141 = arith.constant 10 : index
    %297 = memref.load %arg4[%c1_140, %c10_141] : memref<5x16xf32, #tpu.memory_space<smem>>
    %298 = vector.broadcast %297 : f32 to vector<8x8xf32>
    %299 = arith.mulf %5, %298 : vector<8x8xf32>
    %300 = arith.addf %296, %299 : vector<8x8xf32>
    %c2_142 = arith.constant 2 : index
    %c10_143 = arith.constant 10 : index
    %301 = memref.load %arg4[%c2_142, %c10_143] : memref<5x16xf32, #tpu.memory_space<smem>>
    %302 = vector.broadcast %301 : f32 to vector<8x8xf32>
    %303 = arith.mulf %7, %302 : vector<8x8xf32>
    %304 = arith.addf %300, %303 : vector<8x8xf32>
    %c3_144 = arith.constant 3 : index
    %c10_145 = arith.constant 10 : index
    %305 = memref.load %arg4[%c3_144, %c10_145] : memref<5x16xf32, #tpu.memory_space<smem>>
    %306 = vector.broadcast %305 : f32 to vector<8x8xf32>
    %307 = arith.mulf %9, %306 : vector<8x8xf32>
    %308 = arith.addf %304, %307 : vector<8x8xf32>
    %c4_146 = arith.constant 4 : index
    %c10_147 = arith.constant 10 : index
    %309 = memref.load %arg4[%c4_146, %c10_147] : memref<5x16xf32, #tpu.memory_space<smem>>
    %310 = vector.broadcast %309 : f32 to vector<8x8xf32>
    %311 = arith.mulf %11, %310 : vector<8x8xf32>
    %312 = arith.addf %308, %311 : vector<8x8xf32>
    %cst_148 = arith.constant 0.000000e+00 : f32
    %313 = vector.broadcast %cst_148 : f32 to vector<8x8xf32>
    %314 = arith.maximumf %312, %313 : vector<8x8xf32>
    %c10_149 = arith.constant 10 : index
    %315 = memref.load %arg6[%c10_149] : memref<16xf32, #tpu.memory_space<smem>>
    %316 = vector.broadcast %315 : f32 to vector<8x8xf32>
    %317 = arith.mulf %314, %316 : vector<8x8xf32>
    %318 = arith.addf %290, %317 : vector<8x8xf32>
    %c0_150 = arith.constant 0 : index
    %c11 = arith.constant 11 : index
    %319 = memref.load %arg4[%c0_150, %c11] : memref<5x16xf32, #tpu.memory_space<smem>>
    %320 = vector.broadcast %319 : f32 to vector<8x8xf32>
    %321 = arith.mulf %3, %320 : vector<8x8xf32>
    %c11_151 = arith.constant 11 : index
    %322 = memref.load %arg5[%c11_151] : memref<16xf32, #tpu.memory_space<smem>>
    %323 = vector.broadcast %322 : f32 to vector<8x8xf32>
    %324 = arith.addf %321, %323 : vector<8x8xf32>
    %c1_152 = arith.constant 1 : index
    %c11_153 = arith.constant 11 : index
    %325 = memref.load %arg4[%c1_152, %c11_153] : memref<5x16xf32, #tpu.memory_space<smem>>
    %326 = vector.broadcast %325 : f32 to vector<8x8xf32>
    %327 = arith.mulf %5, %326 : vector<8x8xf32>
    %328 = arith.addf %324, %327 : vector<8x8xf32>
    %c2_154 = arith.constant 2 : index
    %c11_155 = arith.constant 11 : index
    %329 = memref.load %arg4[%c2_154, %c11_155] : memref<5x16xf32, #tpu.memory_space<smem>>
    %330 = vector.broadcast %329 : f32 to vector<8x8xf32>
    %331 = arith.mulf %7, %330 : vector<8x8xf32>
    %332 = arith.addf %328, %331 : vector<8x8xf32>
    %c3_156 = arith.constant 3 : index
    %c11_157 = arith.constant 11 : index
    %333 = memref.load %arg4[%c3_156, %c11_157] : memref<5x16xf32, #tpu.memory_space<smem>>
    %334 = vector.broadcast %333 : f32 to vector<8x8xf32>
    %335 = arith.mulf %9, %334 : vector<8x8xf32>
    %336 = arith.addf %332, %335 : vector<8x8xf32>
    %c4_158 = arith.constant 4 : index
    %c11_159 = arith.constant 11 : index
    %337 = memref.load %arg4[%c4_158, %c11_159] : memref<5x16xf32, #tpu.memory_space<smem>>
    %338 = vector.broadcast %337 : f32 to vector<8x8xf32>
    %339 = arith.mulf %11, %338 : vector<8x8xf32>
    %340 = arith.addf %336, %339 : vector<8x8xf32>
    %cst_160 = arith.constant 0.000000e+00 : f32
    %341 = vector.broadcast %cst_160 : f32 to vector<8x8xf32>
    %342 = arith.maximumf %340, %341 : vector<8x8xf32>
    %c11_161 = arith.constant 11 : index
    %343 = memref.load %arg6[%c11_161] : memref<16xf32, #tpu.memory_space<smem>>
    %344 = vector.broadcast %343 : f32 to vector<8x8xf32>
    %345 = arith.mulf %342, %344 : vector<8x8xf32>
    %346 = arith.addf %318, %345 : vector<8x8xf32>
    %c0_162 = arith.constant 0 : index
    %c12 = arith.constant 12 : index
    %347 = memref.load %arg4[%c0_162, %c12] : memref<5x16xf32, #tpu.memory_space<smem>>
    %348 = vector.broadcast %347 : f32 to vector<8x8xf32>
    %349 = arith.mulf %3, %348 : vector<8x8xf32>
    %c12_163 = arith.constant 12 : index
    %350 = memref.load %arg5[%c12_163] : memref<16xf32, #tpu.memory_space<smem>>
    %351 = vector.broadcast %350 : f32 to vector<8x8xf32>
    %352 = arith.addf %349, %351 : vector<8x8xf32>
    %c1_164 = arith.constant 1 : index
    %c12_165 = arith.constant 12 : index
    %353 = memref.load %arg4[%c1_164, %c12_165] : memref<5x16xf32, #tpu.memory_space<smem>>
    %354 = vector.broadcast %353 : f32 to vector<8x8xf32>
    %355 = arith.mulf %5, %354 : vector<8x8xf32>
    %356 = arith.addf %352, %355 : vector<8x8xf32>
    %c2_166 = arith.constant 2 : index
    %c12_167 = arith.constant 12 : index
    %357 = memref.load %arg4[%c2_166, %c12_167] : memref<5x16xf32, #tpu.memory_space<smem>>
    %358 = vector.broadcast %357 : f32 to vector<8x8xf32>
    %359 = arith.mulf %7, %358 : vector<8x8xf32>
    %360 = arith.addf %356, %359 : vector<8x8xf32>
    %c3_168 = arith.constant 3 : index
    %c12_169 = arith.constant 12 : index
    %361 = memref.load %arg4[%c3_168, %c12_169] : memref<5x16xf32, #tpu.memory_space<smem>>
    %362 = vector.broadcast %361 : f32 to vector<8x8xf32>
    %363 = arith.mulf %9, %362 : vector<8x8xf32>
    %364 = arith.addf %360, %363 : vector<8x8xf32>
    %c4_170 = arith.constant 4 : index
    %c12_171 = arith.constant 12 : index
    %365 = memref.load %arg4[%c4_170, %c12_171] : memref<5x16xf32, #tpu.memory_space<smem>>
    %366 = vector.broadcast %365 : f32 to vector<8x8xf32>
    %367 = arith.mulf %11, %366 : vector<8x8xf32>
    %368 = arith.addf %364, %367 : vector<8x8xf32>
    %cst_172 = arith.constant 0.000000e+00 : f32
    %369 = vector.broadcast %cst_172 : f32 to vector<8x8xf32>
    %370 = arith.maximumf %368, %369 : vector<8x8xf32>
    %c12_173 = arith.constant 12 : index
    %371 = memref.load %arg6[%c12_173] : memref<16xf32, #tpu.memory_space<smem>>
    %372 = vector.broadcast %371 : f32 to vector<8x8xf32>
    %373 = arith.mulf %370, %372 : vector<8x8xf32>
    %374 = arith.addf %346, %373 : vector<8x8xf32>
    %c0_174 = arith.constant 0 : index
    %c13 = arith.constant 13 : index
    %375 = memref.load %arg4[%c0_174, %c13] : memref<5x16xf32, #tpu.memory_space<smem>>
    %376 = vector.broadcast %375 : f32 to vector<8x8xf32>
    %377 = arith.mulf %3, %376 : vector<8x8xf32>
    %c13_175 = arith.constant 13 : index
    %378 = memref.load %arg5[%c13_175] : memref<16xf32, #tpu.memory_space<smem>>
    %379 = vector.broadcast %378 : f32 to vector<8x8xf32>
    %380 = arith.addf %377, %379 : vector<8x8xf32>
    %c1_176 = arith.constant 1 : index
    %c13_177 = arith.constant 13 : index
    %381 = memref.load %arg4[%c1_176, %c13_177] : memref<5x16xf32, #tpu.memory_space<smem>>
    %382 = vector.broadcast %381 : f32 to vector<8x8xf32>
    %383 = arith.mulf %5, %382 : vector<8x8xf32>
    %384 = arith.addf %380, %383 : vector<8x8xf32>
    %c2_178 = arith.constant 2 : index
    %c13_179 = arith.constant 13 : index
    %385 = memref.load %arg4[%c2_178, %c13_179] : memref<5x16xf32, #tpu.memory_space<smem>>
    %386 = vector.broadcast %385 : f32 to vector<8x8xf32>
    %387 = arith.mulf %7, %386 : vector<8x8xf32>
    %388 = arith.addf %384, %387 : vector<8x8xf32>
    %c3_180 = arith.constant 3 : index
    %c13_181 = arith.constant 13 : index
    %389 = memref.load %arg4[%c3_180, %c13_181] : memref<5x16xf32, #tpu.memory_space<smem>>
    %390 = vector.broadcast %389 : f32 to vector<8x8xf32>
    %391 = arith.mulf %9, %390 : vector<8x8xf32>
    %392 = arith.addf %388, %391 : vector<8x8xf32>
    %c4_182 = arith.constant 4 : index
    %c13_183 = arith.constant 13 : index
    %393 = memref.load %arg4[%c4_182, %c13_183] : memref<5x16xf32, #tpu.memory_space<smem>>
    %394 = vector.broadcast %393 : f32 to vector<8x8xf32>
    %395 = arith.mulf %11, %394 : vector<8x8xf32>
    %396 = arith.addf %392, %395 : vector<8x8xf32>
    %cst_184 = arith.constant 0.000000e+00 : f32
    %397 = vector.broadcast %cst_184 : f32 to vector<8x8xf32>
    %398 = arith.maximumf %396, %397 : vector<8x8xf32>
    %c13_185 = arith.constant 13 : index
    %399 = memref.load %arg6[%c13_185] : memref<16xf32, #tpu.memory_space<smem>>
    %400 = vector.broadcast %399 : f32 to vector<8x8xf32>
    %401 = arith.mulf %398, %400 : vector<8x8xf32>
    %402 = arith.addf %374, %401 : vector<8x8xf32>
    %c0_186 = arith.constant 0 : index
    %c14 = arith.constant 14 : index
    %403 = memref.load %arg4[%c0_186, %c14] : memref<5x16xf32, #tpu.memory_space<smem>>
    %404 = vector.broadcast %403 : f32 to vector<8x8xf32>
    %405 = arith.mulf %3, %404 : vector<8x8xf32>
    %c14_187 = arith.constant 14 : index
    %406 = memref.load %arg5[%c14_187] : memref<16xf32, #tpu.memory_space<smem>>
    %407 = vector.broadcast %406 : f32 to vector<8x8xf32>
    %408 = arith.addf %405, %407 : vector<8x8xf32>
    %c1_188 = arith.constant 1 : index
    %c14_189 = arith.constant 14 : index
    %409 = memref.load %arg4[%c1_188, %c14_189] : memref<5x16xf32, #tpu.memory_space<smem>>
    %410 = vector.broadcast %409 : f32 to vector<8x8xf32>
    %411 = arith.mulf %5, %410 : vector<8x8xf32>
    %412 = arith.addf %408, %411 : vector<8x8xf32>
    %c2_190 = arith.constant 2 : index
    %c14_191 = arith.constant 14 : index
    %413 = memref.load %arg4[%c2_190, %c14_191] : memref<5x16xf32, #tpu.memory_space<smem>>
    %414 = vector.broadcast %413 : f32 to vector<8x8xf32>
    %415 = arith.mulf %7, %414 : vector<8x8xf32>
    %416 = arith.addf %412, %415 : vector<8x8xf32>
    %c3_192 = arith.constant 3 : index
    %c14_193 = arith.constant 14 : index
    %417 = memref.load %arg4[%c3_192, %c14_193] : memref<5x16xf32, #tpu.memory_space<smem>>
    %418 = vector.broadcast %417 : f32 to vector<8x8xf32>
    %419 = arith.mulf %9, %418 : vector<8x8xf32>
    %420 = arith.addf %416, %419 : vector<8x8xf32>
    %c4_194 = arith.constant 4 : index
    %c14_195 = arith.constant 14 : index
    %421 = memref.load %arg4[%c4_194, %c14_195] : memref<5x16xf32, #tpu.memory_space<smem>>
    %422 = vector.broadcast %421 : f32 to vector<8x8xf32>
    %423 = arith.mulf %11, %422 : vector<8x8xf32>
    %424 = arith.addf %420, %423 : vector<8x8xf32>
    %cst_196 = arith.constant 0.000000e+00 : f32
    %425 = vector.broadcast %cst_196 : f32 to vector<8x8xf32>
    %426 = arith.maximumf %424, %425 : vector<8x8xf32>
    %c14_197 = arith.constant 14 : index
    %427 = memref.load %arg6[%c14_197] : memref<16xf32, #tpu.memory_space<smem>>
    %428 = vector.broadcast %427 : f32 to vector<8x8xf32>
    %429 = arith.mulf %426, %428 : vector<8x8xf32>
    %430 = arith.addf %402, %429 : vector<8x8xf32>
    %c0_198 = arith.constant 0 : index
    %c15 = arith.constant 15 : index
    %431 = memref.load %arg4[%c0_198, %c15] : memref<5x16xf32, #tpu.memory_space<smem>>
    %432 = vector.broadcast %431 : f32 to vector<8x8xf32>
    %433 = arith.mulf %3, %432 : vector<8x8xf32>
    %c15_199 = arith.constant 15 : index
    %434 = memref.load %arg5[%c15_199] : memref<16xf32, #tpu.memory_space<smem>>
    %435 = vector.broadcast %434 : f32 to vector<8x8xf32>
    %436 = arith.addf %433, %435 : vector<8x8xf32>
    %c1_200 = arith.constant 1 : index
    %c15_201 = arith.constant 15 : index
    %437 = memref.load %arg4[%c1_200, %c15_201] : memref<5x16xf32, #tpu.memory_space<smem>>
    %438 = vector.broadcast %437 : f32 to vector<8x8xf32>
    %439 = arith.mulf %5, %438 : vector<8x8xf32>
    %440 = arith.addf %436, %439 : vector<8x8xf32>
    %c2_202 = arith.constant 2 : index
    %c15_203 = arith.constant 15 : index
    %441 = memref.load %arg4[%c2_202, %c15_203] : memref<5x16xf32, #tpu.memory_space<smem>>
    %442 = vector.broadcast %441 : f32 to vector<8x8xf32>
    %443 = arith.mulf %7, %442 : vector<8x8xf32>
    %444 = arith.addf %440, %443 : vector<8x8xf32>
    %c3_204 = arith.constant 3 : index
    %c15_205 = arith.constant 15 : index
    %445 = memref.load %arg4[%c3_204, %c15_205] : memref<5x16xf32, #tpu.memory_space<smem>>
    %446 = vector.broadcast %445 : f32 to vector<8x8xf32>
    %447 = arith.mulf %9, %446 : vector<8x8xf32>
    %448 = arith.addf %444, %447 : vector<8x8xf32>
    %c4_206 = arith.constant 4 : index
    %c15_207 = arith.constant 15 : index
    %449 = memref.load %arg4[%c4_206, %c15_207] : memref<5x16xf32, #tpu.memory_space<smem>>
    %450 = vector.broadcast %449 : f32 to vector<8x8xf32>
    %451 = arith.mulf %11, %450 : vector<8x8xf32>
    %452 = arith.addf %448, %451 : vector<8x8xf32>
    %cst_208 = arith.constant 0.000000e+00 : f32
    %453 = vector.broadcast %cst_208 : f32 to vector<8x8xf32>
    %454 = arith.maximumf %452, %453 : vector<8x8xf32>
    %c15_209 = arith.constant 15 : index
    %455 = memref.load %arg6[%c15_209] : memref<16xf32, #tpu.memory_space<smem>>
    %456 = vector.broadcast %455 : f32 to vector<8x8xf32>
    %457 = arith.mulf %454, %456 : vector<8x8xf32>
    %458 = arith.addf %430, %457 : vector<8x8xf32>
    %c0_210 = arith.constant 0 : index
    %459 = memref.load %arg7[%c0_210] : memref<1xf32, #tpu.memory_space<smem>>
    %460 = vector.broadcast %459 : f32 to vector<8x8xf32>
    %461 = arith.addf %458, %460 : vector<8x8xf32>
    %462 = arith.negf %461 : vector<8x8xf32>
    %463 = math.exp %462 : vector<8x8xf32>
    %cst_211 = arith.constant 1.000000e+00 : f32
    %464 = vector.broadcast %cst_211 : f32 to vector<8x8xf32>
    %465 = arith.addf %464, %463 : vector<8x8xf32>
    %466 = arith.divf %464, %465 : vector<8x8xf32>
    %467 = arith.mulf %466, %1 : vector<8x8xf32>
    %c0_212 = arith.constant 0 : index
    %c0_213 = arith.constant 0 : index
    %468 = memref.load %arg8[%c0_212, %c0_213] : memref<5x16xf32, #tpu.memory_space<smem>>
    %469 = vector.broadcast %468 : f32 to vector<8x8xf32>
    %470 = arith.mulf %3, %469 : vector<8x8xf32>
    %c0_214 = arith.constant 0 : index
    %471 = memref.load %arg9[%c0_214] : memref<16xf32, #tpu.memory_space<smem>>
    %472 = vector.broadcast %471 : f32 to vector<8x8xf32>
    %473 = arith.addf %470, %472 : vector<8x8xf32>
    %c1_215 = arith.constant 1 : index
    %c0_216 = arith.constant 0 : index
    %474 = memref.load %arg8[%c1_215, %c0_216] : memref<5x16xf32, #tpu.memory_space<smem>>
    %475 = vector.broadcast %474 : f32 to vector<8x8xf32>
    %476 = arith.mulf %5, %475 : vector<8x8xf32>
    %477 = arith.addf %473, %476 : vector<8x8xf32>
    %c2_217 = arith.constant 2 : index
    %c0_218 = arith.constant 0 : index
    %478 = memref.load %arg8[%c2_217, %c0_218] : memref<5x16xf32, #tpu.memory_space<smem>>
    %479 = vector.broadcast %478 : f32 to vector<8x8xf32>
    %480 = arith.mulf %7, %479 : vector<8x8xf32>
    %481 = arith.addf %477, %480 : vector<8x8xf32>
    %c3_219 = arith.constant 3 : index
    %c0_220 = arith.constant 0 : index
    %482 = memref.load %arg8[%c3_219, %c0_220] : memref<5x16xf32, #tpu.memory_space<smem>>
    %483 = vector.broadcast %482 : f32 to vector<8x8xf32>
    %484 = arith.mulf %9, %483 : vector<8x8xf32>
    %485 = arith.addf %481, %484 : vector<8x8xf32>
    %c4_221 = arith.constant 4 : index
    %c0_222 = arith.constant 0 : index
    %486 = memref.load %arg8[%c4_221, %c0_222] : memref<5x16xf32, #tpu.memory_space<smem>>
    %487 = vector.broadcast %486 : f32 to vector<8x8xf32>
    %488 = arith.mulf %11, %487 : vector<8x8xf32>
    %489 = arith.addf %485, %488 : vector<8x8xf32>
    %cst_223 = arith.constant 0.000000e+00 : f32
    %490 = vector.broadcast %cst_223 : f32 to vector<8x8xf32>
    %491 = arith.maximumf %489, %490 : vector<8x8xf32>
    %c0_224 = arith.constant 0 : index
    %492 = memref.load %arg10[%c0_224] : memref<16xf32, #tpu.memory_space<smem>>
    %493 = vector.broadcast %492 : f32 to vector<8x8xf32>
    %494 = arith.mulf %491, %493 : vector<8x8xf32>
    %c0_225 = arith.constant 0 : index
    %c1_226 = arith.constant 1 : index
    %495 = memref.load %arg8[%c0_225, %c1_226] : memref<5x16xf32, #tpu.memory_space<smem>>
    %496 = vector.broadcast %495 : f32 to vector<8x8xf32>
    %497 = arith.mulf %3, %496 : vector<8x8xf32>
    %c1_227 = arith.constant 1 : index
    %498 = memref.load %arg9[%c1_227] : memref<16xf32, #tpu.memory_space<smem>>
    %499 = vector.broadcast %498 : f32 to vector<8x8xf32>
    %500 = arith.addf %497, %499 : vector<8x8xf32>
    %c1_228 = arith.constant 1 : index
    %c1_229 = arith.constant 1 : index
    %501 = memref.load %arg8[%c1_228, %c1_229] : memref<5x16xf32, #tpu.memory_space<smem>>
    %502 = vector.broadcast %501 : f32 to vector<8x8xf32>
    %503 = arith.mulf %5, %502 : vector<8x8xf32>
    %504 = arith.addf %500, %503 : vector<8x8xf32>
    %c2_230 = arith.constant 2 : index
    %c1_231 = arith.constant 1 : index
    %505 = memref.load %arg8[%c2_230, %c1_231] : memref<5x16xf32, #tpu.memory_space<smem>>
    %506 = vector.broadcast %505 : f32 to vector<8x8xf32>
    %507 = arith.mulf %7, %506 : vector<8x8xf32>
    %508 = arith.addf %504, %507 : vector<8x8xf32>
    %c3_232 = arith.constant 3 : index
    %c1_233 = arith.constant 1 : index
    %509 = memref.load %arg8[%c3_232, %c1_233] : memref<5x16xf32, #tpu.memory_space<smem>>
    %510 = vector.broadcast %509 : f32 to vector<8x8xf32>
    %511 = arith.mulf %9, %510 : vector<8x8xf32>
    %512 = arith.addf %508, %511 : vector<8x8xf32>
    %c4_234 = arith.constant 4 : index
    %c1_235 = arith.constant 1 : index
    %513 = memref.load %arg8[%c4_234, %c1_235] : memref<5x16xf32, #tpu.memory_space<smem>>
    %514 = vector.broadcast %513 : f32 to vector<8x8xf32>
    %515 = arith.mulf %11, %514 : vector<8x8xf32>
    %516 = arith.addf %512, %515 : vector<8x8xf32>
    %cst_236 = arith.constant 0.000000e+00 : f32
    %517 = vector.broadcast %cst_236 : f32 to vector<8x8xf32>
    %518 = arith.maximumf %516, %517 : vector<8x8xf32>
    %c1_237 = arith.constant 1 : index
    %519 = memref.load %arg10[%c1_237] : memref<16xf32, #tpu.memory_space<smem>>
    %520 = vector.broadcast %519 : f32 to vector<8x8xf32>
    %521 = arith.mulf %518, %520 : vector<8x8xf32>
    %522 = arith.addf %494, %521 : vector<8x8xf32>
    %c0_238 = arith.constant 0 : index
    %c2_239 = arith.constant 2 : index
    %523 = memref.load %arg8[%c0_238, %c2_239] : memref<5x16xf32, #tpu.memory_space<smem>>
    %524 = vector.broadcast %523 : f32 to vector<8x8xf32>
    %525 = arith.mulf %3, %524 : vector<8x8xf32>
    %c2_240 = arith.constant 2 : index
    %526 = memref.load %arg9[%c2_240] : memref<16xf32, #tpu.memory_space<smem>>
    %527 = vector.broadcast %526 : f32 to vector<8x8xf32>
    %528 = arith.addf %525, %527 : vector<8x8xf32>
    %c1_241 = arith.constant 1 : index
    %c2_242 = arith.constant 2 : index
    %529 = memref.load %arg8[%c1_241, %c2_242] : memref<5x16xf32, #tpu.memory_space<smem>>
    %530 = vector.broadcast %529 : f32 to vector<8x8xf32>
    %531 = arith.mulf %5, %530 : vector<8x8xf32>
    %532 = arith.addf %528, %531 : vector<8x8xf32>
    %c2_243 = arith.constant 2 : index
    %c2_244 = arith.constant 2 : index
    %533 = memref.load %arg8[%c2_243, %c2_244] : memref<5x16xf32, #tpu.memory_space<smem>>
    %534 = vector.broadcast %533 : f32 to vector<8x8xf32>
    %535 = arith.mulf %7, %534 : vector<8x8xf32>
    %536 = arith.addf %532, %535 : vector<8x8xf32>
    %c3_245 = arith.constant 3 : index
    %c2_246 = arith.constant 2 : index
    %537 = memref.load %arg8[%c3_245, %c2_246] : memref<5x16xf32, #tpu.memory_space<smem>>
    %538 = vector.broadcast %537 : f32 to vector<8x8xf32>
    %539 = arith.mulf %9, %538 : vector<8x8xf32>
    %540 = arith.addf %536, %539 : vector<8x8xf32>
    %c4_247 = arith.constant 4 : index
    %c2_248 = arith.constant 2 : index
    %541 = memref.load %arg8[%c4_247, %c2_248] : memref<5x16xf32, #tpu.memory_space<smem>>
    %542 = vector.broadcast %541 : f32 to vector<8x8xf32>
    %543 = arith.mulf %11, %542 : vector<8x8xf32>
    %544 = arith.addf %540, %543 : vector<8x8xf32>
    %cst_249 = arith.constant 0.000000e+00 : f32
    %545 = vector.broadcast %cst_249 : f32 to vector<8x8xf32>
    %546 = arith.maximumf %544, %545 : vector<8x8xf32>
    %c2_250 = arith.constant 2 : index
    %547 = memref.load %arg10[%c2_250] : memref<16xf32, #tpu.memory_space<smem>>
    %548 = vector.broadcast %547 : f32 to vector<8x8xf32>
    %549 = arith.mulf %546, %548 : vector<8x8xf32>
    %550 = arith.addf %522, %549 : vector<8x8xf32>
    %c0_251 = arith.constant 0 : index
    %c3_252 = arith.constant 3 : index
    %551 = memref.load %arg8[%c0_251, %c3_252] : memref<5x16xf32, #tpu.memory_space<smem>>
    %552 = vector.broadcast %551 : f32 to vector<8x8xf32>
    %553 = arith.mulf %3, %552 : vector<8x8xf32>
    %c3_253 = arith.constant 3 : index
    %554 = memref.load %arg9[%c3_253] : memref<16xf32, #tpu.memory_space<smem>>
    %555 = vector.broadcast %554 : f32 to vector<8x8xf32>
    %556 = arith.addf %553, %555 : vector<8x8xf32>
    %c1_254 = arith.constant 1 : index
    %c3_255 = arith.constant 3 : index
    %557 = memref.load %arg8[%c1_254, %c3_255] : memref<5x16xf32, #tpu.memory_space<smem>>
    %558 = vector.broadcast %557 : f32 to vector<8x8xf32>
    %559 = arith.mulf %5, %558 : vector<8x8xf32>
    %560 = arith.addf %556, %559 : vector<8x8xf32>
    %c2_256 = arith.constant 2 : index
    %c3_257 = arith.constant 3 : index
    %561 = memref.load %arg8[%c2_256, %c3_257] : memref<5x16xf32, #tpu.memory_space<smem>>
    %562 = vector.broadcast %561 : f32 to vector<8x8xf32>
    %563 = arith.mulf %7, %562 : vector<8x8xf32>
    %564 = arith.addf %560, %563 : vector<8x8xf32>
    %c3_258 = arith.constant 3 : index
    %c3_259 = arith.constant 3 : index
    %565 = memref.load %arg8[%c3_258, %c3_259] : memref<5x16xf32, #tpu.memory_space<smem>>
    %566 = vector.broadcast %565 : f32 to vector<8x8xf32>
    %567 = arith.mulf %9, %566 : vector<8x8xf32>
    %568 = arith.addf %564, %567 : vector<8x8xf32>
    %c4_260 = arith.constant 4 : index
    %c3_261 = arith.constant 3 : index
    %569 = memref.load %arg8[%c4_260, %c3_261] : memref<5x16xf32, #tpu.memory_space<smem>>
    %570 = vector.broadcast %569 : f32 to vector<8x8xf32>
    %571 = arith.mulf %11, %570 : vector<8x8xf32>
    %572 = arith.addf %568, %571 : vector<8x8xf32>
    %cst_262 = arith.constant 0.000000e+00 : f32
    %573 = vector.broadcast %cst_262 : f32 to vector<8x8xf32>
    %574 = arith.maximumf %572, %573 : vector<8x8xf32>
    %c3_263 = arith.constant 3 : index
    %575 = memref.load %arg10[%c3_263] : memref<16xf32, #tpu.memory_space<smem>>
    %576 = vector.broadcast %575 : f32 to vector<8x8xf32>
    %577 = arith.mulf %574, %576 : vector<8x8xf32>
    %578 = arith.addf %550, %577 : vector<8x8xf32>
    %c0_264 = arith.constant 0 : index
    %c4_265 = arith.constant 4 : index
    %579 = memref.load %arg8[%c0_264, %c4_265] : memref<5x16xf32, #tpu.memory_space<smem>>
    %580 = vector.broadcast %579 : f32 to vector<8x8xf32>
    %581 = arith.mulf %3, %580 : vector<8x8xf32>
    %c4_266 = arith.constant 4 : index
    %582 = memref.load %arg9[%c4_266] : memref<16xf32, #tpu.memory_space<smem>>
    %583 = vector.broadcast %582 : f32 to vector<8x8xf32>
    %584 = arith.addf %581, %583 : vector<8x8xf32>
    %c1_267 = arith.constant 1 : index
    %c4_268 = arith.constant 4 : index
    %585 = memref.load %arg8[%c1_267, %c4_268] : memref<5x16xf32, #tpu.memory_space<smem>>
    %586 = vector.broadcast %585 : f32 to vector<8x8xf32>
    %587 = arith.mulf %5, %586 : vector<8x8xf32>
    %588 = arith.addf %584, %587 : vector<8x8xf32>
    %c2_269 = arith.constant 2 : index
    %c4_270 = arith.constant 4 : index
    %589 = memref.load %arg8[%c2_269, %c4_270] : memref<5x16xf32, #tpu.memory_space<smem>>
    %590 = vector.broadcast %589 : f32 to vector<8x8xf32>
    %591 = arith.mulf %7, %590 : vector<8x8xf32>
    %592 = arith.addf %588, %591 : vector<8x8xf32>
    %c3_271 = arith.constant 3 : index
    %c4_272 = arith.constant 4 : index
    %593 = memref.load %arg8[%c3_271, %c4_272] : memref<5x16xf32, #tpu.memory_space<smem>>
    %594 = vector.broadcast %593 : f32 to vector<8x8xf32>
    %595 = arith.mulf %9, %594 : vector<8x8xf32>
    %596 = arith.addf %592, %595 : vector<8x8xf32>
    %c4_273 = arith.constant 4 : index
    %c4_274 = arith.constant 4 : index
    %597 = memref.load %arg8[%c4_273, %c4_274] : memref<5x16xf32, #tpu.memory_space<smem>>
    %598 = vector.broadcast %597 : f32 to vector<8x8xf32>
    %599 = arith.mulf %11, %598 : vector<8x8xf32>
    %600 = arith.addf %596, %599 : vector<8x8xf32>
    %cst_275 = arith.constant 0.000000e+00 : f32
    %601 = vector.broadcast %cst_275 : f32 to vector<8x8xf32>
    %602 = arith.maximumf %600, %601 : vector<8x8xf32>
    %c4_276 = arith.constant 4 : index
    %603 = memref.load %arg10[%c4_276] : memref<16xf32, #tpu.memory_space<smem>>
    %604 = vector.broadcast %603 : f32 to vector<8x8xf32>
    %605 = arith.mulf %602, %604 : vector<8x8xf32>
    %606 = arith.addf %578, %605 : vector<8x8xf32>
    %c0_277 = arith.constant 0 : index
    %c5_278 = arith.constant 5 : index
    %607 = memref.load %arg8[%c0_277, %c5_278] : memref<5x16xf32, #tpu.memory_space<smem>>
    %608 = vector.broadcast %607 : f32 to vector<8x8xf32>
    %609 = arith.mulf %3, %608 : vector<8x8xf32>
    %c5_279 = arith.constant 5 : index
    %610 = memref.load %arg9[%c5_279] : memref<16xf32, #tpu.memory_space<smem>>
    %611 = vector.broadcast %610 : f32 to vector<8x8xf32>
    %612 = arith.addf %609, %611 : vector<8x8xf32>
    %c1_280 = arith.constant 1 : index
    %c5_281 = arith.constant 5 : index
    %613 = memref.load %arg8[%c1_280, %c5_281] : memref<5x16xf32, #tpu.memory_space<smem>>
    %614 = vector.broadcast %613 : f32 to vector<8x8xf32>
    %615 = arith.mulf %5, %614 : vector<8x8xf32>
    %616 = arith.addf %612, %615 : vector<8x8xf32>
    %c2_282 = arith.constant 2 : index
    %c5_283 = arith.constant 5 : index
    %617 = memref.load %arg8[%c2_282, %c5_283] : memref<5x16xf32, #tpu.memory_space<smem>>
    %618 = vector.broadcast %617 : f32 to vector<8x8xf32>
    %619 = arith.mulf %7, %618 : vector<8x8xf32>
    %620 = arith.addf %616, %619 : vector<8x8xf32>
    %c3_284 = arith.constant 3 : index
    %c5_285 = arith.constant 5 : index
    %621 = memref.load %arg8[%c3_284, %c5_285] : memref<5x16xf32, #tpu.memory_space<smem>>
    %622 = vector.broadcast %621 : f32 to vector<8x8xf32>
    %623 = arith.mulf %9, %622 : vector<8x8xf32>
    %624 = arith.addf %620, %623 : vector<8x8xf32>
    %c4_286 = arith.constant 4 : index
    %c5_287 = arith.constant 5 : index
    %625 = memref.load %arg8[%c4_286, %c5_287] : memref<5x16xf32, #tpu.memory_space<smem>>
    %626 = vector.broadcast %625 : f32 to vector<8x8xf32>
    %627 = arith.mulf %11, %626 : vector<8x8xf32>
    %628 = arith.addf %624, %627 : vector<8x8xf32>
    %cst_288 = arith.constant 0.000000e+00 : f32
    %629 = vector.broadcast %cst_288 : f32 to vector<8x8xf32>
    %630 = arith.maximumf %628, %629 : vector<8x8xf32>
    %c5_289 = arith.constant 5 : index
    %631 = memref.load %arg10[%c5_289] : memref<16xf32, #tpu.memory_space<smem>>
    %632 = vector.broadcast %631 : f32 to vector<8x8xf32>
    %633 = arith.mulf %630, %632 : vector<8x8xf32>
    %634 = arith.addf %606, %633 : vector<8x8xf32>
    %c0_290 = arith.constant 0 : index
    %c6_291 = arith.constant 6 : index
    %635 = memref.load %arg8[%c0_290, %c6_291] : memref<5x16xf32, #tpu.memory_space<smem>>
    %636 = vector.broadcast %635 : f32 to vector<8x8xf32>
    %637 = arith.mulf %3, %636 : vector<8x8xf32>
    %c6_292 = arith.constant 6 : index
    %638 = memref.load %arg9[%c6_292] : memref<16xf32, #tpu.memory_space<smem>>
    %639 = vector.broadcast %638 : f32 to vector<8x8xf32>
    %640 = arith.addf %637, %639 : vector<8x8xf32>
    %c1_293 = arith.constant 1 : index
    %c6_294 = arith.constant 6 : index
    %641 = memref.load %arg8[%c1_293, %c6_294] : memref<5x16xf32, #tpu.memory_space<smem>>
    %642 = vector.broadcast %641 : f32 to vector<8x8xf32>
    %643 = arith.mulf %5, %642 : vector<8x8xf32>
    %644 = arith.addf %640, %643 : vector<8x8xf32>
    %c2_295 = arith.constant 2 : index
    %c6_296 = arith.constant 6 : index
    %645 = memref.load %arg8[%c2_295, %c6_296] : memref<5x16xf32, #tpu.memory_space<smem>>
    %646 = vector.broadcast %645 : f32 to vector<8x8xf32>
    %647 = arith.mulf %7, %646 : vector<8x8xf32>
    %648 = arith.addf %644, %647 : vector<8x8xf32>
    %c3_297 = arith.constant 3 : index
    %c6_298 = arith.constant 6 : index
    %649 = memref.load %arg8[%c3_297, %c6_298] : memref<5x16xf32, #tpu.memory_space<smem>>
    %650 = vector.broadcast %649 : f32 to vector<8x8xf32>
    %651 = arith.mulf %9, %650 : vector<8x8xf32>
    %652 = arith.addf %648, %651 : vector<8x8xf32>
    %c4_299 = arith.constant 4 : index
    %c6_300 = arith.constant 6 : index
    %653 = memref.load %arg8[%c4_299, %c6_300] : memref<5x16xf32, #tpu.memory_space<smem>>
    %654 = vector.broadcast %653 : f32 to vector<8x8xf32>
    %655 = arith.mulf %11, %654 : vector<8x8xf32>
    %656 = arith.addf %652, %655 : vector<8x8xf32>
    %cst_301 = arith.constant 0.000000e+00 : f32
    %657 = vector.broadcast %cst_301 : f32 to vector<8x8xf32>
    %658 = arith.maximumf %656, %657 : vector<8x8xf32>
    %c6_302 = arith.constant 6 : index
    %659 = memref.load %arg10[%c6_302] : memref<16xf32, #tpu.memory_space<smem>>
    %660 = vector.broadcast %659 : f32 to vector<8x8xf32>
    %661 = arith.mulf %658, %660 : vector<8x8xf32>
    %662 = arith.addf %634, %661 : vector<8x8xf32>
    %c0_303 = arith.constant 0 : index
    %c7_304 = arith.constant 7 : index
    %663 = memref.load %arg8[%c0_303, %c7_304] : memref<5x16xf32, #tpu.memory_space<smem>>
    %664 = vector.broadcast %663 : f32 to vector<8x8xf32>
    %665 = arith.mulf %3, %664 : vector<8x8xf32>
    %c7_305 = arith.constant 7 : index
    %666 = memref.load %arg9[%c7_305] : memref<16xf32, #tpu.memory_space<smem>>
    %667 = vector.broadcast %666 : f32 to vector<8x8xf32>
    %668 = arith.addf %665, %667 : vector<8x8xf32>
    %c1_306 = arith.constant 1 : index
    %c7_307 = arith.constant 7 : index
    %669 = memref.load %arg8[%c1_306, %c7_307] : memref<5x16xf32, #tpu.memory_space<smem>>
    %670 = vector.broadcast %669 : f32 to vector<8x8xf32>
    %671 = arith.mulf %5, %670 : vector<8x8xf32>
    %672 = arith.addf %668, %671 : vector<8x8xf32>
    %c2_308 = arith.constant 2 : index
    %c7_309 = arith.constant 7 : index
    %673 = memref.load %arg8[%c2_308, %c7_309] : memref<5x16xf32, #tpu.memory_space<smem>>
    %674 = vector.broadcast %673 : f32 to vector<8x8xf32>
    %675 = arith.mulf %7, %674 : vector<8x8xf32>
    %676 = arith.addf %672, %675 : vector<8x8xf32>
    %c3_310 = arith.constant 3 : index
    %c7_311 = arith.constant 7 : index
    %677 = memref.load %arg8[%c3_310, %c7_311] : memref<5x16xf32, #tpu.memory_space<smem>>
    %678 = vector.broadcast %677 : f32 to vector<8x8xf32>
    %679 = arith.mulf %9, %678 : vector<8x8xf32>
    %680 = arith.addf %676, %679 : vector<8x8xf32>
    %c4_312 = arith.constant 4 : index
    %c7_313 = arith.constant 7 : index
    %681 = memref.load %arg8[%c4_312, %c7_313] : memref<5x16xf32, #tpu.memory_space<smem>>
    %682 = vector.broadcast %681 : f32 to vector<8x8xf32>
    %683 = arith.mulf %11, %682 : vector<8x8xf32>
    %684 = arith.addf %680, %683 : vector<8x8xf32>
    %cst_314 = arith.constant 0.000000e+00 : f32
    %685 = vector.broadcast %cst_314 : f32 to vector<8x8xf32>
    %686 = arith.maximumf %684, %685 : vector<8x8xf32>
    %c7_315 = arith.constant 7 : index
    %687 = memref.load %arg10[%c7_315] : memref<16xf32, #tpu.memory_space<smem>>
    %688 = vector.broadcast %687 : f32 to vector<8x8xf32>
    %689 = arith.mulf %686, %688 : vector<8x8xf32>
    %690 = arith.addf %662, %689 : vector<8x8xf32>
    %c0_316 = arith.constant 0 : index
    %c8_317 = arith.constant 8 : index
    %691 = memref.load %arg8[%c0_316, %c8_317] : memref<5x16xf32, #tpu.memory_space<smem>>
    %692 = vector.broadcast %691 : f32 to vector<8x8xf32>
    %693 = arith.mulf %3, %692 : vector<8x8xf32>
    %c8_318 = arith.constant 8 : index
    %694 = memref.load %arg9[%c8_318] : memref<16xf32, #tpu.memory_space<smem>>
    %695 = vector.broadcast %694 : f32 to vector<8x8xf32>
    %696 = arith.addf %693, %695 : vector<8x8xf32>
    %c1_319 = arith.constant 1 : index
    %c8_320 = arith.constant 8 : index
    %697 = memref.load %arg8[%c1_319, %c8_320] : memref<5x16xf32, #tpu.memory_space<smem>>
    %698 = vector.broadcast %697 : f32 to vector<8x8xf32>
    %699 = arith.mulf %5, %698 : vector<8x8xf32>
    %700 = arith.addf %696, %699 : vector<8x8xf32>
    %c2_321 = arith.constant 2 : index
    %c8_322 = arith.constant 8 : index
    %701 = memref.load %arg8[%c2_321, %c8_322] : memref<5x16xf32, #tpu.memory_space<smem>>
    %702 = vector.broadcast %701 : f32 to vector<8x8xf32>
    %703 = arith.mulf %7, %702 : vector<8x8xf32>
    %704 = arith.addf %700, %703 : vector<8x8xf32>
    %c3_323 = arith.constant 3 : index
    %c8_324 = arith.constant 8 : index
    %705 = memref.load %arg8[%c3_323, %c8_324] : memref<5x16xf32, #tpu.memory_space<smem>>
    %706 = vector.broadcast %705 : f32 to vector<8x8xf32>
    %707 = arith.mulf %9, %706 : vector<8x8xf32>
    %708 = arith.addf %704, %707 : vector<8x8xf32>
    %c4_325 = arith.constant 4 : index
    %c8_326 = arith.constant 8 : index
    %709 = memref.load %arg8[%c4_325, %c8_326] : memref<5x16xf32, #tpu.memory_space<smem>>
    %710 = vector.broadcast %709 : f32 to vector<8x8xf32>
    %711 = arith.mulf %11, %710 : vector<8x8xf32>
    %712 = arith.addf %708, %711 : vector<8x8xf32>
    %cst_327 = arith.constant 0.000000e+00 : f32
    %713 = vector.broadcast %cst_327 : f32 to vector<8x8xf32>
    %714 = arith.maximumf %712, %713 : vector<8x8xf32>
    %c8_328 = arith.constant 8 : index
    %715 = memref.load %arg10[%c8_328] : memref<16xf32, #tpu.memory_space<smem>>
    %716 = vector.broadcast %715 : f32 to vector<8x8xf32>
    %717 = arith.mulf %714, %716 : vector<8x8xf32>
    %718 = arith.addf %690, %717 : vector<8x8xf32>
    %c0_329 = arith.constant 0 : index
    %c9_330 = arith.constant 9 : index
    %719 = memref.load %arg8[%c0_329, %c9_330] : memref<5x16xf32, #tpu.memory_space<smem>>
    %720 = vector.broadcast %719 : f32 to vector<8x8xf32>
    %721 = arith.mulf %3, %720 : vector<8x8xf32>
    %c9_331 = arith.constant 9 : index
    %722 = memref.load %arg9[%c9_331] : memref<16xf32, #tpu.memory_space<smem>>
    %723 = vector.broadcast %722 : f32 to vector<8x8xf32>
    %724 = arith.addf %721, %723 : vector<8x8xf32>
    %c1_332 = arith.constant 1 : index
    %c9_333 = arith.constant 9 : index
    %725 = memref.load %arg8[%c1_332, %c9_333] : memref<5x16xf32, #tpu.memory_space<smem>>
    %726 = vector.broadcast %725 : f32 to vector<8x8xf32>
    %727 = arith.mulf %5, %726 : vector<8x8xf32>
    %728 = arith.addf %724, %727 : vector<8x8xf32>
    %c2_334 = arith.constant 2 : index
    %c9_335 = arith.constant 9 : index
    %729 = memref.load %arg8[%c2_334, %c9_335] : memref<5x16xf32, #tpu.memory_space<smem>>
    %730 = vector.broadcast %729 : f32 to vector<8x8xf32>
    %731 = arith.mulf %7, %730 : vector<8x8xf32>
    %732 = arith.addf %728, %731 : vector<8x8xf32>
    %c3_336 = arith.constant 3 : index
    %c9_337 = arith.constant 9 : index
    %733 = memref.load %arg8[%c3_336, %c9_337] : memref<5x16xf32, #tpu.memory_space<smem>>
    %734 = vector.broadcast %733 : f32 to vector<8x8xf32>
    %735 = arith.mulf %9, %734 : vector<8x8xf32>
    %736 = arith.addf %732, %735 : vector<8x8xf32>
    %c4_338 = arith.constant 4 : index
    %c9_339 = arith.constant 9 : index
    %737 = memref.load %arg8[%c4_338, %c9_339] : memref<5x16xf32, #tpu.memory_space<smem>>
    %738 = vector.broadcast %737 : f32 to vector<8x8xf32>
    %739 = arith.mulf %11, %738 : vector<8x8xf32>
    %740 = arith.addf %736, %739 : vector<8x8xf32>
    %cst_340 = arith.constant 0.000000e+00 : f32
    %741 = vector.broadcast %cst_340 : f32 to vector<8x8xf32>
    %742 = arith.maximumf %740, %741 : vector<8x8xf32>
    %c9_341 = arith.constant 9 : index
    %743 = memref.load %arg10[%c9_341] : memref<16xf32, #tpu.memory_space<smem>>
    %744 = vector.broadcast %743 : f32 to vector<8x8xf32>
    %745 = arith.mulf %742, %744 : vector<8x8xf32>
    %746 = arith.addf %718, %745 : vector<8x8xf32>
    %c0_342 = arith.constant 0 : index
    %c10_343 = arith.constant 10 : index
    %747 = memref.load %arg8[%c0_342, %c10_343] : memref<5x16xf32, #tpu.memory_space<smem>>
    %748 = vector.broadcast %747 : f32 to vector<8x8xf32>
    %749 = arith.mulf %3, %748 : vector<8x8xf32>
    %c10_344 = arith.constant 10 : index
    %750 = memref.load %arg9[%c10_344] : memref<16xf32, #tpu.memory_space<smem>>
    %751 = vector.broadcast %750 : f32 to vector<8x8xf32>
    %752 = arith.addf %749, %751 : vector<8x8xf32>
    %c1_345 = arith.constant 1 : index
    %c10_346 = arith.constant 10 : index
    %753 = memref.load %arg8[%c1_345, %c10_346] : memref<5x16xf32, #tpu.memory_space<smem>>
    %754 = vector.broadcast %753 : f32 to vector<8x8xf32>
    %755 = arith.mulf %5, %754 : vector<8x8xf32>
    %756 = arith.addf %752, %755 : vector<8x8xf32>
    %c2_347 = arith.constant 2 : index
    %c10_348 = arith.constant 10 : index
    %757 = memref.load %arg8[%c2_347, %c10_348] : memref<5x16xf32, #tpu.memory_space<smem>>
    %758 = vector.broadcast %757 : f32 to vector<8x8xf32>
    %759 = arith.mulf %7, %758 : vector<8x8xf32>
    %760 = arith.addf %756, %759 : vector<8x8xf32>
    %c3_349 = arith.constant 3 : index
    %c10_350 = arith.constant 10 : index
    %761 = memref.load %arg8[%c3_349, %c10_350] : memref<5x16xf32, #tpu.memory_space<smem>>
    %762 = vector.broadcast %761 : f32 to vector<8x8xf32>
    %763 = arith.mulf %9, %762 : vector<8x8xf32>
    %764 = arith.addf %760, %763 : vector<8x8xf32>
    %c4_351 = arith.constant 4 : index
    %c10_352 = arith.constant 10 : index
    %765 = memref.load %arg8[%c4_351, %c10_352] : memref<5x16xf32, #tpu.memory_space<smem>>
    %766 = vector.broadcast %765 : f32 to vector<8x8xf32>
    %767 = arith.mulf %11, %766 : vector<8x8xf32>
    %768 = arith.addf %764, %767 : vector<8x8xf32>
    %cst_353 = arith.constant 0.000000e+00 : f32
    %769 = vector.broadcast %cst_353 : f32 to vector<8x8xf32>
    %770 = arith.maximumf %768, %769 : vector<8x8xf32>
    %c10_354 = arith.constant 10 : index
    %771 = memref.load %arg10[%c10_354] : memref<16xf32, #tpu.memory_space<smem>>
    %772 = vector.broadcast %771 : f32 to vector<8x8xf32>
    %773 = arith.mulf %770, %772 : vector<8x8xf32>
    %774 = arith.addf %746, %773 : vector<8x8xf32>
    %c0_355 = arith.constant 0 : index
    %c11_356 = arith.constant 11 : index
    %775 = memref.load %arg8[%c0_355, %c11_356] : memref<5x16xf32, #tpu.memory_space<smem>>
    %776 = vector.broadcast %775 : f32 to vector<8x8xf32>
    %777 = arith.mulf %3, %776 : vector<8x8xf32>
    %c11_357 = arith.constant 11 : index
    %778 = memref.load %arg9[%c11_357] : memref<16xf32, #tpu.memory_space<smem>>
    %779 = vector.broadcast %778 : f32 to vector<8x8xf32>
    %780 = arith.addf %777, %779 : vector<8x8xf32>
    %c1_358 = arith.constant 1 : index
    %c11_359 = arith.constant 11 : index
    %781 = memref.load %arg8[%c1_358, %c11_359] : memref<5x16xf32, #tpu.memory_space<smem>>
    %782 = vector.broadcast %781 : f32 to vector<8x8xf32>
    %783 = arith.mulf %5, %782 : vector<8x8xf32>
    %784 = arith.addf %780, %783 : vector<8x8xf32>
    %c2_360 = arith.constant 2 : index
    %c11_361 = arith.constant 11 : index
    %785 = memref.load %arg8[%c2_360, %c11_361] : memref<5x16xf32, #tpu.memory_space<smem>>
    %786 = vector.broadcast %785 : f32 to vector<8x8xf32>
    %787 = arith.mulf %7, %786 : vector<8x8xf32>
    %788 = arith.addf %784, %787 : vector<8x8xf32>
    %c3_362 = arith.constant 3 : index
    %c11_363 = arith.constant 11 : index
    %789 = memref.load %arg8[%c3_362, %c11_363] : memref<5x16xf32, #tpu.memory_space<smem>>
    %790 = vector.broadcast %789 : f32 to vector<8x8xf32>
    %791 = arith.mulf %9, %790 : vector<8x8xf32>
    %792 = arith.addf %788, %791 : vector<8x8xf32>
    %c4_364 = arith.constant 4 : index
    %c11_365 = arith.constant 11 : index
    %793 = memref.load %arg8[%c4_364, %c11_365] : memref<5x16xf32, #tpu.memory_space<smem>>
    %794 = vector.broadcast %793 : f32 to vector<8x8xf32>
    %795 = arith.mulf %11, %794 : vector<8x8xf32>
    %796 = arith.addf %792, %795 : vector<8x8xf32>
    %cst_366 = arith.constant 0.000000e+00 : f32
    %797 = vector.broadcast %cst_366 : f32 to vector<8x8xf32>
    %798 = arith.maximumf %796, %797 : vector<8x8xf32>
    %c11_367 = arith.constant 11 : index
    %799 = memref.load %arg10[%c11_367] : memref<16xf32, #tpu.memory_space<smem>>
    %800 = vector.broadcast %799 : f32 to vector<8x8xf32>
    %801 = arith.mulf %798, %800 : vector<8x8xf32>
    %802 = arith.addf %774, %801 : vector<8x8xf32>
    %c0_368 = arith.constant 0 : index
    %c12_369 = arith.constant 12 : index
    %803 = memref.load %arg8[%c0_368, %c12_369] : memref<5x16xf32, #tpu.memory_space<smem>>
    %804 = vector.broadcast %803 : f32 to vector<8x8xf32>
    %805 = arith.mulf %3, %804 : vector<8x8xf32>
    %c12_370 = arith.constant 12 : index
    %806 = memref.load %arg9[%c12_370] : memref<16xf32, #tpu.memory_space<smem>>
    %807 = vector.broadcast %806 : f32 to vector<8x8xf32>
    %808 = arith.addf %805, %807 : vector<8x8xf32>
    %c1_371 = arith.constant 1 : index
    %c12_372 = arith.constant 12 : index
    %809 = memref.load %arg8[%c1_371, %c12_372] : memref<5x16xf32, #tpu.memory_space<smem>>
    %810 = vector.broadcast %809 : f32 to vector<8x8xf32>
    %811 = arith.mulf %5, %810 : vector<8x8xf32>
    %812 = arith.addf %808, %811 : vector<8x8xf32>
    %c2_373 = arith.constant 2 : index
    %c12_374 = arith.constant 12 : index
    %813 = memref.load %arg8[%c2_373, %c12_374] : memref<5x16xf32, #tpu.memory_space<smem>>
    %814 = vector.broadcast %813 : f32 to vector<8x8xf32>
    %815 = arith.mulf %7, %814 : vector<8x8xf32>
    %816 = arith.addf %812, %815 : vector<8x8xf32>
    %c3_375 = arith.constant 3 : index
    %c12_376 = arith.constant 12 : index
    %817 = memref.load %arg8[%c3_375, %c12_376] : memref<5x16xf32, #tpu.memory_space<smem>>
    %818 = vector.broadcast %817 : f32 to vector<8x8xf32>
    %819 = arith.mulf %9, %818 : vector<8x8xf32>
    %820 = arith.addf %816, %819 : vector<8x8xf32>
    %c4_377 = arith.constant 4 : index
    %c12_378 = arith.constant 12 : index
    %821 = memref.load %arg8[%c4_377, %c12_378] : memref<5x16xf32, #tpu.memory_space<smem>>
    %822 = vector.broadcast %821 : f32 to vector<8x8xf32>
    %823 = arith.mulf %11, %822 : vector<8x8xf32>
    %824 = arith.addf %820, %823 : vector<8x8xf32>
    %cst_379 = arith.constant 0.000000e+00 : f32
    %825 = vector.broadcast %cst_379 : f32 to vector<8x8xf32>
    %826 = arith.maximumf %824, %825 : vector<8x8xf32>
    %c12_380 = arith.constant 12 : index
    %827 = memref.load %arg10[%c12_380] : memref<16xf32, #tpu.memory_space<smem>>
    %828 = vector.broadcast %827 : f32 to vector<8x8xf32>
    %829 = arith.mulf %826, %828 : vector<8x8xf32>
    %830 = arith.addf %802, %829 : vector<8x8xf32>
    %c0_381 = arith.constant 0 : index
    %c13_382 = arith.constant 13 : index
    %831 = memref.load %arg8[%c0_381, %c13_382] : memref<5x16xf32, #tpu.memory_space<smem>>
    %832 = vector.broadcast %831 : f32 to vector<8x8xf32>
    %833 = arith.mulf %3, %832 : vector<8x8xf32>
    %c13_383 = arith.constant 13 : index
    %834 = memref.load %arg9[%c13_383] : memref<16xf32, #tpu.memory_space<smem>>
    %835 = vector.broadcast %834 : f32 to vector<8x8xf32>
    %836 = arith.addf %833, %835 : vector<8x8xf32>
    %c1_384 = arith.constant 1 : index
    %c13_385 = arith.constant 13 : index
    %837 = memref.load %arg8[%c1_384, %c13_385] : memref<5x16xf32, #tpu.memory_space<smem>>
    %838 = vector.broadcast %837 : f32 to vector<8x8xf32>
    %839 = arith.mulf %5, %838 : vector<8x8xf32>
    %840 = arith.addf %836, %839 : vector<8x8xf32>
    %c2_386 = arith.constant 2 : index
    %c13_387 = arith.constant 13 : index
    %841 = memref.load %arg8[%c2_386, %c13_387] : memref<5x16xf32, #tpu.memory_space<smem>>
    %842 = vector.broadcast %841 : f32 to vector<8x8xf32>
    %843 = arith.mulf %7, %842 : vector<8x8xf32>
    %844 = arith.addf %840, %843 : vector<8x8xf32>
    %c3_388 = arith.constant 3 : index
    %c13_389 = arith.constant 13 : index
    %845 = memref.load %arg8[%c3_388, %c13_389] : memref<5x16xf32, #tpu.memory_space<smem>>
    %846 = vector.broadcast %845 : f32 to vector<8x8xf32>
    %847 = arith.mulf %9, %846 : vector<8x8xf32>
    %848 = arith.addf %844, %847 : vector<8x8xf32>
    %c4_390 = arith.constant 4 : index
    %c13_391 = arith.constant 13 : index
    %849 = memref.load %arg8[%c4_390, %c13_391] : memref<5x16xf32, #tpu.memory_space<smem>>
    %850 = vector.broadcast %849 : f32 to vector<8x8xf32>
    %851 = arith.mulf %11, %850 : vector<8x8xf32>
    %852 = arith.addf %848, %851 : vector<8x8xf32>
    %cst_392 = arith.constant 0.000000e+00 : f32
    %853 = vector.broadcast %cst_392 : f32 to vector<8x8xf32>
    %854 = arith.maximumf %852, %853 : vector<8x8xf32>
    %c13_393 = arith.constant 13 : index
    %855 = memref.load %arg10[%c13_393] : memref<16xf32, #tpu.memory_space<smem>>
    %856 = vector.broadcast %855 : f32 to vector<8x8xf32>
    %857 = arith.mulf %854, %856 : vector<8x8xf32>
    %858 = arith.addf %830, %857 : vector<8x8xf32>
    %c0_394 = arith.constant 0 : index
    %c14_395 = arith.constant 14 : index
    %859 = memref.load %arg8[%c0_394, %c14_395] : memref<5x16xf32, #tpu.memory_space<smem>>
    %860 = vector.broadcast %859 : f32 to vector<8x8xf32>
    %861 = arith.mulf %3, %860 : vector<8x8xf32>
    %c14_396 = arith.constant 14 : index
    %862 = memref.load %arg9[%c14_396] : memref<16xf32, #tpu.memory_space<smem>>
    %863 = vector.broadcast %862 : f32 to vector<8x8xf32>
    %864 = arith.addf %861, %863 : vector<8x8xf32>
    %c1_397 = arith.constant 1 : index
    %c14_398 = arith.constant 14 : index
    %865 = memref.load %arg8[%c1_397, %c14_398] : memref<5x16xf32, #tpu.memory_space<smem>>
    %866 = vector.broadcast %865 : f32 to vector<8x8xf32>
    %867 = arith.mulf %5, %866 : vector<8x8xf32>
    %868 = arith.addf %864, %867 : vector<8x8xf32>
    %c2_399 = arith.constant 2 : index
    %c14_400 = arith.constant 14 : index
    %869 = memref.load %arg8[%c2_399, %c14_400] : memref<5x16xf32, #tpu.memory_space<smem>>
    %870 = vector.broadcast %869 : f32 to vector<8x8xf32>
    %871 = arith.mulf %7, %870 : vector<8x8xf32>
    %872 = arith.addf %868, %871 : vector<8x8xf32>
    %c3_401 = arith.constant 3 : index
    %c14_402 = arith.constant 14 : index
    %873 = memref.load %arg8[%c3_401, %c14_402] : memref<5x16xf32, #tpu.memory_space<smem>>
    %874 = vector.broadcast %873 : f32 to vector<8x8xf32>
    %875 = arith.mulf %9, %874 : vector<8x8xf32>
    %876 = arith.addf %872, %875 : vector<8x8xf32>
    %c4_403 = arith.constant 4 : index
    %c14_404 = arith.constant 14 : index
    %877 = memref.load %arg8[%c4_403, %c14_404] : memref<5x16xf32, #tpu.memory_space<smem>>
    %878 = vector.broadcast %877 : f32 to vector<8x8xf32>
    %879 = arith.mulf %11, %878 : vector<8x8xf32>
    %880 = arith.addf %876, %879 : vector<8x8xf32>
    %cst_405 = arith.constant 0.000000e+00 : f32
    %881 = vector.broadcast %cst_405 : f32 to vector<8x8xf32>
    %882 = arith.maximumf %880, %881 : vector<8x8xf32>
    %c14_406 = arith.constant 14 : index
    %883 = memref.load %arg10[%c14_406] : memref<16xf32, #tpu.memory_space<smem>>
    %884 = vector.broadcast %883 : f32 to vector<8x8xf32>
    %885 = arith.mulf %882, %884 : vector<8x8xf32>
    %886 = arith.addf %858, %885 : vector<8x8xf32>
    %c0_407 = arith.constant 0 : index
    %c15_408 = arith.constant 15 : index
    %887 = memref.load %arg8[%c0_407, %c15_408] : memref<5x16xf32, #tpu.memory_space<smem>>
    %888 = vector.broadcast %887 : f32 to vector<8x8xf32>
    %889 = arith.mulf %3, %888 : vector<8x8xf32>
    %c15_409 = arith.constant 15 : index
    %890 = memref.load %arg9[%c15_409] : memref<16xf32, #tpu.memory_space<smem>>
    %891 = vector.broadcast %890 : f32 to vector<8x8xf32>
    %892 = arith.addf %889, %891 : vector<8x8xf32>
    %c1_410 = arith.constant 1 : index
    %c15_411 = arith.constant 15 : index
    %893 = memref.load %arg8[%c1_410, %c15_411] : memref<5x16xf32, #tpu.memory_space<smem>>
    %894 = vector.broadcast %893 : f32 to vector<8x8xf32>
    %895 = arith.mulf %5, %894 : vector<8x8xf32>
    %896 = arith.addf %892, %895 : vector<8x8xf32>
    %c2_412 = arith.constant 2 : index
    %c15_413 = arith.constant 15 : index
    %897 = memref.load %arg8[%c2_412, %c15_413] : memref<5x16xf32, #tpu.memory_space<smem>>
    %898 = vector.broadcast %897 : f32 to vector<8x8xf32>
    %899 = arith.mulf %7, %898 : vector<8x8xf32>
    %900 = arith.addf %896, %899 : vector<8x8xf32>
    %c3_414 = arith.constant 3 : index
    %c15_415 = arith.constant 15 : index
    %901 = memref.load %arg8[%c3_414, %c15_415] : memref<5x16xf32, #tpu.memory_space<smem>>
    %902 = vector.broadcast %901 : f32 to vector<8x8xf32>
    %903 = arith.mulf %9, %902 : vector<8x8xf32>
    %904 = arith.addf %900, %903 : vector<8x8xf32>
    %c4_416 = arith.constant 4 : index
    %c15_417 = arith.constant 15 : index
    %905 = memref.load %arg8[%c4_416, %c15_417] : memref<5x16xf32, #tpu.memory_space<smem>>
    %906 = vector.broadcast %905 : f32 to vector<8x8xf32>
    %907 = arith.mulf %11, %906 : vector<8x8xf32>
    %908 = arith.addf %904, %907 : vector<8x8xf32>
    %cst_418 = arith.constant 0.000000e+00 : f32
    %909 = vector.broadcast %cst_418 : f32 to vector<8x8xf32>
    %910 = arith.maximumf %908, %909 : vector<8x8xf32>
    %c15_419 = arith.constant 15 : index
    %911 = memref.load %arg10[%c15_419] : memref<16xf32, #tpu.memory_space<smem>>
    %912 = vector.broadcast %911 : f32 to vector<8x8xf32>
    %913 = arith.mulf %910, %912 : vector<8x8xf32>
    %914 = arith.addf %886, %913 : vector<8x8xf32>
    %c0_420 = arith.constant 0 : index
    %915 = memref.load %arg11[%c0_420] : memref<1xf32, #tpu.memory_space<smem>>
    %916 = vector.broadcast %915 : f32 to vector<8x8xf32>
    %917 = arith.addf %914, %916 : vector<8x8xf32>
    %918 = arith.negf %917 : vector<8x8xf32>
    %919 = math.exp %918 : vector<8x8xf32>
    %cst_421 = arith.constant 1.000000e+00 : f32
    %920 = vector.broadcast %cst_421 : f32 to vector<8x8xf32>
    %921 = arith.addf %920, %919 : vector<8x8xf32>
    %922 = arith.divf %920, %921 : vector<8x8xf32>
    %923 = arith.mulf %922, %1 : vector<8x8xf32>
    %c0_422 = arith.constant 0 : index
    %c0_423 = arith.constant 0 : index
    %924 = vector.load %arg12[%c0_422, %c0_423] : memref<4x8xf32, #tpu.memory_space<vmem>>, vector<4x8xf32>
    %c0_424 = arith.constant 0 : index
    %c0_425 = arith.constant 0 : index
    %925 = vector.load %arg13[%c0_424, %c0_425] : memref<1x8xf32, #tpu.memory_space<vmem>>, vector<1x8xf32>
    %cst_426 = arith.constant dense<0.000000e+00> : vector<8xf32>
    %926 = vector.multi_reduction <add>, %467, %cst_426 [1] : vector<8x8xf32> to vector<8xf32>
    %927 = vector.shape_cast %926 : vector<8xf32> to vector<8x1xf32>
    %cst_427 = arith.constant 1.000000e+00 : f32
    %928 = vector.broadcast %cst_427 : f32 to vector<8x1xf32>
    %929 = arith.addf %927, %928 : vector<8x1xf32>
    %930 = math.rsqrt %929 : vector<8x1xf32>
    %cst_428 = arith.constant dense<0.000000e+00> : vector<8x8xf32>
    %931 = tpu.matmul %0, %924, %cst_428 {dimension_numbers = #tpu.dot_dimension_numbers<[1], [0], [0], [1], [0, 0, 1, 1], [], []>} : vector<8x4xf32>, vector<4x8xf32>, vector<8x8xf32> -> vector<8x8xf32>
    %932 = vector.broadcast %930 : vector<8x1xf32> to vector<8x8xf32>
    %933 = arith.mulf %932, %931 : vector<8x8xf32>
    %cst_429 = arith.constant dense<0.000000e+00> : vector<8x8xf32>
    %934 = tpu.matmul %467, %933, %cst_429 {dimension_numbers = #tpu.dot_dimension_numbers<[1], [0], [0], [1], [0, 0, 1, 1], [], []>} : vector<8x8xf32>, vector<8x8xf32>, vector<8x8xf32> -> vector<8x8xf32>
    %935 = arith.addf %934, %933 : vector<8x8xf32>
    %936 = vector.broadcast %930 : vector<8x1xf32> to vector<8x8xf32>
    %937 = arith.mulf %936, %935 : vector<8x8xf32>
    %938 = vector.broadcast %925 : vector<1x8xf32> to vector<8x8xf32>
    %939 = arith.addf %937, %938 : vector<8x8xf32>
    %cst_430 = arith.constant 0.000000e+00 : f32
    %940 = vector.broadcast %cst_430 : f32 to vector<8x8xf32>
    %941 = arith.cmpf ogt, %939, %940 : vector<8x8xf32>
    %cst_431 = arith.constant 0.00999999977 : f32
    %942 = vector.broadcast %cst_431 : f32 to vector<8x8xf32>
    %943 = arith.mulf %942, %939 : vector<8x8xf32>
    %944 = arith.select %941, %939, %943 : vector<8x8xi1>, vector<8x8xf32>
    %c0_432 = arith.constant 0 : index
    %c0_433 = arith.constant 0 : index
    %945 = vector.load %arg14[%c0_432, %c0_433] : memref<8x4xf32, #tpu.memory_space<vmem>>, vector<8x4xf32>
    %c0_434 = arith.constant 0 : index
    %c0_435 = arith.constant 0 : index
    %946 = vector.load %arg15[%c0_434, %c0_435] : memref<1x4xf32, #tpu.memory_space<vmem>>, vector<1x4xf32>
    %cst_436 = arith.constant dense<0.000000e+00> : vector<8xf32>
    %947 = vector.multi_reduction <add>, %923, %cst_436 [1] : vector<8x8xf32> to vector<8xf32>
    %948 = vector.shape_cast %947 : vector<8xf32> to vector<8x1xf32>
    %cst_437 = arith.constant 1.000000e+00 : f32
    %949 = vector.broadcast %cst_437 : f32 to vector<8x1xf32>
    %950 = arith.addf %948, %949 : vector<8x1xf32>
    %951 = math.rsqrt %950 : vector<8x1xf32>
    %cst_438 = arith.constant dense<0.000000e+00> : vector<8x4xf32>
    %952 = tpu.matmul %944, %945, %cst_438 {dimension_numbers = #tpu.dot_dimension_numbers<[1], [0], [0], [1], [0, 0, 1, 1], [], []>} : vector<8x8xf32>, vector<8x4xf32>, vector<8x4xf32> -> vector<8x4xf32>
    %953 = vector.broadcast %951 : vector<8x1xf32> to vector<8x4xf32>
    %954 = arith.mulf %953, %952 : vector<8x4xf32>
    %cst_439 = arith.constant dense<0.000000e+00> : vector<8x4xf32>
    %955 = tpu.matmul %923, %954, %cst_439 {dimension_numbers = #tpu.dot_dimension_numbers<[1], [0], [0], [1], [0, 0, 1, 1], [], []>} : vector<8x8xf32>, vector<8x4xf32>, vector<8x4xf32> -> vector<8x4xf32>
    %956 = arith.addf %955, %954 : vector<8x4xf32>
    %957 = vector.broadcast %951 : vector<8x1xf32> to vector<8x4xf32>
    %958 = arith.mulf %957, %956 : vector<8x4xf32>
    %959 = vector.broadcast %946 : vector<1x4xf32> to vector<8x4xf32>
    %960 = arith.addf %958, %959 : vector<8x4xf32>
    %961 = arith.addf %960, %0 : vector<8x4xf32>
    %c0_440 = arith.constant 0 : index
    %c0_441 = arith.constant 0 : index
    %c0_442 = arith.constant 0 : index
    %962 = vector.load %arg3[%c0_440, %c0_441, %c0_442] : memref<2x8x1xf32, #tpu.memory_space<vmem>>, vector<2x8x1xf32>
    %cst_443 = arith.constant 5.000000e-01 : f32
    %963 = vector.broadcast %cst_443 : f32 to vector<2x8x1xf32>
    %964 = arith.cmpf ogt, %962, %963 : vector<2x8x1xf32>
    %965 = vector.shape_cast %961 : vector<8x4xf32> to vector<1x8x4xf32>
    %cst_444 = arith.constant -1.000000e+30 : f32
    %966 = vector.shape_cast %964 : vector<2x8x1xi1> to vector<2x8x1xi1>
    %967 = vector.broadcast %966 : vector<2x8x1xi1> to vector<2x8x4xi1>
    %968 = vector.shape_cast %965 : vector<1x8x4xf32> to vector<1x8x4xf32>
    %969 = vector.broadcast %968 : vector<1x8x4xf32> to vector<2x8x4xf32>
    %970 = vector.broadcast %cst_444 : f32 to vector<2x8x4xf32>
    %971 = arith.select %967, %969, %970 : vector<2x8x4xi1>, vector<2x8x4xf32>
    %cst_445 = arith.constant dense<0xFF800000> : vector<2x4xf32>
    %972 = vector.multi_reduction <maximumf>, %971, %cst_445 [1] : vector<2x8x4xf32> to vector<2x4xf32>
    %cst_446 = arith.constant 0.000000e+00 : f32
    %973 = vector.broadcast %cst_446 : f32 to vector<2x4xf32>
    %974 = arith.cmpf ogt, %972, %973 : vector<2x4xf32>
    %cst_447 = arith.constant 0.00999999977 : f32
    %975 = vector.broadcast %cst_447 : f32 to vector<2x4xf32>
    %976 = arith.mulf %975, %972 : vector<2x4xf32>
    %977 = arith.select %974, %972, %976 : vector<2x4xi1>, vector<2x4xf32>
    %c0_448 = arith.constant 0 : index
    %c0_449 = arith.constant 0 : index
    %978 = vector.load %arg16[%c0_448, %c0_449] : memref<4x6xf32, #tpu.memory_space<vmem>>, vector<4x6xf32>
    %cst_450 = arith.constant dense<0.000000e+00> : vector<2x6xf32>
    %979 = tpu.matmul %977, %978, %cst_450 {dimension_numbers = #tpu.dot_dimension_numbers<[1], [0], [0], [1], [0, 0, 1, 1], [], []>} : vector<2x4xf32>, vector<4x6xf32>, vector<2x6xf32> -> vector<2x6xf32>
    %c0_451 = arith.constant 0 : index
    %c0_452 = arith.constant 0 : index
    %980 = vector.load %arg17[%c0_451, %c0_452] : memref<1x6xf32, #tpu.memory_space<vmem>>, vector<1x6xf32>
    %981 = vector.broadcast %980 : vector<1x6xf32> to vector<2x6xf32>
    %982 = arith.addf %979, %981 : vector<2x6xf32>
    %c0_453 = arith.constant 0 : index
    %c0_454 = arith.constant 0 : index
    %983 = vector.load %arg18[%c0_453, %c0_454] : memref<2x6xf32, #tpu.memory_space<vmem>>, vector<2x6xf32>
    tpu.vector_store %arg18[%c0_453, %c0_454], %982 {strides = array<i32>} : memref<2x6xf32, #tpu.memory_space<vmem>>, vector<2x6xf32>,
    return
  }
}

</mosaic_0001>

<llo_original>
// kernel: tpu_custom_call.1
$region0: #{tpu_custom_call.1}
  #allocation0 [shape = 'u32[]', space=smem, size = 0x4, offset = 0x4, fixed_abs, tag = 'smem constant byte address 0x4 - core index']
  #allocation1 [shape = 'u32[144,128]{1,0:T(1,128)}', space=vmem, size = 0x12000, scoped, tag = 'internal scratch']
  #allocation2 [shape = 'f32[1]{0:T(128)S(6)}', space=smem, size = 0x200, scoped, tag = 'scoped memory for tpu_custom_call.1']
  #allocation3 [shape = 'f32[1]{0:T(128)S(6)}', space=smem, size = 0x200, scoped, tag = 'scoped memory for tpu_custom_call.1']
  %s0 = inlined_call_operand.vmem [shape: f32[8,4], index: 0, kind: input, shape index: {}]
  %s1 = inlined_call_operand.vmem [shape: f32[5,8,8], index: 1, kind: input, shape index: {}]
  %s2 = inlined_call_operand.vmem [shape: f32[8,8], index: 2, kind: input, shape index: {}]
  %s3 = inlined_call_operand.vmem [shape: f32[2,8,1], index: 3, kind: input, shape index: {}]
  %s4 = inlined_call_operand.vmem [shape: f32[5,16], index: 4, kind: input, shape index: {}]
  %s5 = inlined_call_operand.hbm [shape: f32[16], index: 5, kind: input, shape index: {}]
  %s6 = inlined_call_operand.hbm [shape: f32[16], index: 6, kind: input, shape index: {}]
  %s7 = inlined_call_operand.<no memory space> [shape: f32[1], index: 7, kind: input, shape index: {}]
  %s8 = inlined_call_operand.vmem [shape: f32[5,16], index: 8, kind: input, shape index: {}]
  %s9 = inlined_call_operand.vmem [shape: f32[16], index: 9, kind: input, shape index: {}]
  %s10 = inlined_call_operand.vmem [shape: f32[16], index: 10, kind: input, shape index: {}]
  %s11 = inlined_call_operand.<no memory space> [shape: f32[1], index: 11, kind: input, shape index: {}]
  %s12 = inlined_call_operand.vmem [shape: f32[4,8], index: 12, kind: input, shape index: {}]
  %s13 = inlined_call_operand.vmem [shape: f32[1,8], index: 13, kind: input, shape index: {}]
  %s14 = inlined_call_operand.vmem [shape: f32[8,4], index: 14, kind: input, shape index: {}]
  %s15 = inlined_call_operand.vmem [shape: f32[1,4], index: 15, kind: input, shape index: {}]
  %s16 = inlined_call_operand.vmem [shape: f32[4,6], index: 16, kind: input, shape index: {}]
  %s17 = inlined_call_operand.vmem [shape: f32[1,6], index: 17, kind: input, shape index: {}]
  %s18 = inlined_call_operand.hbm [shape: f32[2,6], index: 18, kind: output, shape index: {}]
  %s19 = sld [smem:[#allocation0]]
  $region106: #{tpu_custom_call.1} parent=0
    _
  %s21 = ssub.s32 1, %s19
  %s22 = scalar_select 0, %s21, %s19
  %23 = sst [smem:[#allocation2]] %s7
  %24 = sst [smem:[#allocation3]] %s11
  $region1: #{tpu_custom_call.1} parent=0
    #allocation4 [shape = 'u8[4096]{0}', space=smem, size = 0x1000, scoped, tag = 'input window, operand 4, single buffered']
    #allocation5 [shape = 's32[1]{0}', space=sflag, size = 0x4, scoped, tag = 'scoped memory for tpu_custom_call.1']
    #allocation6 [shape = 's32[1]{0}', space=sflag, size = 0x4, scoped, tag = 'scoped memory for tpu_custom_call.1']
    #allocation7 [shape = 's32[1]{0}', space=sflag, size = 0x4, scoped, tag = 'scoped memory for tpu_custom_call.1']
    #allocation8 [shape = 'u8[512]{0}', space=smem, size = 0x200, scoped, tag = 'input window, operand 5, single buffered']
    #allocation9 [shape = 'u8[512]{0}', space=smem, size = 0x200, scoped, tag = 'input window, operand 6, single buffered']
    #allocation10 [shape = 's32[1]{0}', space=sflag, size = 0x4, scoped, tag = 'scoped memory for tpu_custom_call.1']
    #allocation11 [shape = 'u8[4096]{0}', space=smem, size = 0x1000, scoped, tag = 'input window, operand 8, single buffered']
    #allocation12 [shape = 's32[1]{0}', space=sflag, size = 0x4, scoped, tag = 'scoped memory for tpu_custom_call.1']
    #allocation13 [shape = 'u8[512]{0}', space=smem, size = 0x200, scoped, tag = 'input window, operand 9, single buffered']
    #allocation14 [shape = 'u8[512]{0}', space=smem, size = 0x200, scoped, tag = 'input window, operand 10, single buffered']
    #allocation15 [shape = 's32[1]{0}', space=sflag, size = 0x4, scoped, tag = 'scoped memory for tpu_custom_call.1']
    #allocation16 [shape = 'u8[1024]{0}', space=vmem, size = 0x400, scoped, tag = 'output window, operand 0, single buffered']
    %25 = vsyncpa [#allocation7], 0
    %26 = vsyncpa [#allocation6], 0
    %27 = vsyncpa [#allocation10], 0
    %28 = vsyncpa [#allocation12], 0
    %29 = vsyncpa [#allocation15], 0
    %30 = vsyncpa [#allocation5], 0
    // Predicated region
    $region2: #{tpu_custom_call.1} parent=1 // pred_check
      _
    $region3: #{tpu_custom_call.1} parent=1 // pred_check_branch
      %32 = sbr.rel (0) target = $region5
    $region4: #{tpu_custom_call.1} parent=1 // pred_region
      _
    $region5: #{tpu_custom_call.1} parent=1 // pred_fallthru
      _
    // Predicated region
    $region6: #{tpu_custom_call.1} parent=1 // pred_check
      _
    $region7: #{tpu_custom_call.1} parent=1 // pred_check_branch
      %34 = sbr.rel (0) target = $region9
    $region8: #{tpu_custom_call.1} parent=1 // pred_region
      _
    $region9: #{tpu_custom_call.1} parent=1 // pred_fallthru
      _
    // Predicated region
    $region10: #{tpu_custom_call.1} parent=1 // pred_check
      _
    $region11: #{tpu_custom_call.1} parent=1 // pred_check_branch
      %36 = sbr.rel (0) target = $region13
    $region12: #{tpu_custom_call.1} parent=1 // pred_region
      _
    $region13: #{tpu_custom_call.1} parent=1 // pred_fallthru
      _
    // Predicated region
    $region14: #{tpu_custom_call.1} parent=1 // pred_check
      _
    $region15: #{tpu_custom_call.1} parent=1 // pred_check_branch
      %38 = sbr.rel (0) target = $region17
    $region16: #{tpu_custom_call.1} parent=1 // pred_region
      _
    $region17: #{tpu_custom_call.1} parent=1 // pred_fallthru
      _
    // Predicated region
    $region18: #{tpu_custom_call.1} parent=1 // pred_check
      _
    $region19: #{tpu_custom_call.1} parent=1 // pred_check_branch
      %40 = sbr.rel (0) target = $region21
    $region20: #{tpu_custom_call.1} parent=1 // pred_region
      %s42 = ssub.s32 128, 128
      %43 = vsyncadd [#allocation7], %s42
      %s45 = sshll.u32 %s4, 4
      %s46 = int_to_ptr.vmem [resolvable:$true] %s45
      %48 = dma.vmem_to_smem %s46, 128, [#allocation4], [#allocation7]
    $region21: #{tpu_custom_call.1} parent=1 // pred_fallthru
      _
    // Predicated region
    $region22: #{tpu_custom_call.1} parent=1 // pred_check
      _
    $region23: #{tpu_custom_call.1} parent=1 // pred_check_branch
      %50 = sbr.rel (0) target = $region25
    $region24: #{tpu_custom_call.1} parent=1 // pred_region
      %s52 = ssub.s32 16, 16
      %53 = vsyncadd [#allocation6], %s52
      %56 = dma.hbm_to_smem %s5, 16, [#allocation8], [#allocation6]
    $region25: #{tpu_custom_call.1} parent=1 // pred_fallthru
      _
    // Predicated region
    $region26: #{tpu_custom_call.1} parent=1 // pred_check
      _
    $region27: #{tpu_custom_call.1} parent=1 // pred_check_branch
      %58 = sbr.rel (0) target = $region29
    $region28: #{tpu_custom_call.1} parent=1 // pred_region
      %s60 = ssub.s32 16, 16
      %61 = vsyncadd [#allocation10], %s60
      %64 = dma.hbm_to_smem %s6, 16, [#allocation9], [#allocation10]
    $region29: #{tpu_custom_call.1} parent=1 // pred_fallthru
      _
    // Predicated region
    $region30: #{tpu_custom_call.1} parent=1 // pred_check
      _
    $region31: #{tpu_custom_call.1} parent=1 // pred_check_branch
      %66 = sbr.rel (0) target = $region33
    $region32: #{tpu_custom_call.1} parent=1 // pred_region
      _
    $region33: #{tpu_custom_call.1} parent=1 // pred_fallthru
      _
    // Predicated region
    $region34: #{tpu_custom_call.1} parent=1 // pred_check
      _
    $region35: #{tpu_custom_call.1} parent=1 // pred_check_branch
      %68 = sbr.rel (0) target = $region37
    $region36: #{tpu_custom_call.1} parent=1 // pred_region
      %s70 = ssub.s32 128, 128
      %71 = vsyncadd [#allocation12], %s70
      %s73 = sshll.u32 %s8, 4
      %s74 = int_to_ptr.vmem [resolvable:$true] %s73
      %76 = dma.vmem_to_smem %s74, 128, [#allocation11], [#allocation12]
    $region37: #{tpu_custom_call.1} parent=1 // pred_fallthru
      _
    // Predicated region
    $region38: #{tpu_custom_call.1} parent=1 // pred_check
      _
    $region39: #{tpu_custom_call.1} parent=1 // pred_check_branch
      %78 = sbr.rel (0) target = $region41
    $region40: #{tpu_custom_call.1} parent=1 // pred_region
      %s80 = ssub.s32 16, 16
      %81 = vsyncadd [#allocation12], %s80
      %s83 = sshll.u32 %s9, 4
      %s84 = int_to_ptr.vmem [resolvable:$true] %s83
      %86 = dma.vmem_to_smem %s84, 16, [#allocation13], [#allocation12]
    $region41: #{tpu_custom_call.1} parent=1 // pred_fallthru
      _
    // Predicated region
    $region42: #{tpu_custom_call.1} parent=1 // pred_check
      _
    $region43: #{tpu_custom_call.1} parent=1 // pred_check_branch
      %88 = sbr.rel (0) target = $region45
    $region44: #{tpu_custom_call.1} parent=1 // pred_region
      %s90 = ssub.s32 16, 16
      %91 = vsyncadd [#allocation15], %s90
      %s93 = sshll.u32 %s10, 4
      %s94 = int_to_ptr.vmem [resolvable:$true] %s93
      %96 = dma.vmem_to_smem %s94, 16, [#allocation14], [#allocation15]
    $region45: #{tpu_custom_call.1} parent=1 // pred_fallthru
      _
    // Predicated region
    $region46: #{tpu_custom_call.1} parent=1 // pred_check
      _
    $region47: #{tpu_custom_call.1} parent=1 // pred_check_branch
      %98 = sbr.rel (0) target = $region49
    $region48: #{tpu_custom_call.1} parent=1 // pred_region
      _
    $region49: #{tpu_custom_call.1} parent=1 // pred_fallthru
      _
    // Predicated region
    $region50: #{tpu_custom_call.1} parent=1 // pred_check
      _
    $region51: #{tpu_custom_call.1} parent=1 // pred_check_branch
      %100 = sbr.rel (0) target = $region53
    $region52: #{tpu_custom_call.1} parent=1 // pred_region
      _
    $region53: #{tpu_custom_call.1} parent=1 // pred_fallthru
      _
    // Predicated region
    $region54: #{tpu_custom_call.1} parent=1 // pred_check
      _
    $region55: #{tpu_custom_call.1} parent=1 // pred_check_branch
      %102 = sbr.rel (0) target = $region57
    $region56: #{tpu_custom_call.1} parent=1 // pred_region
      _
    $region57: #{tpu_custom_call.1} parent=1 // pred_fallthru
      _
    // Predicated region
    $region58: #{tpu_custom_call.1} parent=1 // pred_check
      _
    $region59: #{tpu_custom_call.1} parent=1 // pred_check_branch
      %104 = sbr.rel (0) target = $region61
    $region60: #{tpu_custom_call.1} parent=1 // pred_region
      _
    $region61: #{tpu_custom_call.1} parent=1 // pred_fallthru
      _
    // Predicated region
    $region62: #{tpu_custom_call.1} parent=1 // pred_check
      _
    $region63: #{tpu_custom_call.1} parent=1 // pred_check_branch
      %106 = sbr.rel (0) target = $region65
    $region64: #{tpu_custom_call.1} parent=1 // pred_region
      _
    $region65: #{tpu_custom_call.1} parent=1 // pred_fallthru
      _
    // Predicated region
    $region66: #{tpu_custom_call.1} parent=1 // pred_check
      _
    $region67: #{tpu_custom_call.1} parent=1 // pred_check_branch
      %108 = sbr.rel (0) target = $region69
    $region68: #{tpu_custom_call.1} parent=1 // pred_region
      _
    $region69: #{tpu_custom_call.1} parent=1 // pred_fallthru
      _
    // Predicated region
    $region70: #{tpu_custom_call.1} parent=1 // pred_check
      _
    $region71: #{tpu_custom_call.1} parent=1 // pred_check_branch
      %110 = sbr.rel (0) target = $region73
    $region72: #{tpu_custom_call.1} parent=1 // pred_region
      _
    $region73: #{tpu_custom_call.1} parent=1 // pred_fallthru
      _
    // Predicated region
    $region74: #{tpu_custom_call.1} parent=1 // pred_check
      _
    $region75: #{tpu_custom_call.1} parent=1 // pred_check_branch
      %112 = sbr.rel (0) target = $region77
    $region76: #{tpu_custom_call.1} parent=1 // pred_region
      %113 = dma.done [#allocation7], 128
    $region77: #{tpu_custom_call.1} parent=1 // pred_fallthru
      _
    // Predicated region
    $region78: #{tpu_custom_call.1} parent=1 // pred_check
      _
    $region79: #{tpu_custom_call.1} parent=1 // pred_check_branch
      %115 = sbr.rel (0) target = $region81
    $region80: #{tpu_custom_call.1} parent=1 // pred_region
      %116 = dma.done [#allocation6], 16
    $region81: #{tpu_custom_call.1} parent=1 // pred_fallthru
      _
    // Predicated region
    $region82: #{tpu_custom_call.1} parent=1 // pred_check
      _
    $region83: #{tpu_custom_call.1} parent=1 // pred_check_branch
      %118 = sbr.rel (0) target = $region85
    $region84: #{tpu_custom_call.1} parent=1 // pred_region
      %119 = dma.done [#allocation10], 16
    $region85: #{tpu_custom_call.1} parent=1 // pred_fallthru
      _
    // Predicated region
    $region86: #{tpu_custom_call.1} parent=1 // pred_check
      _
    $region87: #{tpu_custom_call.1} parent=1 // pred_check_branch
      %121 = sbr.rel (0) target = $region89
    $region88: #{tpu_custom_call.1} parent=1 // pred_region
      %122 = dma.done [#allocation12], 128
    $region89: #{tpu_custom_call.1} parent=1 // pred_fallthru
      _
    // Predicated region
    $region90: #{tpu_custom_call.1} parent=1 // pred_check
      _
    $region91: #{tpu_custom_call.1} parent=1 // pred_check_branch
      %124 = sbr.rel (0) target = $region93
    $region92: #{tpu_custom_call.1} parent=1 // pred_region
      %125 = dma.done [#allocation12], 16
    $region93: #{tpu_custom_call.1} parent=1 // pred_fallthru
      _
    // Predicated region
    $region94: #{tpu_custom_call.1} parent=1 // pred_check
      _
    $region95: #{tpu_custom_call.1} parent=1 // pred_check_branch
      %127 = sbr.rel (0) target = $region97
    $region96: #{tpu_custom_call.1} parent=1 // pred_region
      %128 = dma.done [#allocation15], 16
    $region97: #{tpu_custom_call.1} parent=1 // pred_fallthru
      _
    %129 = sfence
    %v130 = vld [vmem:[%s0] sm:$0xff]
    %v131 = vld [vmem:[%s2] sm:$0xff]
    %v132 = vld [vmem:[%s1] sm:$0xff]
    %s133 = scalar_lea.vmem %s1, 8
    %v134 = vld [vmem:[%s133] sm:$0xff]
    %s135 = scalar_lea.vmem %s1, 16
    %v136 = vld [vmem:[%s135] sm:$0xff]
    %s137 = scalar_lea.vmem %s1, 24
    %v138 = vld [vmem:[%s137] sm:$0xff]
    %s139 = scalar_lea.vmem %s1, 32
    %v140 = vld [vmem:[%s139] sm:$0xff]
    %s141 = sld [smem:[#allocation4]]
    %v142 = vstv %s141
    %v143 = vmul.f32 %v132, %v142
    %s144 = sld [smem:[#allocation8]]
    %v145 = vstv %s144
    %v146 = vadd.f32 %v143, %v145
    %s147 = sld [smem:[#allocation4 + $0x80]]
    %v148 = vstv %s147
    %v149 = vmul.f32 %v134, %v148
    %v150 = vadd.f32 %v146, %v149
    %s151 = sld [smem:[#allocation4 + $0x100]]
    %v152 = vstv %s151
    %v153 = vmul.f32 %v136, %v152
    %v154 = vadd.f32 %v150, %v153
    %s155 = sld [smem:[#allocation4 + $0x180]]
    %v156 = vstv %s155
    %v157 = vmul.f32 %v138, %v156
    %v158 = vadd.f32 %v154, %v157
    %s159 = sld [smem:[#allocation4 + $0x200]]
    %v160 = vstv %s159
    %v161 = vmul.f32 %v140, %v160
    %v162 = vadd.f32 %v158, %v161
    %v163 = vmax.f32 %v162, 0.0
    %s164 = sld [smem:[#allocation9]]
    %v165 = vstv %s164
    %v166 = vmul.f32 %v163, %v165
    %s167 = sld [smem:[#allocation4 + $0x1]]
    %v168 = vstv %s167
    %v169 = vmul.f32 %v132, %v168
    %s170 = sld [smem:[#allocation8 + $0x1]]
    %v171 = vstv %s170
    %v172 = vadd.f32 %v169, %v171
    %s173 = sld [smem:[#allocation4 + $0x81]]
    %v174 = vstv %s173
    %v175 = vmul.f32 %v134, %v174
    %v176 = vadd.f32 %v172, %v175
    %s177 = sld [smem:[#allocation4 + $0x101]]
    %v178 = vstv %s177
    %v179 = vmul.f32 %v136, %v178
    %v180 = vadd.f32 %v176, %v179
    %s181 = sld [smem:[#allocation4 + $0x181]]
    %v182 = vstv %s181
    %v183 = vmul.f32 %v138, %v182
    %v184 = vadd.f32 %v180, %v183
    %s185 = sld [smem:[#allocation4 + $0x201]]
    %v186 = vstv %s185
    %v187 = vmul.f32 %v140, %v186
    %v188 = vadd.f32 %v184, %v187
    %v189 = vmax.f32 %v188, 0.0
    %s190 = sld [smem:[#allocation9 + $0x1]]
    %v191 = vstv %s190
    %v192 = vmul.f32 %v189, %v191
    %v193 = vadd.f32 %v166, %v192
    %s194 = sld [smem:[#allocation4 + $0x2]]
    %v195 = vstv %s194
    %v196 = vmul.f32 %v132, %v195
    %s197 = sld [smem:[#allocation8 + $0x2]]
    %v198 = vstv %s197
    %v199 = vadd.f32 %v196, %v198
    %s200 = sld [smem:[#allocation4 + $0x82]]
    %v201 = vstv %s200
    %v202 = vmul.f32 %v134, %v201
    %v203 = vadd.f32 %v199, %v202
    %s204 = sld [smem:[#allocation4 + $0x102]]
    %v205 = vstv %s204
    %v206 = vmul.f32 %v136, %v205
    %v207 = vadd.f32 %v203, %v206
    %s208 = sld [smem:[#allocation4 + $0x182]]
    %v209 = vstv %s208
    %v210 = vmul.f32 %v138, %v209
    %v211 = vadd.f32 %v207, %v210
    %s212 = sld [smem:[#allocation4 + $0x202]]
    %v213 = vstv %s212
    %v214 = vmul.f32 %v140, %v213
    %v215 = vadd.f32 %v211, %v214
    %v216 = vmax.f32 %v215, 0.0
    %s217 = sld [smem:[#allocation9 + $0x2]]
    %v218 = vstv %s217
    %v219 = vmul.f32 %v216, %v218
    %v220 = vadd.f32 %v193, %v219
    %s221 = sld [smem:[#allocation4 + $0x3]]
    %v222 = vstv %s221
    %v223 = vmul.f32 %v132, %v222
    %s224 = sld [smem:[#allocation8 + $0x3]]
    %v225 = vstv %s224
    %v226 = vadd.f32 %v223, %v225
    %s227 = sld [smem:[#allocation4 + $0x83]]
    %v228 = vstv %s227
    %v229 = vmul.f32 %v134, %v228
    %v230 = vadd.f32 %v226, %v229
    %s231 = sld [smem:[#allocation4 + $0x103]]
    %v232 = vstv %s231
    %v233 = vmul.f32 %v136, %v232
    %v234 = vadd.f32 %v230, %v233
    %s235 = sld [smem:[#allocation4 + $0x183]]
    %v236 = vstv %s235
    %v237 = vmul.f32 %v138, %v236
    %v238 = vadd.f32 %v234, %v237
    %s239 = sld [smem:[#allocation4 + $0x203]]
    %v240 = vstv %s239
    %v241 = vmul.f32 %v140, %v240
    %v242 = vadd.f32 %v238, %v241
    %v243 = vmax.f32 %v242, 0.0
    %s244 = sld [smem:[#allocation9 + $0x3]]
    %v245 = vstv %s244
    %v246 = vmul.f32 %v243, %v245
    %v247 = vadd.f32 %v220, %v246
    %s248 = sld [smem:[#allocation4 + $0x4]]
    %v249 = vstv %s248
    %v250 = vmul.f32 %v132, %v249
    %s251 = sld [smem:[#allocation8 + $0x4]]
    %v252 = vstv %s251
    %v253 = vadd.f32 %v250, %v252
    %s254 = sld [smem:[#allocation4 + $0x84]]
    %v255 = vstv %s254
    %v256 = vmul.f32 %v134, %v255
    %v257 = vadd.f32 %v253, %v256
    %s258 = sld [smem:[#allocation4 + $0x104]]
    %v259 = vstv %s258
    %v260 = vmul.f32 %v136, %v259
    %v261 = vadd.f32 %v257, %v260
    %s262 = sld [smem:[#allocation4 + $0x184]]
    %v263 = vstv %s262
    %v264 = vmul.f32 %v138, %v263
    %v265 = vadd.f32 %v261, %v264
    %s266 = sld [smem:[#allocation4 + $0x204]]
    %v267 = vstv %s266
    %v268 = vmul.f32 %v140, %v267
    %v269 = vadd.f32 %v265, %v268
    %v270 = vmax.f32 %v269, 0.0
    %s271 = sld [smem:[#allocation9 + $0x4]]
    %v272 = vstv %s271
    %v273 = vmul.f32 %v270, %v272
    %v274 = vadd.f32 %v247, %v273
    %s275 = sld [smem:[#allocation4 + $0x5]]
    %v276 = vstv %s275
    %v277 = vmul.f32 %v132, %v276
    %s278 = sld [smem:[#allocation8 + $0x5]]
    %v279 = vstv %s278
    %v280 = vadd.f32 %v277, %v279
    %s281 = sld [smem:[#allocation4 + $0x85]]
    %v282 = vstv %s281
    %v283 = vmul.f32 %v134, %v282
    %v284 = vadd.f32 %v280, %v283
    %s285 = sld [smem:[#allocation4 + $0x105]]
    %v286 = vstv %s285
    %v287 = vmul.f32 %v136, %v286
    %v288 = vadd.f32 %v284, %v287
    %s289 = sld [smem:[#allocation4 + $0x185]]
    %v290 = vstv %s289
    %v291 = vmul.f32 %v138, %v290
    %v292 = vadd.f32 %v288, %v291
    %s293 = sld [smem:[#allocation4 + $0x205]]
    %v294 = vstv %s293
    %v295 = vmul.f32 %v140, %v294
    %v296 = vadd.f32 %v292, %v295
    %v297 = vmax.f32 %v296, 0.0
    %s298 = sld [smem:[#allocation9 + $0x5]]
    %v299 = vstv %s298
    %v300 = vmul.f32 %v297, %v299
    %v301 = vadd.f32 %v274, %v300
    %s302 = sld [smem:[#allocation4 + $0x6]]
    %v303 = vstv %s302
    %v304 = vmul.f32 %v132, %v303
    %s305 = sld [smem:[#allocation8 + $0x6]]
    %v306 = vstv %s305
    %v307 = vadd.f32 %v304, %v306
    %s308 = sld [smem:[#allocation4 + $0x86]]
    %v309 = vstv %s308
    %v310 = vmul.f32 %v134, %v309
    %v311 = vadd.f32 %v307, %v310
    %s312 = sld [smem:[#allocation4 + $0x106]]
    %v313 = vstv %s312
    %v314 = vmul.f32 %v136, %v313
    %v315 = vadd.f32 %v311, %v314
    %s316 = sld [smem:[#allocation4 + $0x186]]
    %v317 = vstv %s316
    %v318 = vmul.f32 %v138, %v317
    %v319 = vadd.f32 %v315, %v318
    %s320 = sld [smem:[#allocation4 + $0x206]]
    %v321 = vstv %s320
    %v322 = vmul.f32 %v140, %v321
    %v323 = vadd.f32 %v319, %v322
    %v324 = vmax.f32 %v323, 0.0
    %s325 = sld [smem:[#allocation9 + $0x6]]
    %v326 = vstv %s325
    %v327 = vmul.f32 %v324, %v326
    %v328 = vadd.f32 %v301, %v327
    %s329 = sld [smem:[#allocation4 + $0x7]]
    %v330 = vstv %s329
    %v331 = vmul.f32 %v132, %v330
    %s332 = sld [smem:[#allocation8 + $0x7]]
    %v333 = vstv %s332
    %v334 = vadd.f32 %v331, %v333
    %s335 = sld [smem:[#allocation4 + $0x87]]
    %v336 = vstv %s335
    %v337 = vmul.f32 %v134, %v336
    %v338 = vadd.f32 %v334, %v337
    %s339 = sld [smem:[#allocation4 + $0x107]]
    %v340 = vstv %s339
    %v341 = vmul.f32 %v136, %v340
    %v342 = vadd.f32 %v338, %v341
    %s343 = sld [smem:[#allocation4 + $0x187]]
    %v344 = vstv %s343
    %v345 = vmul.f32 %v138, %v344
    %v346 = vadd.f32 %v342, %v345
    %s347 = sld [smem:[#allocation4 + $0x207]]
    %v348 = vstv %s347
    %v349 = vmul.f32 %v140, %v348
    %v350 = vadd.f32 %v346, %v349
    %v351 = vmax.f32 %v350, 0.0
    %s352 = sld [smem:[#allocation9 + $0x7]]
    %v353 = vstv %s352
    %v354 = vmul.f32 %v351, %v353
    %v355 = vadd.f32 %v328, %v354
    %s356 = sld [smem:[#allocation4 + $0x8]]
    %v357 = vstv %s356
    %v358 = vmul.f32 %v132, %v357
    %s359 = sld [smem:[#allocation8 + $0x8]]
    %v360 = vstv %s359
    %v361 = vadd.f32 %v358, %v360
    %s362 = sld [smem:[#allocation4 + $0x88]]
    %v363 = vstv %s362
    %v364 = vmul.f32 %v134, %v363
    %v365 = vadd.f32 %v361, %v364
    %s366 = sld [smem:[#allocation4 + $0x108]]
    %v367 = vstv %s366
    %v368 = vmul.f32 %v136, %v367
    %v369 = vadd.f32 %v365, %v368
    %s370 = sld [smem:[#allocation4 + $0x188]]
    %v371 = vstv %s370
    %v372 = vmul.f32 %v138, %v371
    %v373 = vadd.f32 %v369, %v372
    %s374 = sld [smem:[#allocation4 + $0x208]]
    %v375 = vstv %s374
    %v376 = vmul.f32 %v140, %v375
    %v377 = vadd.f32 %v373, %v376
    %v378 = vmax.f32 %v377, 0.0
    %s379 = sld [smem:[#allocation9 + $0x8]]
    %v380 = vstv %s379
    %v381 = vmul.f32 %v378, %v380
    %v382 = vadd.f32 %v355, %v381
    %s383 = sld [smem:[#allocation4 + $0x9]]
    %v384 = vstv %s383
    %v385 = vmul.f32 %v132, %v384
    %s386 = sld [smem:[#allocation8 + $0x9]]
    %v387 = vstv %s386
    %v388 = vadd.f32 %v385, %v387
    %s389 = sld [smem:[#allocation4 + $0x89]]
    %v390 = vstv %s389
    %v391 = vmul.f32 %v134, %v390
    %v392 = vadd.f32 %v388, %v391
    %s393 = sld [smem:[#allocation4 + $0x109]]
    %v394 = vstv %s393
    %v395 = vmul.f32 %v136, %v394
    %v396 = vadd.f32 %v392, %v395
    %s397 = sld [smem:[#allocation4 + $0x189]]
    %v398 = vstv %s397
    %v399 = vmul.f32 %v138, %v398
    %v400 = vadd.f32 %v396, %v399
    %s401 = sld [smem:[#allocation4 + $0x209]]
    %v402 = vstv %s401
    %v403 = vmul.f32 %v140, %v402
    %v404 = vadd.f32 %v400, %v403
    %v405 = vmax.f32 %v404, 0.0
    %s406 = sld [smem:[#allocation9 + $0x9]]
    %v407 = vstv %s406
    %v408 = vmul.f32 %v405, %v407
    %v409 = vadd.f32 %v382, %v408
    %s410 = sld [smem:[#allocation4 + $0xa]]
    %v411 = vstv %s410
    %v412 = vmul.f32 %v132, %v411
    %s413 = sld [smem:[#allocation8 + $0xa]]
    %v414 = vstv %s413
    %v415 = vadd.f32 %v412, %v414
    %s416 = sld [smem:[#allocation4 + $0x8a]]
    %v417 = vstv %s416
    %v418 = vmul.f32 %v134, %v417
    %v419 = vadd.f32 %v415, %v418
    %s420 = sld [smem:[#allocation4 + $0x10a]]
    %v421 = vstv %s420
    %v422 = vmul.f32 %v136, %v421
    %v423 = vadd.f32 %v419, %v422
    %s424 = sld [smem:[#allocation4 + $0x18a]]
    %v425 = vstv %s424
    %v426 = vmul.f32 %v138, %v425
    %v427 = vadd.f32 %v423, %v426
    %s428 = sld [smem:[#allocation4 + $0x20a]]
    %v429 = vstv %s428
    %v430 = vmul.f32 %v140, %v429
    %v431 = vadd.f32 %v427, %v430
    %v432 = vmax.f32 %v431, 0.0
    %s433 = sld [smem:[#allocation9 + $0xa]]
    %v434 = vstv %s433
    %v435 = vmul.f32 %v432, %v434
    %v436 = vadd.f32 %v409, %v435
    %s437 = sld [smem:[#allocation4 + $0xb]]
    %v438 = vstv %s437
    %v439 = vmul.f32 %v132, %v438
    %s440 = sld [smem:[#allocation8 + $0xb]]
    %v441 = vstv %s440
    %v442 = vadd.f32 %v439, %v441
    %s443 = sld [smem:[#allocation4 + $0x8b]]
    %v444 = vstv %s443
    %v445 = vmul.f32 %v134, %v444
    %v446 = vadd.f32 %v442, %v445
    %s447 = sld [smem:[#allocation4 + $0x10b]]
    %v448 = vstv %s447
    %v449 = vmul.f32 %v136, %v448
    %v450 = vadd.f32 %v446, %v449
    %s451 = sld [smem:[#allocation4 + $0x18b]]
    %v452 = vstv %s451
    %v453 = vmul.f32 %v138, %v452
    %v454 = vadd.f32 %v450, %v453
    %s455 = sld [smem:[#allocation4 + $0x20b]]
    %v456 = vstv %s455
    %v457 = vmul.f32 %v140, %v456
    %v458 = vadd.f32 %v454, %v457
    %v459 = vmax.f32 %v458, 0.0
    %s460 = sld [smem:[#allocation9 + $0xb]]
    %v461 = vstv %s460
    %v462 = vmul.f32 %v459, %v461
    %v463 = vadd.f32 %v436, %v462
    %s464 = sld [smem:[#allocation4 + $0xc]]
    %v465 = vstv %s464
    %v466 = vmul.f32 %v132, %v465
    %s467 = sld [smem:[#allocation8 + $0xc]]
    %v468 = vstv %s467
    %v469 = vadd.f32 %v466, %v468
    %s470 = sld [smem:[#allocation4 + $0x8c]]
    %v471 = vstv %s470
    %v472 = vmul.f32 %v134, %v471
    %v473 = vadd.f32 %v469, %v472
    %s474 = sld [smem:[#allocation4 + $0x10c]]
    %v475 = vstv %s474
    %v476 = vmul.f32 %v136, %v475
    %v477 = vadd.f32 %v473, %v476
    %s478 = sld [smem:[#allocation4 + $0x18c]]
    %v479 = vstv %s478
    %v480 = vmul.f32 %v138, %v479
    %v481 = vadd.f32 %v477, %v480
    %s482 = sld [smem:[#allocation4 + $0x20c]]
    %v483 = vstv %s482
    %v484 = vmul.f32 %v140, %v483
    %v485 = vadd.f32 %v481, %v484
    %v486 = vmax.f32 %v485, 0.0
    %s487 = sld [smem:[#allocation9 + $0xc]]
    %v488 = vstv %s487
    %v489 = vmul.f32 %v486, %v488
    %v490 = vadd.f32 %v463, %v489
    %s491 = sld [smem:[#allocation4 + $0xd]]
    %v492 = vstv %s491
    %v493 = vmul.f32 %v132, %v492
    %s494 = sld [smem:[#allocation8 + $0xd]]
    %v495 = vstv %s494
    %v496 = vadd.f32 %v493, %v495
    %s497 = sld [smem:[#allocation4 + $0x8d]]
    %v498 = vstv %s497
    %v499 = vmul.f32 %v134, %v498
    %v500 = vadd.f32 %v496, %v499
    %s501 = sld [smem:[#allocation4 + $0x10d]]
    %v502 = vstv %s501
    %v503 = vmul.f32 %v136, %v502
    %v504 = vadd.f32 %v500, %v503
    %s505 = sld [smem:[#allocation4 + $0x18d]]
    %v506 = vstv %s505
    %v507 = vmul.f32 %v138, %v506
    %v508 = vadd.f32 %v504, %v507
    %s509 = sld [smem:[#allocation4 + $0x20d]]
    %v510 = vstv %s509
    %v511 = vmul.f32 %v140, %v510
    %v512 = vadd.f32 %v508, %v511
    %v513 = vmax.f32 %v512, 0.0
    %s514 = sld [smem:[#allocation9 + $0xd]]
    %v515 = vstv %s514
    %v516 = vmul.f32 %v513, %v515
    %v517 = vadd.f32 %v490, %v516
    %s518 = sld [smem:[#allocation4 + $0xe]]
    %v519 = vstv %s518
    %v520 = vmul.f32 %v132, %v519
    %s521 = sld [smem:[#allocation8 + $0xe]]
    %v522 = vstv %s521
    %v523 = vadd.f32 %v520, %v522
    %s524 = sld [smem:[#allocation4 + $0x8e]]
    %v525 = vstv %s524
    %v526 = vmul.f32 %v134, %v525
    %v527 = vadd.f32 %v523, %v526
    %s528 = sld [smem:[#allocation4 + $0x10e]]
    %v529 = vstv %s528
    %v530 = vmul.f32 %v136, %v529
    %v531 = vadd.f32 %v527, %v530
    %s532 = sld [smem:[#allocation4 + $0x18e]]
    %v533 = vstv %s532
    %v534 = vmul.f32 %v138, %v533
    %v535 = vadd.f32 %v531, %v534
    %s536 = sld [smem:[#allocation4 + $0x20e]]
    %v537 = vstv %s536
    %v538 = vmul.f32 %v140, %v537
    %v539 = vadd.f32 %v535, %v538
    %v540 = vmax.f32 %v539, 0.0
    %s541 = sld [smem:[#allocation9 + $0xe]]
    %v542 = vstv %s541
    %v543 = vmul.f32 %v540, %v542
    %v544 = vadd.f32 %v517, %v543
    %s545 = sld [smem:[#allocation4 + $0xf]]
    %v546 = vstv %s545
    %v547 = vmul.f32 %v132, %v546
    %s548 = sld [smem:[#allocation8 + $0xf]]
    %v549 = vstv %s548
    %v550 = vadd.f32 %v547, %v549
    %s551 = sld [smem:[#allocation4 + $0x8f]]
    %v552 = vstv %s551
    %v553 = vmul.f32 %v134, %v552
    %v554 = vadd.f32 %v550, %v553
    %s555 = sld [smem:[#allocation4 + $0x10f]]
    %v556 = vstv %s555
    %v557 = vmul.f32 %v136, %v556
    %v558 = vadd.f32 %v554, %v557
    %s559 = sld [smem:[#allocation4 + $0x18f]]
    %v560 = vstv %s559
    %v561 = vmul.f32 %v138, %v560
    %v562 = vadd.f32 %v558, %v561
    %s563 = sld [smem:[#allocation4 + $0x20f]]
    %v564 = vstv %s563
    %v565 = vmul.f32 %v140, %v564
    %v566 = vadd.f32 %v562, %v565
    %v567 = vmax.f32 %v566, 0.0
    %s568 = sld [smem:[#allocation9 + $0xf]]
    %v569 = vstv %s568
    %v570 = vmul.f32 %v567, %v569
    %v571 = vadd.f32 %v544, %v570
    %s572 = sld [smem:[#allocation2]]
    %v573 = vstv %s572
    %v574 = vadd.f32 %v571, %v573
    %v575 = vxor.u32 %v574, 2147483648
    %v576 = vmul.f32 %v575, 1.442695
    %v577 = vpow.pop %v576
    %v578 = vadd.f32 %v577, 1.0
    %v579 = vrcp.pop %v578
    %v580 = vmul.f32 1.0, %v579
    %v581 = vmul.f32 %v580, %v131
    %s582 = sld [smem:[#allocation11]]
    %v583 = vstv %s582
    %v584 = vmul.f32 %v132, %v583
    %s585 = sld [smem:[#allocation13]]
    %v586 = vstv %s585
    %v587 = vadd.f32 %v584, %v586
    %s588 = sld [smem:[#allocation11 + $0x80]]
    %v589 = vstv %s588
    %v590 = vmul.f32 %v134, %v589
    %v591 = vadd.f32 %v587, %v590
    %s592 = sld [smem:[#allocation11 + $0x100]]
    %v593 = vstv %s592
    %v594 = vmul.f32 %v136, %v593
    %v595 = vadd.f32 %v591, %v594
    %s596 = sld [smem:[#allocation11 + $0x180]]
    %v597 = vstv %s596
    %v598 = vmul.f32 %v138, %v597
    %v599 = vadd.f32 %v595, %v598
    %s600 = sld [smem:[#allocation11 + $0x200]]
    %v601 = vstv %s600
    %v602 = vmul.f32 %v140, %v601
    %v603 = vadd.f32 %v599, %v602
    %v604 = vmax.f32 %v603, 0.0
    %s605 = sld [smem:[#allocation14]]
    %v606 = vstv %s605
    %v607 = vmul.f32 %v604, %v606
    %s608 = sld [smem:[#allocation11 + $0x1]]
    %v609 = vstv %s608
    %v610 = vmul.f32 %v132, %v609
    %s611 = sld [smem:[#allocation13 + $0x1]]
    %v612 = vstv %s611
    %v613 = vadd.f32 %v610, %v612
    %s614 = sld [smem:[#allocation11 + $0x81]]
    %v615 = vstv %s614
    %v616 = vmul.f32 %v134, %v615
    %v617 = vadd.f32 %v613, %v616
    %s618 = sld [smem:[#allocation11 + $0x101]]
    %v619 = vstv %s618
    %v620 = vmul.f32 %v136, %v619
    %v621 = vadd.f32 %v617, %v620
    %s622 = sld [smem:[#allocation11 + $0x181]]
    %v623 = vstv %s622
    %v624 = vmul.f32 %v138, %v623
    %v625 = vadd.f32 %v621, %v624
    %s626 = sld [smem:[#allocation11 + $0x201]]
    %v627 = vstv %s626
    %v628 = vmul.f32 %v140, %v627
    %v629 = vadd.f32 %v625, %v628
    %v630 = vmax.f32 %v629, 0.0
    %s631 = sld [smem:[#allocation14 + $0x1]]
    %v632 = vstv %s631
    %v633 = vmul.f32 %v630, %v632
    %v634 = vadd.f32 %v607, %v633
    %s635 = sld [smem:[#allocation11 + $0x2]]
    %v636 = vstv %s635
    %v637 = vmul.f32 %v132, %v636
    %s638 = sld [smem:[#allocation13 + $0x2]]
    %v639 = vstv %s638
    %v640 = vadd.f32 %v637, %v639
    %s641 = sld [smem:[#allocation11 + $0x82]]
    %v642 = vstv %s641
    %v643 = vmul.f32 %v134, %v642
    %v644 = vadd.f32 %v640, %v643
    %s645 = sld [smem:[#allocation11 + $0x102]]
    %v646 = vstv %s645
    %v647 = vmul.f32 %v136, %v646
    %v648 = vadd.f32 %v644, %v647
    %s649 = sld [smem:[#allocation11 + $0x182]]
    %v650 = vstv %s649
    %v651 = vmul.f32 %v138, %v650
    %v652 = vadd.f32 %v648, %v651
    %s653 = sld [smem:[#allocation11 + $0x202]]
    %v654 = vstv %s653
    %v655 = vmul.f32 %v140, %v654
    %v656 = vadd.f32 %v652, %v655
    %v657 = vmax.f32 %v656, 0.0
    %s658 = sld [smem:[#allocation14 + $0x2]]
    %v659 = vstv %s658
    %v660 = vmul.f32 %v657, %v659
    %v661 = vadd.f32 %v634, %v660
    %s662 = sld [smem:[#allocation11 + $0x3]]
    %v663 = vstv %s662
    %v664 = vmul.f32 %v132, %v663
    %s665 = sld [smem:[#allocation13 + $0x3]]
    %v666 = vstv %s665
    %v667 = vadd.f32 %v664, %v666
    %s668 = sld [smem:[#allocation11 + $0x83]]
    %v669 = vstv %s668
    %v670 = vmul.f32 %v134, %v669
    %v671 = vadd.f32 %v667, %v670
    %s672 = sld [smem:[#allocation11 + $0x103]]
    %v673 = vstv %s672
    %v674 = vmul.f32 %v136, %v673
    %v675 = vadd.f32 %v671, %v674
    %s676 = sld [smem:[#allocation11 + $0x183]]
    %v677 = vstv %s676
    %v678 = vmul.f32 %v138, %v677
    %v679 = vadd.f32 %v675, %v678
    %s680 = sld [smem:[#allocation11 + $0x203]]
    %v681 = vstv %s680
    %v682 = vmul.f32 %v140, %v681
    %v683 = vadd.f32 %v679, %v682
    %v684 = vmax.f32 %v683, 0.0
    %s685 = sld [smem:[#allocation14 + $0x3]]
    %v686 = vstv %s685
    %v687 = vmul.f32 %v684, %v686
    %v688 = vadd.f32 %v661, %v687
    %s689 = sld [smem:[#allocation11 + $0x4]]
    %v690 = vstv %s689
    %v691 = vmul.f32 %v132, %v690
    %s692 = sld [smem:[#allocation13 + $0x4]]
    %v693 = vstv %s692
    %v694 = vadd.f32 %v691, %v693
    %s695 = sld [smem:[#allocation11 + $0x84]]
    %v696 = vstv %s695
    %v697 = vmul.f32 %v134, %v696
    %v698 = vadd.f32 %v694, %v697
    %s699 = sld [smem:[#allocation11 + $0x104]]
    %v700 = vstv %s699
    %v701 = vmul.f32 %v136, %v700
    %v702 = vadd.f32 %v698, %v701
    %s703 = sld [smem:[#allocation11 + $0x184]]
    %v704 = vstv %s703
    %v705 = vmul.f32 %v138, %v704
    %v706 = vadd.f32 %v702, %v705
    %s707 = sld [smem:[#allocation11 + $0x204]]
    %v708 = vstv %s707
    %v709 = vmul.f32 %v140, %v708
    %v710 = vadd.f32 %v706, %v709
    %v711 = vmax.f32 %v710, 0.0
    %s712 = sld [smem:[#allocation14 + $0x4]]
    %v713 = vstv %s712
    %v714 = vmul.f32 %v711, %v713
    %v715 = vadd.f32 %v688, %v714
    %s716 = sld [smem:[#allocation11 + $0x5]]
    %v717 = vstv %s716
    %v718 = vmul.f32 %v132, %v717
    %s719 = sld [smem:[#allocation13 + $0x5]]
    %v720 = vstv %s719
    %v721 = vadd.f32 %v718, %v720
    %s722 = sld [smem:[#allocation11 + $0x85]]
    %v723 = vstv %s722
    %v724 = vmul.f32 %v134, %v723
    %v725 = vadd.f32 %v721, %v724
    %s726 = sld [smem:[#allocation11 + $0x105]]
    %v727 = vstv %s726
    %v728 = vmul.f32 %v136, %v727
    %v729 = vadd.f32 %v725, %v728
    %s730 = sld [smem:[#allocation11 + $0x185]]
    %v731 = vstv %s730
    %v732 = vmul.f32 %v138, %v731
    %v733 = vadd.f32 %v729, %v732
    %s734 = sld [smem:[#allocation11 + $0x205]]
    %v735 = vstv %s734
    %v736 = vmul.f32 %v140, %v735
    %v737 = vadd.f32 %v733, %v736
    %v738 = vmax.f32 %v737, 0.0
    %s739 = sld [smem:[#allocation14 + $0x5]]
    %v740 = vstv %s739
    %v741 = vmul.f32 %v738, %v740
    %v742 = vadd.f32 %v715, %v741
    %s743 = sld [smem:[#allocation11 + $0x6]]
    %v744 = vstv %s743
    %v745 = vmul.f32 %v132, %v744
    %s746 = sld [smem:[#allocation13 + $0x6]]
    %v747 = vstv %s746
    %v748 = vadd.f32 %v745, %v747
    %s749 = sld [smem:[#allocation11 + $0x86]]
    %v750 = vstv %s749
    %v751 = vmul.f32 %v134, %v750
    %v752 = vadd.f32 %v748, %v751
    %s753 = sld [smem:[#allocation11 + $0x106]]
    %v754 = vstv %s753
    %v755 = vmul.f32 %v136, %v754
    %v756 = vadd.f32 %v752, %v755
    %s757 = sld [smem:[#allocation11 + $0x186]]
    %v758 = vstv %s757
    %v759 = vmul.f32 %v138, %v758
    %v760 = vadd.f32 %v756, %v759
    %s761 = sld [smem:[#allocation11 + $0x206]]
    %v762 = vstv %s761
    %v763 = vmul.f32 %v140, %v762
    %v764 = vadd.f32 %v760, %v763
    %v765 = vmax.f32 %v764, 0.0
    %s766 = sld [smem:[#allocation14 + $0x6]]
    %v767 = vstv %s766
    %v768 = vmul.f32 %v765, %v767
    %v769 = vadd.f32 %v742, %v768
    %s770 = sld [smem:[#allocation11 + $0x7]]
    %v771 = vstv %s770
    %v772 = vmul.f32 %v132, %v771
    %s773 = sld [smem:[#allocation13 + $0x7]]
    %v774 = vstv %s773
    %v775 = vadd.f32 %v772, %v774
    %s776 = sld [smem:[#allocation11 + $0x87]]
    %v777 = vstv %s776
    %v778 = vmul.f32 %v134, %v777
    %v779 = vadd.f32 %v775, %v778
    %s780 = sld [smem:[#allocation11 + $0x107]]
    %v781 = vstv %s780
    %v782 = vmul.f32 %v136, %v781
    %v783 = vadd.f32 %v779, %v782
    %s784 = sld [smem:[#allocation11 + $0x187]]
    %v785 = vstv %s784
    %v786 = vmul.f32 %v138, %v785
    %v787 = vadd.f32 %v783, %v786
    %s788 = sld [smem:[#allocation11 + $0x207]]
    %v789 = vstv %s788
    %v790 = vmul.f32 %v140, %v789
    %v791 = vadd.f32 %v787, %v790
    %v792 = vmax.f32 %v791, 0.0
    %s793 = sld [smem:[#allocation14 + $0x7]]
    %v794 = vstv %s793
    %v795 = vmul.f32 %v792, %v794
    %v796 = vadd.f32 %v769, %v795
    %s797 = sld [smem:[#allocation11 + $0x8]]
    %v798 = vstv %s797
    %v799 = vmul.f32 %v132, %v798
    %s800 = sld [smem:[#allocation13 + $0x8]]
    %v801 = vstv %s800
    %v802 = vadd.f32 %v799, %v801
    %s803 = sld [smem:[#allocation11 + $0x88]]
    %v804 = vstv %s803
    %v805 = vmul.f32 %v134, %v804
    %v806 = vadd.f32 %v802, %v805
    %s807 = sld [smem:[#allocation11 + $0x108]]
    %v808 = vstv %s807
    %v809 = vmul.f32 %v136, %v808
    %v810 = vadd.f32 %v806, %v809
    %s811 = sld [smem:[#allocation11 + $0x188]]
    %v812 = vstv %s811
    %v813 = vmul.f32 %v138, %v812
    %v814 = vadd.f32 %v810, %v813
    %s815 = sld [smem:[#allocation11 + $0x208]]
    %v816 = vstv %s815
    %v817 = vmul.f32 %v140, %v816
    %v818 = vadd.f32 %v814, %v817
    %v819 = vmax.f32 %v818, 0.0
    %s820 = sld [smem:[#allocation14 + $0x8]]
    %v821 = vstv %s820
    %v822 = vmul.f32 %v819, %v821
    %v823 = vadd.f32 %v796, %v822
    %s824 = sld [smem:[#allocation11 + $0x9]]
    %v825 = vstv %s824
    %v826 = vmul.f32 %v132, %v825
    %s827 = sld [smem:[#allocation13 + $0x9]]
    %v828 = vstv %s827
    %v829 = vadd.f32 %v826, %v828
    %s830 = sld [smem:[#allocation11 + $0x89]]
    %v831 = vstv %s830
    %v832 = vmul.f32 %v134, %v831
    %v833 = vadd.f32 %v829, %v832
    %s834 = sld [smem:[#allocation11 + $0x109]]
    %v835 = vstv %s834
    %v836 = vmul.f32 %v136, %v835
    %v837 = vadd.f32 %v833, %v836
    %s838 = sld [smem:[#allocation11 + $0x189]]
    %v839 = vstv %s838
    %v840 = vmul.f32 %v138, %v839
    %v841 = vadd.f32 %v837, %v840
    %s842 = sld [smem:[#allocation11 + $0x209]]
    %v843 = vstv %s842
    %v844 = vmul.f32 %v140, %v843
    %v845 = vadd.f32 %v841, %v844
    %v846 = vmax.f32 %v845, 0.0
    %s847 = sld [smem:[#allocation14 + $0x9]]
    %v848 = vstv %s847
    %v849 = vmul.f32 %v846, %v848
    %v850 = vadd.f32 %v823, %v849
    %s851 = sld [smem:[#allocation11 + $0xa]]
    %v852 = vstv %s851
    %v853 = vmul.f32 %v132, %v852
    %s854 = sld [smem:[#allocation13 + $0xa]]
    %v855 = vstv %s854
    %v856 = vadd.f32 %v853, %v855
    %s857 = sld [smem:[#allocation11 + $0x8a]]
    %v858 = vstv %s857
    %v859 = vmul.f32 %v134, %v858
    %v860 = vadd.f32 %v856, %v859
    %s861 = sld [smem:[#allocation11 + $0x10a]]
    %v862 = vstv %s861
    %v863 = vmul.f32 %v136, %v862
    %v864 = vadd.f32 %v860, %v863
    %s865 = sld [smem:[#allocation11 + $0x18a]]
    %v866 = vstv %s865
    %v867 = vmul.f32 %v138, %v866
    %v868 = vadd.f32 %v864, %v867
    %s869 = sld [smem:[#allocation11 + $0x20a]]
    %v870 = vstv %s869
    %v871 = vmul.f32 %v140, %v870
    %v872 = vadd.f32 %v868, %v871
    %v873 = vmax.f32 %v872, 0.0
    %s874 = sld [smem:[#allocation14 + $0xa]]
    %v875 = vstv %s874
    %v876 = vmul.f32 %v873, %v875
    %v877 = vadd.f32 %v850, %v876
    %s878 = sld [smem:[#allocation11 + $0xb]]
    %v879 = vstv %s878
    %v880 = vmul.f32 %v132, %v879
    %s881 = sld [smem:[#allocation13 + $0xb]]
    %v882 = vstv %s881
    %v883 = vadd.f32 %v880, %v882
    %s884 = sld [smem:[#allocation11 + $0x8b]]
    %v885 = vstv %s884
    %v886 = vmul.f32 %v134, %v885
    %v887 = vadd.f32 %v883, %v886
    %s888 = sld [smem:[#allocation11 + $0x10b]]
    %v889 = vstv %s888
    %v890 = vmul.f32 %v136, %v889
    %v891 = vadd.f32 %v887, %v890
    %s892 = sld [smem:[#allocation11 + $0x18b]]
    %v893 = vstv %s892
    %v894 = vmul.f32 %v138, %v893
    %v895 = vadd.f32 %v891, %v894
    %s896 = sld [smem:[#allocation11 + $0x20b]]
    %v897 = vstv %s896
    %v898 = vmul.f32 %v140, %v897
    %v899 = vadd.f32 %v895, %v898
    %v900 = vmax.f32 %v899, 0.0
    %s901 = sld [smem:[#allocation14 + $0xb]]
    %v902 = vstv %s901
    %v903 = vmul.f32 %v900, %v902
    %v904 = vadd.f32 %v877, %v903
    %s905 = sld [smem:[#allocation11 + $0xc]]
    %v906 = vstv %s905
    %v907 = vmul.f32 %v132, %v906
    %s908 = sld [smem:[#allocation13 + $0xc]]
    %v909 = vstv %s908
    %v910 = vadd.f32 %v907, %v909
    %s911 = sld [smem:[#allocation11 + $0x8c]]
    %v912 = vstv %s911
    %v913 = vmul.f32 %v134, %v912
    %v914 = vadd.f32 %v910, %v913
    %s915 = sld [smem:[#allocation11 + $0x10c]]
    %v916 = vstv %s915
    %v917 = vmul.f32 %v136, %v916
    %v918 = vadd.f32 %v914, %v917
    %s919 = sld [smem:[#allocation11 + $0x18c]]
    %v920 = vstv %s919
    %v921 = vmul.f32 %v138, %v920
    %v922 = vadd.f32 %v918, %v921
    %s923 = sld [smem:[#allocation11 + $0x20c]]
    %v924 = vstv %s923
    %v925 = vmul.f32 %v140, %v924
    %v926 = vadd.f32 %v922, %v925
    %v927 = vmax.f32 %v926, 0.0
    %s928 = sld [smem:[#allocation14 + $0xc]]
    %v929 = vstv %s928
    %v930 = vmul.f32 %v927, %v929
    %v931 = vadd.f32 %v904, %v930
    %s932 = sld [smem:[#allocation11 + $0xd]]
    %v933 = vstv %s932
    %v934 = vmul.f32 %v132, %v933
    %s935 = sld [smem:[#allocation13 + $0xd]]
    %v936 = vstv %s935
    %v937 = vadd.f32 %v934, %v936
    %s938 = sld [smem:[#allocation11 + $0x8d]]
    %v939 = vstv %s938
    %v940 = vmul.f32 %v134, %v939
    %v941 = vadd.f32 %v937, %v940
    %s942 = sld [smem:[#allocation11 + $0x10d]]
    %v943 = vstv %s942
    %v944 = vmul.f32 %v136, %v943
    %v945 = vadd.f32 %v941, %v944
    %s946 = sld [smem:[#allocation11 + $0x18d]]
    %v947 = vstv %s946
    %v948 = vmul.f32 %v138, %v947
    %v949 = vadd.f32 %v945, %v948
    %s950 = sld [smem:[#allocation11 + $0x20d]]
    %v951 = vstv %s950
    %v952 = vmul.f32 %v140, %v951
    %v953 = vadd.f32 %v949, %v952
    %v954 = vmax.f32 %v953, 0.0
    %s955 = sld [smem:[#allocation14 + $0xd]]
    %v956 = vstv %s955
    %v957 = vmul.f32 %v954, %v956
    %v958 = vadd.f32 %v931, %v957
    %s959 = sld [smem:[#allocation11 + $0xe]]
    %v960 = vstv %s959
    %v961 = vmul.f32 %v132, %v960
    %s962 = sld [smem:[#allocation13 + $0xe]]
    %v963 = vstv %s962
    %v964 = vadd.f32 %v961, %v963
    %s965 = sld [smem:[#allocation11 + $0x8e]]
    %v966 = vstv %s965
    %v967 = vmul.f32 %v134, %v966
    %v968 = vadd.f32 %v964, %v967
    %s969 = sld [smem:[#allocation11 + $0x10e]]
    %v970 = vstv %s969
    %v971 = vmul.f32 %v136, %v970
    %v972 = vadd.f32 %v968, %v971
    %s973 = sld [smem:[#allocation11 + $0x18e]]
    %v974 = vstv %s973
    %v975 = vmul.f32 %v138, %v974
    %v976 = vadd.f32 %v972, %v975
    %s977 = sld [smem:[#allocation11 + $0x20e]]
    %v978 = vstv %s977
    %v979 = vmul.f32 %v140, %v978
    %v980 = vadd.f32 %v976, %v979
    %v981 = vmax.f32 %v980, 0.0
    %s982 = sld [smem:[#allocation14 + $0xe]]
    %v983 = vstv %s982
    %v984 = vmul.f32 %v981, %v983
    %v985 = vadd.f32 %v958, %v984
    %s986 = sld [smem:[#allocation11 + $0xf]]
    %v987 = vstv %s986
    %v988 = vmul.f32 %v132, %v987
    %s989 = sld [smem:[#allocation13 + $0xf]]
    %v990 = vstv %s989
    %v991 = vadd.f32 %v988, %v990
    %s992 = sld [smem:[#allocation11 + $0x8f]]
    %v993 = vstv %s992
    %v994 = vmul.f32 %v134, %v993
    %v995 = vadd.f32 %v991, %v994
    %s996 = sld [smem:[#allocation11 + $0x10f]]
    %v997 = vstv %s996
    %v998 = vmul.f32 %v136, %v997
    %v999 = vadd.f32 %v995, %v998
    %s1000 = sld [smem:[#allocation11 + $0x18f]]
    %v1001 = vstv %s1000
    %v1002 = vmul.f32 %v138, %v1001
    %v1003 = vadd.f32 %v999, %v1002
    %s1004 = sld [smem:[#allocation11 + $0x20f]]
    %v1005 = vstv %s1004
    %v1006 = vmul.f32 %v140, %v1005
    %v1007 = vadd.f32 %v1003, %v1006
    %v1008 = vmax.f32 %v1007, 0.0
    %s1009 = sld [smem:[#allocation14 + $0xf]]
    %v1010 = vstv %s1009
    %v1011 = vmul.f32 %v1008, %v1010
    %v1012 = vadd.f32 %v985, %v1011
    %s1013 = sld [smem:[#allocation3]]
    %v1014 = vstv %s1013
    %v1015 = vadd.f32 %v1012, %v1014
    %v1016 = vxor.u32 %v1015, 2147483648
    %v1017 = vmul.f32 %v1016, 1.442695
    %v1018 = vpow.pop %v1017
    %v1019 = vadd.f32 %v1018, 1.0
    %v1020 = vrcp.pop %v1019
    %v1021 = vmul.f32 1.0, %v1020
    %v1022 = vmul.f32 %v1021, %v131
    %v1023 = vld [vmem:[%s12] sm:$0xf]
    %v1024 = vld [vmem:[%s13] sm:$0x1]
    %vm1025 = vcmask 64512
    %v1026 = vsel %vm1025, %v581, 0.0
    %1027 = vadd.xlane.f32.xlu0 %v1026
    %v1028 = vpop.xlane.xlu0 %1027
    %v1029 = vadd.f32 %v1028, 1.0
    %v1030 = vrsqrt.pop %v1029
    %vm1031 = vcmask 31744
    %v1033 = vsel %vm1031, %v130, 0
    %vm1035 = vcmask 1043456
    %v1037 = vsel %vm1035, %v1023, 0
    %1039 = vmatprep.subr.mxu0 0.0
    %1040 = vmatpush1.msra.mxu0 %v1037
    %1041 = vmatprep.subr.mxu0 0.0
    %1042 = vmatpush1.msra.mxu0 0.0
    %1043 = vmatprep.subr.mxu0 0.0
    %1044 = vmatpush1.msra.mxu0 0.0
    %1045 = vmatprep.subr.mxu0 0.0
    %1046 = vmatpush1.msra.mxu0 0.0
    %1047 = vmatprep.subr.mxu0 0.0
    %1048 = vmatpush1.msra.mxu0 0.0
    %1049 = vmatprep.subr.mxu0 0.0
    %1050 = vmatpush1.msra.mxu0 0.0
    %1051 = vmatprep.subr.mxu0 0.0
    %1052 = vmatpush1.msra.mxu0 0.0
    %1053 = vmatprep.subr.mxu0 0.0
    %1054 = vmatpush1.msra.mxu0 0.0
    %1055 = vmatprep.subr.mxu0 0.0
    %1056 = vmatpush1.msra.mxu0 0.0
    %1057 = vmatprep.subr.mxu0 0.0
    %1058 = vmatpush1.msra.mxu0 0.0
    %1059 = vmatprep.subr.mxu0 0.0
    %1060 = vmatpush1.msra.mxu0 0.0
    %1061 = vmatprep.subr.mxu0 0.0
    %1062 = vmatpush1.msra.mxu0 0.0
    %1063 = vmatprep.subr.mxu0 0.0
    %1064 = vmatpush1.msra.mxu0 0.0
    %1065 = vmatprep.subr.mxu0 0.0
    %1066 = vmatpush1.msra.mxu0 0.0
    %1067 = vmatprep.subr.mxu0 0.0
    %1068 = vmatpush1.msra.mxu0 0.0
    %1069 = vmatprep.subr.mxu0 0.0
    %1070 = vmatpush1.msra.mxu0 0.0
    %1071 = vmatprep.subr.mxu0 0.0
    %1072 = vmatpush1.msra.mxu0 0.0
    %1073 = vmatprep.subr.mxu0 0.0
    %1074 = vmatpush1.msra.mxu0 0.0
    %1075 = vmatprep.subr.mxu0 0.0
    %1076 = vmatpush1.msra.mxu0 0.0
    %1077 = vmatprep.subr.mxu0 0.0
    %1078 = vmatpush1.msra.mxu0 0.0
    %1079 = vmatprep.subr.mxu0 0.0
    %1080 = vmatpush1.msra.mxu0 0.0
    %1081 = vmatprep.subr.mxu0 0.0
    %1082 = vmatpush1.msra.mxu0 0.0
    %1083 = vmatprep.subr.mxu0 0.0
    %1084 = vmatpush1.msra.mxu0 0.0
    %1085 = vmatprep.subr.mxu0 0.0
    %1086 = vmatpush1.msra.mxu0 0.0
    %1087 = vmatprep.subr.mxu0 0.0
    %1088 = vmatpush1.msra.mxu0 0.0
    %1089 = vmatprep.subr.mxu0 0.0
    %1090 = vmatpush1.msra.mxu0 0.0
    %1091 = vmatprep.subr.mxu0 0.0
    %1092 = vmatpush1.msra.mxu0 0.0
    %1093 = vmatprep.subr.mxu0 0.0
    %1094 = vmatpush1.msra.mxu0 0.0
    %1095 = vmatprep.subr.mxu0 0.0
    %1096 = vmatpush1.msra.mxu0 0.0
    %1097 = vmatprep.subr.mxu0 0.0
    %1098 = vmatpush1.msra.mxu0 0.0
    %1099 = vmatprep.subr.mxu0 0.0
    %1100 = vmatpush1.msra.mxu0 0.0
    %1101 = vmatprep.subr.mxu0 0.0
    %1102 = vmatpush1.msra.mxu0 0.0
    %1103 = vmatprep.mubr.f32.mxu0 0.0
    %1104 = vmatmul.mubr.f32.gmra.mrb[0].mxu0 %v1033
    %v1105 = vpop.f32.mrb[0].mxu0
    %v1106 = vadd.f32 0.0, %v1105
    %v1107 = vpop.f32.mrb[0].mxu0
    %1108 = vdwg.mxu0
    %v1109 = vmul.f32 %v1030, %v1106
    %v1111 = vsel %vm1025, %v581, 0
    %1113 = vmatprep.subr.mxu0 0.0
    %1114 = vmatpush1.msra.mxu0 %v1109
    %1115 = vmatprep.subr.mxu0 0.0
    %1116 = vmatpush1.msra.mxu0 0.0
    %1117 = vmatprep.subr.mxu0 0.0
    %1118 = vmatpush1.msra.mxu0 0.0
    %1119 = vmatprep.subr.mxu0 0.0
    %1120 = vmatpush1.msra.mxu0 0.0
    %1121 = vmatprep.subr.mxu0 0.0
    %1122 = vmatpush1.msra.mxu0 0.0
    %1123 = vmatprep.subr.mxu0 0.0
    %1124 = vmatpush1.msra.mxu0 0.0
    %1125 = vmatprep.subr.mxu0 0.0
    %1126 = vmatpush1.msra.mxu0 0.0
    %1127 = vmatprep.subr.mxu0 0.0
    %1128 = vmatpush1.msra.mxu0 0.0
    %1129 = vmatprep.subr.mxu0 0.0
    %1130 = vmatpush1.msra.mxu0 0.0
    %1131 = vmatprep.subr.mxu0 0.0
    %1132 = vmatpush1.msra.mxu0 0.0
    %1133 = vmatprep.subr.mxu0 0.0
    %1134 = vmatpush1.msra.mxu0 0.0
    %1135 = vmatprep.subr.mxu0 0.0
    %1136 = vmatpush1.msra.mxu0 0.0
    %1137 = vmatprep.subr.mxu0 0.0
    %1138 = vmatpush1.msra.mxu0 0.0
    %1139 = vmatprep.subr.mxu0 0.0
    %1140 = vmatpush1.msra.mxu0 0.0
    %1141 = vmatprep.subr.mxu0 0.0
    %1142 = vmatpush1.msra.mxu0 0.0
    %1143 = vmatprep.subr.mxu0 0.0
    %1144 = vmatpush1.msra.mxu0 0.0
    %1145 = vmatprep.subr.mxu0 0.0
    %1146 = vmatpush1.msra.mxu0 0.0
    %1147 = vmatprep.subr.mxu0 0.0
    %1148 = vmatpush1.msra.mxu0 0.0
    %1149 = vmatprep.subr.mxu0 0.0
    %1150 = vmatpush1.msra.mxu0 0.0
    %1151 = vmatprep.subr.mxu0 0.0
    %1152 = vmatpush1.msra.mxu0 0.0
    %1153 = vmatprep.subr.mxu0 0.0
    %1154 = vmatpush1.msra.mxu0 0.0
    %1155 = vmatprep.subr.mxu0 0.0
    %1156 = vmatpush1.msra.mxu0 0.0
    %1157 = vmatprep.subr.mxu0 0.0
    %1158 = vmatpush1.msra.mxu0 0.0
    %1159 = vmatprep.subr.mxu0 0.0
    %1160 = vmatpush1.msra.mxu0 0.0
    %1161 = vmatprep.subr.mxu0 0.0
    %1162 = vmatpush1.msra.mxu0 0.0
    %1163 = vmatprep.subr.mxu0 0.0
    %1164 = vmatpush1.msra.mxu0 0.0
    %1165 = vmatprep.subr.mxu0 0.0
    %1166 = vmatpush1.msra.mxu0 0.0
    %1167 = vmatprep.subr.mxu0 0.0
    %1168 = vmatpush1.msra.mxu0 0.0
    %1169 = vmatprep.subr.mxu0 0.0
    %1170 = vmatpush1.msra.mxu0 0.0
    %1171 = vmatprep.subr.mxu0 0.0
    %1172 = vmatpush1.msra.mxu0 0.0
    %1173 = vmatprep.subr.mxu0 0.0
    %1174 = vmatpush1.msra.mxu0 0.0
    %1175 = vmatprep.subr.mxu0 0.0
    %1176 = vmatpush1.msra.mxu0 0.0
    %1177 = vmatprep.mubr.f32.mxu0 0.0
    %1178 = vmatmul.mubr.f32.gmra.mrb[0].mxu0 %v1111
    %v1179 = vpop.f32.mrb[0].mxu0
    %v1180 = vadd.f32 %v1109, %v1179
    %v1181 = vpop.f32.mrb[0].mxu0
    %1182 = vdwg.mxu0
    %v1183 = vmul.f32 %v1030, %v1180
    %v1185 = vlaneseq
    %v1186 = vshrl.u32 %v1185, 7
    %v1187 = vsub.s32 0, %v1186
    %v1188 = vrot.slane %v1024, %v1187
    %v1190 = vadd.f32 %v1183, %v1188
    %vm1191 = vcmp.gt.f32.partialorder %v1190, 0.0
    %v1192 = vmul.f32 %v1190, 0.01
    %v1193 = vsel %vm1191, %v1190, %v1192
    %v1194 = vld [vmem:[%s14] sm:$0xff]
    %v1195 = vld [vmem:[%s15] sm:$0x1]
    %v1196 = vsel %vm1025, %v1022, 0.0
    %1197 = vadd.xlane.f32.xlu0 %v1196
    %v1198 = vpop.xlane.xlu0 %1197
    %v1199 = vadd.f32 %v1198, 1.0
    %v1200 = vrsqrt.pop %v1199
    %v1202 = vsel %vm1025, %v1193, 0
    %1204 = vmatprep.subr.mxu0 0.0
    %1205 = vmatpush1.msra.mxu0 %v1194
    %1206 = vmatprep.subr.mxu0 0.0
    %1207 = vmatpush1.msra.mxu0 0.0
    %1208 = vmatprep.subr.mxu0 0.0
    %1209 = vmatpush1.msra.mxu0 0.0
    %1210 = vmatprep.subr.mxu0 0.0
    %1211 = vmatpush1.msra.mxu0 0.0
    %1212 = vmatprep.subr.mxu0 0.0
    %1213 = vmatpush1.msra.mxu0 0.0
    %1214 = vmatprep.subr.mxu0 0.0
    %1215 = vmatpush1.msra.mxu0 0.0
    %1216 = vmatprep.subr.mxu0 0.0
    %1217 = vmatpush1.msra.mxu0 0.0
    %1218 = vmatprep.subr.mxu0 0.0
    %1219 = vmatpush1.msra.mxu0 0.0
    %1220 = vmatprep.subr.mxu0 0.0
    %1221 = vmatpush1.msra.mxu0 0.0
    %1222 = vmatprep.subr.mxu0 0.0
    %1223 = vmatpush1.msra.mxu0 0.0
    %1224 = vmatprep.subr.mxu0 0.0
    %1225 = vmatpush1.msra.mxu0 0.0
    %1226 = vmatprep.subr.mxu0 0.0
    %1227 = vmatpush1.msra.mxu0 0.0
    %1228 = vmatprep.subr.mxu0 0.0
    %1229 = vmatpush1.msra.mxu0 0.0
    %1230 = vmatprep.subr.mxu0 0.0
    %1231 = vmatpush1.msra.mxu0 0.0
    %1232 = vmatprep.subr.mxu0 0.0
    %1233 = vmatpush1.msra.mxu0 0.0
    %1234 = vmatprep.subr.mxu0 0.0
    %1235 = vmatpush1.msra.mxu0 0.0
    %1236 = vmatprep.subr.mxu0 0.0
    %1237 = vmatpush1.msra.mxu0 0.0
    %1238 = vmatprep.subr.mxu0 0.0
    %1239 = vmatpush1.msra.mxu0 0.0
    %1240 = vmatprep.subr.mxu0 0.0
    %1241 = vmatpush1.msra.mxu0 0.0
    %1242 = vmatprep.subr.mxu0 0.0
    %1243 = vmatpush1.msra.mxu0 0.0
    %1244 = vmatprep.subr.mxu0 0.0
    %1245 = vmatpush1.msra.mxu0 0.0
    %1246 = vmatprep.subr.mxu0 0.0
    %1247 = vmatpush1.msra.mxu0 0.0
    %1248 = vmatprep.subr.mxu0 0.0
    %1249 = vmatpush1.msra.mxu0 0.0
    %1250 = vmatprep.subr.mxu0 0.0
    %1251 = vmatpush1.msra.mxu0 0.0
    %1252 = vmatprep.subr.mxu0 0.0
    %1253 = vmatpush1.msra.mxu0 0.0
    %1254 = vmatprep.subr.mxu0 0.0
    %1255 = vmatpush1.msra.mxu0 0.0
    %1256 = vmatprep.subr.mxu0 0.0
    %1257 = vmatpush1.msra.mxu0 0.0
    %1258 = vmatprep.subr.mxu0 0.0
    %1259 = vmatpush1.msra.mxu0 0.0
    %1260 = vmatprep.subr.mxu0 0.0
    %1261 = vmatpush1.msra.mxu0 0.0
    %1262 = vmatprep.subr.mxu0 0.0
    %1263 = vmatpush1.msra.mxu0 0.0
    %1264 = vmatprep.subr.mxu0 0.0
    %1265 = vmatpush1.msra.mxu0 0.0
    %1266 = vmatprep.subr.mxu0 0.0
    %1267 = vmatpush1.msra.mxu0 0.0
    %1268 = vmatprep.mubr.f32.mxu0 0.0
    %1269 = vmatmul.mubr.f32.gmra.mrb[0].mxu0 %v1202
    %v1270 = vpop.f32.mrb[0].mxu0
    %v1271 = vadd.f32 0.0, %v1270
    %v1272 = vpop.f32.mrb[0].mxu0
    %1273 = vdwg.mxu0
    %v1274 = vmul.f32 %v1200, %v1271
    %v1276 = vsel %vm1025, %v1022, 0
    %1278 = vmatprep.subr.mxu0 0.0
    %1279 = vmatpush1.msra.mxu0 %v1274
    %1280 = vmatprep.subr.mxu0 0.0
    %1281 = vmatpush1.msra.mxu0 0.0
    %1282 = vmatprep.subr.mxu0 0.0
    %1283 = vmatpush1.msra.mxu0 0.0
    %1284 = vmatprep.subr.mxu0 0.0
    %1285 = vmatpush1.msra.mxu0 0.0
    %1286 = vmatprep.subr.mxu0 0.0
    %1287 = vmatpush1.msra.mxu0 0.0
    %1288 = vmatprep.subr.mxu0 0.0
    %1289 = vmatpush1.msra.mxu0 0.0
    %1290 = vmatprep.subr.mxu0 0.0
    %1291 = vmatpush1.msra.mxu0 0.0
    %1292 = vmatprep.subr.mxu0 0.0
    %1293 = vmatpush1.msra.mxu0 0.0
    %1294 = vmatprep.subr.mxu0 0.0
    %1295 = vmatpush1.msra.mxu0 0.0
    %1296 = vmatprep.subr.mxu0 0.0
    %1297 = vmatpush1.msra.mxu0 0.0
    %1298 = vmatprep.subr.mxu0 0.0
    %1299 = vmatpush1.msra.mxu0 0.0
    %1300 = vmatprep.subr.mxu0 0.0
    %1301 = vmatpush1.msra.mxu0 0.0
    %1302 = vmatprep.subr.mxu0 0.0
    %1303 = vmatpush1.msra.mxu0 0.0
    %1304 = vmatprep.subr.mxu0 0.0
    %1305 = vmatpush1.msra.mxu0 0.0
    %1306 = vmatprep.subr.mxu0 0.0
    %1307 = vmatpush1.msra.mxu0 0.0
    %1308 = vmatprep.subr.mxu0 0.0
    %1309 = vmatpush1.msra.mxu0 0.0
    %1310 = vmatprep.subr.mxu0 0.0
    %1311 = vmatpush1.msra.mxu0 0.0
    %1312 = vmatprep.subr.mxu0 0.0
    %1313 = vmatpush1.msra.mxu0 0.0
    %1314 = vmatprep.subr.mxu0 0.0
    %1315 = vmatpush1.msra.mxu0 0.0
    %1316 = vmatprep.subr.mxu0 0.0
    %1317 = vmatpush1.msra.mxu0 0.0
    %1318 = vmatprep.subr.mxu0 0.0
    %1319 = vmatpush1.msra.mxu0 0.0
    %1320 = vmatprep.subr.mxu0 0.0
    %1321 = vmatpush1.msra.mxu0 0.0
    %1322 = vmatprep.subr.mxu0 0.0
    %1323 = vmatpush1.msra.mxu0 0.0
    %1324 = vmatprep.subr.mxu0 0.0
    %1325 = vmatpush1.msra.mxu0 0.0
    %1326 = vmatprep.subr.mxu0 0.0
    %1327 = vmatpush1.msra.mxu0 0.0
    %1328 = vmatprep.subr.mxu0 0.0
    %1329 = vmatpush1.msra.mxu0 0.0
    %1330 = vmatprep.subr.mxu0 0.0
    %1331 = vmatpush1.msra.mxu0 0.0
    %1332 = vmatprep.subr.mxu0 0.0
    %1333 = vmatpush1.msra.mxu0 0.0
    %1334 = vmatprep.subr.mxu0 0.0
    %1335 = vmatpush1.msra.mxu0 0.0
    %1336 = vmatprep.subr.mxu0 0.0
    %1337 = vmatpush1.msra.mxu0 0.0
    %1338 = vmatprep.subr.mxu0 0.0
    %1339 = vmatpush1.msra.mxu0 0.0
    %1340 = vmatprep.subr.mxu0 0.0
    %1341 = vmatpush1.msra.mxu0 0.0
    %1342 = vmatprep.mubr.f32.mxu0 0.0
    %1343 = vmatmul.mubr.f32.gmra.mrb[0].mxu0 %v1276
    %v1344 = vpop.f32.mrb[0].mxu0
    %v1345 = vadd.f32 %v1274, %v1344
    %v1346 = vpop.f32.mrb[0].mxu0
    %1347 = vdwg.mxu0
    %v1348 = vmul.f32 %v1200, %v1345
    %v1350 = vlaneseq
    %v1351 = vshrl.u32 %v1350, 7
    %v1352 = vsub.s32 0, %v1351
    %v1353 = vrot.slane %v1195, %v1352
    %v1355 = vadd.f32 %v1348, %v1353
    %v1356 = vadd.f32 %v1355, %v130
    %v1357 = vld [vmem:[%s3] sm:$0xff]
    %v1358 = vld [vmem:[%s3 + $0x8] sm:$0xff]
    %vm1359 = vcmp.gt.f32.partialorder %v1357, 0.5
    %vm1360 = vcmp.gt.f32.partialorder %v1358, 0.5
    %v1361 = vsel %vm1359, 1, 0
    %v1362 = vsel %vm1360, 1, 0
    %1363 = vset.pattern.permute.xlu0 0
    %1364 = vperm.xlu0 %1363, %v1361
    %v1365 = vpop.permute.xlu0 %1364
    %1366 = vset.pattern.permute.xlu0 0
    %1367 = vperm.xlu0 %1366, %v1362
    %v1368 = vpop.permute.xlu0 %1367
    %vm1369 = vcmp.eq.s32.totalorder %v1365, 1
    %vm1370 = vcmp.eq.s32.totalorder %v1368, 1
    %v1371 = vsel %vm1369, %v1356, -1e+30
    %v1372 = vsel %vm1370, %v1356, -1e+30
    %v1373 = vsel %vm1031, %v1371, -inf
    %v1374 = vrot.slane %v1373, 4
    %v1375 = vmax.f32 %v1373, %v1374
    %v1376 = vrot.slane %v1375, 2
    %v1377 = vmax.f32 %v1375, %v1376
    %v1378 = vrot.slane %v1377, 1
    %v1379 = vmax.f32 %v1377, %v1378
    %v1380 = vsel %vm1031, %v1372, -inf
    %v1381 = vrot.slane %v1380, 4
    %v1382 = vmax.f32 %v1380, %v1381
    %v1383 = vrot.slane %v1382, 2
    %v1384 = vmax.f32 %v1382, %v1383
    %v1385 = vrot.slane %v1384, 1
    %v1386 = vmax.f32 %v1384, %v1385
    %vm1387 = vcmp.gt.f32.partialorder %v1379, 0.0
    %vm1388 = vcmp.gt.f32.partialorder %v1386, 0.0
    %v1389 = vmul.f32 %v1379, 0.01
    %v1390 = vmul.f32 %v1386, 0.01
    %v1391 = vsel %vm1387, %v1379, %v1389
    %v1392 = vsel %vm1388, %v1386, %v1390
    %v1393 = vld [vmem:[%s16] sm:$0xf]
    %v1394 = vld [vmem:[%s17] sm:$0x1]
    %v1396 = vlaneseq
    %v1397 = vshrl.u32 %v1396, 7
    %v1398 = vsub.s32 0, %v1397
    %v1399 = vrot.slane %v1394, %v1398
    %vm1403 = vcmask 1041409
    %v1404 = vsel %vm1403, %v1392, %v1391
    %v1405 = vsel %vm1031, %v1404, 0
    %v1408 = vsel %vm1035, %v1393, 0
    %1410 = vmatprep.subr.mxu0 0.0
    %1411 = vmatpush1.msra.mxu0 %v1408
    %1412 = vmatprep.subr.mxu0 0.0
    %1413 = vmatpush1.msra.mxu0 0.0
    %1414 = vmatprep.subr.mxu0 0.0
    %1415 = vmatpush1.msra.mxu0 0.0
    %1416 = vmatprep.subr.mxu0 0.0
    %1417 = vmatpush1.msra.mxu0 0.0
    %1418 = vmatprep.subr.mxu0 0.0
    %1419 = vmatpush1.msra.mxu0 0.0
    %1420 = vmatprep.subr.mxu0 0.0
    %1421 = vmatpush1.msra.mxu0 0.0
    %1422 = vmatprep.subr.mxu0 0.0
    %1423 = vmatpush1.msra.mxu0 0.0
    %1424 = vmatprep.subr.mxu0 0.0
    %1425 = vmatpush1.msra.mxu0 0.0
    %1426 = vmatprep.subr.mxu0 0.0
    %1427 = vmatpush1.msra.mxu0 0.0
    %1428 = vmatprep.subr.mxu0 0.0
    %1429 = vmatpush1.msra.mxu0 0.0
    %1430 = vmatprep.subr.mxu0 0.0
    %1431 = vmatpush1.msra.mxu0 0.0
    %1432 = vmatprep.subr.mxu0 0.0
    %1433 = vmatpush1.msra.mxu0 0.0
    %1434 = vmatprep.subr.mxu0 0.0
    %1435 = vmatpush1.msra.mxu0 0.0
    %1436 = vmatprep.subr.mxu0 0.0
    %1437 = vmatpush1.msra.mxu0 0.0
    %1438 = vmatprep.subr.mxu0 0.0
    %1439 = vmatpush1.msra.mxu0 0.0
    %1440 = vmatprep.subr.mxu0 0.0
    %1441 = vmatpush1.msra.mxu0 0.0
    %1442 = vmatprep.subr.mxu0 0.0
    %1443 = vmatpush1.msra.mxu0 0.0
    %1444 = vmatprep.subr.mxu0 0.0
    %1445 = vmatpush1.msra.mxu0 0.0
    %1446 = vmatprep.subr.mxu0 0.0
    %1447 = vmatpush1.msra.mxu0 0.0
    %1448 = vmatprep.subr.mxu0 0.0
    %1449 = vmatpush1.msra.mxu0 0.0
    %1450 = vmatprep.subr.mxu0 0.0
    %1451 = vmatpush1.msra.mxu0 0.0
    %1452 = vmatprep.subr.mxu0 0.0
    %1453 = vmatpush1.msra.mxu0 0.0
    %1454 = vmatprep.subr.mxu0 0.0
    %1455 = vmatpush1.msra.mxu0 0.0
    %1456 = vmatprep.subr.mxu0 0.0
    %1457 = vmatpush1.msra.mxu0 0.0
    %1458 = vmatprep.subr.mxu0 0.0
    %1459 = vmatpush1.msra.mxu0 0.0
    %1460 = vmatprep.subr.mxu0 0.0
    %1461 = vmatpush1.msra.mxu0 0.0
    %1462 = vmatprep.subr.mxu0 0.0
    %1463 = vmatpush1.msra.mxu0 0.0
    %1464 = vmatprep.subr.mxu0 0.0
    %1465 = vmatpush1.msra.mxu0 0.0
    %1466 = vmatprep.subr.mxu0 0.0
    %1467 = vmatpush1.msra.mxu0 0.0
    %1468 = vmatprep.subr.mxu0 0.0
    %1469 = vmatpush1.msra.mxu0 0.0
    %1470 = vmatprep.subr.mxu0 0.0
    %1471 = vmatpush1.msra.mxu0 0.0
    %1472 = vmatprep.subr.mxu0 0.0
    %1473 = vmatpush1.msra.mxu0 0.0
    %1474 = vmatprep.mubr.f32.mxu0 0.0
    %1475 = vmatmul.mubr.f32.gmra.mrb[0].mxu0 %v1405
    %v1476 = vpop.f32.mrb[0].mxu0
    %v1477 = vadd.f32 %v1399, %v1476
    %v1478 = vpop.f32.mrb[0].mxu0
    %1479 = vdwg.mxu0
    %vm1480 = vcmask 41984
    %1481 = vst.msk [vmem:[#allocation16] sm:$0x3] %vm1480, %v1477
    // Predicated region
    $region98: #{tpu_custom_call.1} parent=1 // pred_check
      _
    $region99: #{tpu_custom_call.1} parent=1 // pred_check_branch
      %1483 = sbr.rel (0) target = $region101
    $region100: #{tpu_custom_call.1} parent=1 // pred_region
      %s1485 = ssub.s32 32, 32
      %1486 = vsyncadd [#allocation5], %s1485
      %s1488 = sshll.u32 [#allocation16], 4
      %s1489 = int_to_ptr.vmem [resolvable:$true] %s1488
      %1491 = dma.vmem_to_hbm [thread:$0]  %s1489, 32, %s18, [#allocation5]
    $region101: #{tpu_custom_call.1} parent=1 // pred_fallthru
      _
    // Predicated region
    $region102: #{tpu_custom_call.1} parent=1 // pred_check
      _
    $region103: #{tpu_custom_call.1} parent=1 // pred_check_branch
      %1493 = sbr.rel (0) target = $region105
    $region104: #{tpu_custom_call.1} parent=1 // pred_region
      %1494 = dma.done [#allocation5], 32
    $region105: #{tpu_custom_call.1} parent=1 // pred_fallthru
      _
    %1495 = vsyncpa [#allocation5], 1
    %1496 = vsyncpa [#allocation6], 1
    %1497 = vsyncpa [#allocation10], 1
    %1498 = vsyncpa [#allocation7], 1
    %1499 = vsyncpa [#allocation12], 1
    %1500 = vsyncpa [#allocation15], 1

</llo_original>
